<compile_context>
chip_gen: v7x
topology: tpu7x:2x2x1
jax: 0.10.0
libtpu: 0.0.40
codegen_flags: <defaults>
</compile_context>

<pallas_src>
import functools

import jax
import jax.numpy as jnp
from jax.experimental import pallas as pl
from jax.experimental.pallas import tpu as pltpu

_GROUPS = 8


def _round_up(x, m):
    return ((x + m - 1) // m) * m


# ----------------------------- Pallas kernel -------------------------------

def _make_conv_gn_kernel(offsets, Lp, cin, inv_count, eps, slope,
                         res_kind, sc_offset, mask_output):
    """conv3x3x3 (single K=27*Cin GEMM) + bias + GroupNorm + residual + LeakyReLU."""

    def kernel(*refs):
        if res_kind == "conv":
            (x_ref, w_ref, b_ref, g_ref, bt_ref, grp_ref, m_ref,
             sc_ref, wsc_ref, o_ref, xcat) = refs
        elif res_kind == "add":
            (x_ref, w_ref, b_ref, g_ref, bt_ref, grp_ref, m_ref,
             sc_ref, o_ref, xcat) = refs
        else:
            x_ref, w_ref, b_ref, g_ref, bt_ref, grp_ref, m_ref, o_ref, xcat = refs

        # ---- build the (27*Cin, Lp) im2col operand in VMEM (sublane concat
        #      of the 27 lane-shifted tap slices), then ONE K=27*Cin GEMM ----
        for t, off in enumerate(offsets):
            xcat[t * cin:(t + 1) * cin, :] = x_ref[0, :, off:off + Lp]
        acc = jnp.dot(w_ref[...], xcat[...],
                      preferred_element_type=jnp.float32)           # (Cout, Lp)
        acc = acc + b_ref[...]                                       # bias

        # ---- GroupNorm: lane reductions + tiny group-aggregation dots ------
        m = m_ref[...]                                               # (1, Lp)
        accm = acc * m                                               # masked
        s1 = jnp.sum(accm, axis=1, keepdims=True)                    # (Cout, 1)
        s2 = jnp.sum(accm * acc, axis=1, keepdims=True)              # (Cout, 1)
        g1 = jnp.dot(grp_ref[...], s1, preferred_element_type=jnp.float32)
        g2 = jnp.dot(grp_ref[...], s2, preferred_element_type=jnp.float32)
        mean = g1 * inv_count
        var = g2 * inv_count - mean * mean                           # biased (PyTorch)
        inv_std = jax.lax.rsqrt(var + eps)
        y = (acc - mean) * (inv_std * g_ref[...]) + bt_ref[...]

        # ---- fused residual (bf16 on both paths) ---------------------------
        if res_kind == "conv":        # 1x1x1 shortcut conv (no bias)
            scv = sc_ref[0, :, sc_offset:sc_offset + Lp]
            y = y + jnp.dot(wsc_ref[...], scv,
                            preferred_element_type=jnp.float32)
        elif res_kind == "add":       # identity shortcut
            scv = sc_ref[0, :, sc_offset:sc_offset + Lp]
            y = y + scv.astype(jnp.float32)

        # ---- LeakyReLU(0.01) (+ zero invalid lattice positions if chained) -
        y = jnp.where(y >= 0.0, y, slope * y)
        if mask_output:
            y = y * m
        o_ref[0] = y.astype(o_ref.dtype)

    return kernel


# ------------------------------ Host wrapper --------------------------------

def fused_conv_gn_act(x_flat, w_flat, b, gamma, beta, mask, *, offsets, Lp,
                      inv_count, groups=_GROUPS, eps=1e-5, slope=0.01,
                      mask_output=False, out_dtype=jnp.float32,
                      sc_flat=None, sc_offset=0, w_sc=None):
    """Fused Conv3d(k=3,p=1) + GroupNorm + optional residual + LeakyReLU.

    x_flat : (N, Cin, Xlen) bf16 zero-padded flat activation; tap t of output
             lattice position q reads x_flat[:, :, q + offsets[t]].
    w_flat : (Cout, 27*Cin) bf16, column index = t*Cin + cin.
    mask   : (1, Lp) f32 indicator of real output positions in the lattice.
    Output : (N, Cout, Lp) extended-lattice activation.
    """
    N, Cin, Xlen = x_flat.shape
    Cout, Ktot = w_flat.shape
    assert Ktot == 27 * Cin and Cout % groups == 0
    assert Lp % 128 == 0 and Xlen >= max(offsets) + Lp

    cg = Cout // groups
    gid = jnp.arange(Cout) // cg
    grp = (gid[:, None] == gid[None, :]).astype(jnp.float32)   # (Cout, Cout)

    inputs = [x_flat, w_flat,
              b.reshape(Cout, 1).astype(jnp.float32),
              gamma.reshape(Cout, 1).astype(jnp.float32),
              beta.reshape(Cout, 1).astype(jnp.float32),
              grp, mask]
    in_specs = [pl.BlockSpec((1, Cin, Xlen), lambda n: (n, 0, 0)),
                pl.BlockSpec((Cout, Ktot), lambda n: (0, 0)),
                pl.BlockSpec((Cout, 1), lambda n: (0, 0)),
                pl.BlockSpec((Cout, 1), lambda n: (0, 0)),
                pl.BlockSpec((Cout, 1), lambda n: (0, 0)),
                pl.BlockSpec((Cout, Cout), lambda n: (0, 0)),
                pl.BlockSpec((1, Lp), lambda n: (0, 0))]

    flops = 2 * N * Cout * Ktot * Lp
    if sc_flat is not None:
        Csc, SLen = sc_flat.shape[1], sc_flat.shape[2]
        inputs.append(sc_flat)
        in_specs.append(pl.BlockSpec((1, Csc, SLen), lambda n: (n, 0, 0)))
        if w_sc is not None:
            res_kind = "conv"
            inputs.append(w_sc.astype(jnp.bfloat16))
            in_specs.append(pl.BlockSpec((Cout, Csc), lambda n: (0, 0)))
            flops += 2 * N * Cout * Csc * Lp
        else:
            res_kind = "add"
    else:
        res_kind = "none"

    kernel = _make_conv_gn_kernel(offsets, Lp, Cin, inv_count, eps, slope,
                                  res_kind, sc_offset, mask_output)

    out_itemsize = jnp.dtype(out_dtype).itemsize
    # Per-grid-step VMEM footprint: double-buffered in/out blocks + scratch.
    footprint = (2 * (Cin * Xlen * 2 + Cout * Ktot * 2 + 3 * Cout * 4 +
                      Cout * Cout * 4 + Lp * 4 + Cout * Lp * out_itemsize)
                 + Ktot * Lp * 2)
    if sc_flat is not None:
        footprint += 2 * sc_flat.shape[1] * sc_flat.shape[2] * 2
    vmem_limit = int(min(64 * 1024 * 1024,
                         max(32 * 1024 * 1024, 2 * footprint)))

    cost = pl.CostEstimate(
        flops=int(flops),
        transcendentals=int(N * Cout),
        bytes_accessed=int(sum(int(v.size) * v.dtype.itemsize for v in inputs)
                           + N * Cout * Lp * out_itemsize))

    return pl.pallas_call(
        kernel,
        out_shape=jax.ShapeDtypeStruct((N, Cout, Lp), out_dtype),
        grid=(N,),
        in_specs=in_specs,
        out_specs=pl.BlockSpec((1, Cout, Lp), lambda n: (n, 0, 0)),
        scratch_shapes=[pltpu.VMEM((Ktot, Lp), jnp.bfloat16)],
        compiler_params=pltpu.CompilerParams(
            dimension_semantics=("parallel",),
            vmem_limit_bytes=vmem_limit),
        cost_estimate=cost,
    )(*inputs)


# ----------------------- flat-lattice layout helpers ------------------------

def _lattice(D, H, W):
    Dp, Hp, Wp = D + 2, H + 2, W + 2
    P = Dp * Hp * Wp
    delta = Hp * Wp + Wp + 1                 # offset of tap (1,1,1); max = 2*delta
    L = P - 2 * delta                        # extended output lattice length
    Lp = _round_up(L, 128)                   # lane-dense padded length
    offsets = tuple(kd * Hp * Wp + kh * Wp + kw
                    for kd in range(3) for kh in range(3) for kw in range(3))
    return Dp, Hp, Wp, P, delta, L, Lp, offsets


def _valid_mask(Lp, Hp, Wp, stride, Do, Ho, Wo):
    """(1, Lp) f32 mask of lattice positions that are real conv outputs."""
    q = jnp.arange(Lp, dtype=jnp.int32)
    d = q // (Hp * Wp)
    r = q % (Hp * Wp)
    h = r // Wp
    w = r % Wp
    valid = ((d % stride == 0) & (d // stride < Do) &
             (h % stride == 0) & (h // stride < Ho) &
             (w % stride == 0) & (w // stride < Wo))
    return valid.astype(jnp.float32).reshape(1, Lp)


def _flatten_padded(x5d, P, Xlen):
    """NCDHW -> zero-padded (pad=1) flat (N, C, Xlen) bf16 activation."""
    N, C = x5d.shape[:2]
    xp = jnp.pad(x5d, ((0, 0), (0, 0), (1, 1), (1, 1), (1, 1)))
    xp = xp.reshape(N, C, P).astype(jnp.bfloat16)
    return jnp.pad(xp, ((0, 0), (0, 0), (0, Xlen - P)))


def _crop_lattice(out_ext, Dp, Hp, Wp, stride, Do, Ho, Wo):
    """(N, C, Lp) extended lattice -> compact (N, C, Do, Ho, Wo)."""
    N, C, Lp = out_ext.shape
    P = Dp * Hp * Wp
    o = jnp.pad(out_ext, ((0, 0), (0, 0), (0, max(0, P - Lp))))[:, :, :P]
    o = o.reshape(N, C, Dp, Hp, Wp)
    s = stride
    return o[:, :,
             0:s * (Do - 1) + 1:s,
             0:s * (Ho - 1) + 1:s,
             0:s * (Wo - 1) + 1:s]


def _compact_to_lattice(v5d, Hp, Wp, Lp):
    """Compact (N,C,Do,Ho,Wo) -> (N, C, Lp) on the stride-1 output lattice."""
    N, C, Do, Ho, Wo = v5d.shape
    v = jnp.pad(v5d, ((0, 0), (0, 0), (0, 0), (0, Hp - Ho), (0, Wp - Wo)))
    v = v.reshape(N, C, Do * Hp * Wp)
    v = jnp.pad(v, ((0, 0), (0, 0), (0, max(0, Lp - Do * Hp * Wp))))[:, :, :Lp]
    return v.astype(jnp.bfloat16)


# ------------------------------ BasicBlock -----------------------------------

@functools.partial(jax.jit, static_argnames=("stride",))
def basic_block_forward(x, params, stride):
    """BasicBlock.forward (Dropout p=0.0 is the identity)."""
    s = int(stride)
    N, Cin, D, H, W = x.shape
    Cmid = params["w1_taps"].shape[1]
    Cout = params["w2_taps"].shape[1]
    Do, Ho, Wo = (D - 1) // s + 1, (H - 1) // s + 1, (W - 1) // s + 1

    # ---- conv1 + GN1 + LeakyReLU (fused) -----------------------------------
    Dp1, Hp1, Wp1, P1, d1, L1, Lp1, off1 = _lattice(D, H, W)
    Xlen1 = 2 * d1 + Lp1
    xp = _flatten_padded(x, P1, Xlen1)                    # (N, Cin, Xlen1) bf16
    mask1 = _valid_mask(Lp1, Hp1, Wp1, s, Do, Ho, Wo)
    w1 = jnp.transpose(params["w1_taps"], (1, 0, 2)).reshape(Cmid, 27 * Cin)
    h_ext = fused_conv_gn_act(
        xp, w1.astype(jnp.bfloat16), params["b1"], params["g1"], params["bb1"],
        mask1, offsets=off1, Lp=Lp1,
        inv_count=1.0 / float((Cmid // _GROUPS) * Do * Ho * Wo),
        mask_output=(s == 1), out_dtype=jnp.bfloat16)

    # ---- conv2 lattice (over the (Do, Ho, Wo) feature map) ------------------
    Dp2, Hp2, Wp2, P2, d2, L2, Lp2, off2 = _lattice(Do, Ho, Wo)
    Xlen2 = 2 * d2 + Lp2
    if s == 1:
        # Chain in the extended flat layout: conv1's masked lattice output IS
        # conv2's zero-padded flat input, shifted by delta (single flat pad).
        h_flat = jnp.pad(h_ext, ((0, 0), (0, 0), (d2, Xlen2 - d2 - Lp1)))
        mask2 = mask1
    else:
        h = _crop_lattice(h_ext, Dp1, Hp1, Wp1, s, Do, Ho, Wo)
        h_flat = _flatten_padded(h, P2, Xlen2)
        mask2 = _valid_mask(Lp2, Hp2, Wp2, 1, Do, Ho, Wo)

    # ---- shortcut ------------------------------------------------------------
    if "w_sc" in params:                     # 1x1x1 conv shortcut (strided)
        sc = _compact_to_lattice(x[:, :, ::s, ::s, ::s], Hp2, Wp2, Lp2)
        w_sc, sc_off = params["w_sc"], 0
    else:                                    # identity: reuse conv1's flat input
        sc, w_sc, sc_off = xp, None, d1

    # ---- conv2 + GN2 + residual + LeakyReLU (fused) --------------------------
    w2 = jnp.transpose(params["w2_taps"], (1, 0, 2)).reshape(Cout, 27 * Cmid)
    out_ext = fused_conv_gn_act(
        h_flat, w2.astype(jnp.bfloat16), params["b2"], params["g2"], params["bb2"],
        mask2, offsets=off2, Lp=Lp2,
        inv_count=1.0 / float((Cout // _GROUPS) * Do * Ho * Wo),
        mask_output=False, out_dtype=jnp.float32,
        sc_flat=sc, sc_offset=sc_off, w_sc=w_sc)

    return _crop_lattice(out_ext, Dp2, Hp2, Wp2, 1, Do, Ho, Wo)


# -------------------------- parameters & reference --------------------------

def init_basic_block_params(key, cin, cout, stride, cmid=None):
    cmid = cout if cmid is None else cmid
    ks = jax.random.split(key, 9)
    p = {
        "w1_taps": 0.1 * jax.random.normal(ks[0], (27, cmid, cin), jnp.float32),
        "b1": 0.05 * jax.random.normal(ks[1], (cmid,), jnp.float32),
        "g1": 1.0 + 0.05 * jax.random.normal(ks[2], (cmid,), jnp.float32),
        "bb1": 0.05 * jax.random.normal(ks[3], (cmid,), jnp.float32),
        "w2_taps": 0.1 * jax.random.normal(ks[4], (27, cout, cmid), jnp.float32),
        "b2": 0.05 * jax.random.normal(ks[5], (cout,), jnp.float32),
        "g2": 1.0 + 0.05 * jax.random.normal(ks[6], (cout,), jnp.float32),
        "bb2": 0.05 * jax.random.normal(ks[7], (cout,), jnp.float32),
    }
    if stride != 1 or cin != cout:
        p["w_sc"] = 0.1 * jax.random.normal(ks[8], (cout, cin), jnp.float32)
    return p


def _leaky(x, slope=0.01):
    return jnp.where(x >= 0, x, slope * x)


def _ref_conv3(x, w_taps, b, s):
    cout, cin = w_taps.shape[1], w_taps.shape[2]
    w = w_taps.reshape(3, 3, 3, cout, cin).transpose(3, 4, 0, 1, 2)
    out = jax.lax.conv_general_dilated(
        x, w, (s, s, s), ((1, 1), (1, 1), (1, 1)),
        dimension_numbers=("NCDHW", "OIDHW", "NCDHW"),
        precision=jax.lax.Precision.HIGHEST)
    return out + b.reshape(1, -1, 1, 1, 1)


def _ref_gn(x, g, b, groups=_GROUPS, eps=1e-5):
    N, C, D, H, W = x.shape
    xg = x.reshape(N, groups, C // groups, D, H, W)
    mu = jnp.mean(xg, axis=(2, 3, 4, 5), keepdims=True)
    var = jnp.mean((xg - mu) ** 2, axis=(2, 3, 4, 5), keepdims=True)
    xn = ((xg - mu) * jax.lax.rsqrt(var + eps)).reshape(N, C, D, H, W)
    return xn * g.reshape(1, -1, 1, 1, 1) + b.reshape(1, -1, 1, 1, 1)


def ref_basic_block(x, p, stride):
    s = int(stride)
    if "w_sc" in p:
        sc = jax.lax.conv_general_dilated(
            x, p["w_sc"][:, :, None, None, None], (s, s, s),
            ((0, 0), (0, 0), (0, 0)),
            dimension_numbers=("NCDHW", "OIDHW", "NCDHW"),
            precision=jax.lax.Precision.HIGHEST)
    else:
        sc = x
    out = _ref_conv3(x, p["w1_taps"], p["b1"], s)
    out = _leaky(_ref_gn(out, p["g1"], p["bb1"]))
    out = _ref_conv3(out, p["w2_taps"], p["b2"], 1)
    out = _ref_gn(out, p["g2"], p["bb2"]) + sc
    return _leaky(out)


# ----------------------------------- main ------------------------------------

if __name__ == "__main__":
    key = jax.random.PRNGKey(0)
    kx, k1, k2 = jax.random.split(key, 3)

    # Block 1: downsampling BasicBlock (stride=2, Cin != Cout -> conv shortcut)
    N, Cin, D, H, W = 2, 8, 8, 8, 8
    Cout = 16
    x = jax.random.normal(kx, (N, Cin, D, H, W), jnp.float32)
    p1 = init_basic_block_params(k1, Cin, Cout, stride=2)
    y1 = basic_block_forward(x, p1, stride=2)

    # Block 2: identity-shortcut BasicBlock (stride=1, Cin == Cout)
    p2 = init_basic_block_params(k2, Cout, Cout, stride=1)
    y2 = basic_block_forward(y1, p2, stride=1)

    y1, y2 = jax.block_until_ready((y1, y2))

    assert y1.shape == (N, Cout, 4, 4, 4), y1.shape
    assert y2.shape == (N, Cout, 4, 4, 4), y2.shape
    assert bool(jnp.all(jnp.isfinite(y1))) and bool(jnp.all(jnp.isfinite(y2)))

    # Per-block numerical check against a pure-JAX/XLA reference (bf16 MXU
    # operands with f32 accumulation -> loose tolerance).
    r1 = ref_basic_block(x, p1, 2)
    r2 = ref_basic_block(y1, p2, 1)
    err1 = float(jnp.max(jnp.abs(y1 - r1)))
    err2 = float(jnp.max(jnp.abs(y2 - r2)))
    assert err1 < 0.25 and err2 < 0.25, (err1, err2)

    print("KERNEL_OK")
</pallas_src>

<mosaic_0001>
module attributes {stable_mosaic.version = 11 : i64} {
  func.func @kernel(%arg0: i32, %arg1: memref<1x8x1118xbf16, #tpu.memory_space<vmem>>, %arg2: memref<16x216xbf16, #tpu.memory_space<vmem>>, %arg3: memref<16x1xf32, #tpu.memory_space<vmem>>, %arg4: memref<16x1xf32, #tpu.memory_space<vmem>>, %arg5: memref<16x1xf32, #tpu.memory_space<vmem>>, %arg6: memref<16x16xf32, #tpu.memory_space<vmem>>, %arg7: memref<1x896xf32, #tpu.memory_space<vmem>>, %arg8: memref<1x16x896xbf16, #tpu.memory_space<vmem>>, %arg9: memref<216x896xbf16, #tpu.memory_space<vmem>>) attributes {dimension_semantics = [#tpu.dimension_semantics<parallel>], iteration_bounds = array<i64: 2>, scalar_prefetch = 0 : i64, scratch_operands = 1 : i64, tpu.core_type = #tpu.core_type<tc>, window_params = [{transform_indices = @transform_0, window_bounds = array<i64: 1, 8, 1118>}, {pipeline_mode = #tpu.pipeline_mode<synchronous>, transform_indices = @transform_1, window_bounds = array<i64: 16, 216>}, {pipeline_mode = #tpu.pipeline_mode<synchronous>, transform_indices = @transform_2, window_bounds = array<i64: 16, 1>}, {pipeline_mode = #tpu.pipeline_mode<synchronous>, transform_indices = @transform_3, window_bounds = array<i64: 16, 1>}, {pipeline_mode = #tpu.pipeline_mode<synchronous>, transform_indices = @transform_4, window_bounds = array<i64: 16, 1>}, {pipeline_mode = #tpu.pipeline_mode<synchronous>, transform_indices = @transform_5, window_bounds = array<i64: 16, 16>}, {pipeline_mode = #tpu.pipeline_mode<synchronous>, transform_indices = @transform_6, window_bounds = array<i64: 1, 896>}, {transform_indices = @transform_7, window_bounds = array<i64: 1, 16, 896>}]} {
    %c0 = arith.constant 0 : index
    %c0_0 = arith.constant 0 : index
    %c0_1 = arith.constant 0 : index
    %0 = vector.load %arg1[%c0, %c0_0, %c0_1] : memref<1x8x1118xbf16, #tpu.memory_space<vmem>>, vector<1x8x896xbf16>
    %1 = vector.shape_cast %0 : vector<1x8x896xbf16> to vector<8x896xbf16>
    %c0_2 = arith.constant 0 : index
    %c0_3 = arith.constant 0 : index
    %2 = vector.load %arg9[%c0_2, %c0_3] : memref<216x896xbf16, #tpu.memory_space<vmem>>, vector<8x896xbf16>
    tpu.vector_store %arg9[%c0_2, %c0_3], %1 {strides = array<i32>} : memref<216x896xbf16, #tpu.memory_space<vmem>>, vector<8x896xbf16>,
    %c0_4 = arith.constant 0 : index
    %c0_5 = arith.constant 0 : index
    %c1 = arith.constant 1 : index
    %3 = vector.load %arg1[%c0_4, %c0_5, %c1] : memref<1x8x1118xbf16, #tpu.memory_space<vmem>>, vector<1x8x896xbf16>
    %4 = vector.shape_cast %3 : vector<1x8x896xbf16> to vector<8x896xbf16>
    %c8 = arith.constant 8 : index
    %c0_6 = arith.constant 0 : index
    %5 = vector.load %arg9[%c8, %c0_6] : memref<216x896xbf16, #tpu.memory_space<vmem>>, vector<8x896xbf16>
    tpu.vector_store %arg9[%c8, %c0_6], %4 {strides = array<i32>} : memref<216x896xbf16, #tpu.memory_space<vmem>>, vector<8x896xbf16>,
    %c0_7 = arith.constant 0 : index
    %c0_8 = arith.constant 0 : index
    %c2 = arith.constant 2 : index
    %6 = vector.load %arg1[%c0_7, %c0_8, %c2] : memref<1x8x1118xbf16, #tpu.memory_space<vmem>>, vector<1x8x896xbf16>
    %7 = vector.shape_cast %6 : vector<1x8x896xbf16> to vector<8x896xbf16>
    %c16 = arith.constant 16 : index
    %c0_9 = arith.constant 0 : index
    %8 = vector.load %arg9[%c16, %c0_9] : memref<216x896xbf16, #tpu.memory_space<vmem>>, vector<8x896xbf16>
    tpu.vector_store %arg9[%c16, %c0_9], %7 {strides = array<i32>} : memref<216x896xbf16, #tpu.memory_space<vmem>>, vector<8x896xbf16>,
    %c0_10 = arith.constant 0 : index
    %c0_11 = arith.constant 0 : index
    %c10 = arith.constant 10 : index
    %9 = vector.load %arg1[%c0_10, %c0_11, %c10] : memref<1x8x1118xbf16, #tpu.memory_space<vmem>>, vector<1x8x896xbf16>
    %10 = vector.shape_cast %9 : vector<1x8x896xbf16> to vector<8x896xbf16>
    %c24 = arith.constant 24 : index
    %c0_12 = arith.constant 0 : index
    %11 = vector.load %arg9[%c24, %c0_12] : memref<216x896xbf16, #tpu.memory_space<vmem>>, vector<8x896xbf16>
    tpu.vector_store %arg9[%c24, %c0_12], %10 {strides = array<i32>} : memref<216x896xbf16, #tpu.memory_space<vmem>>, vector<8x896xbf16>,
    %c0_13 = arith.constant 0 : index
    %c0_14 = arith.constant 0 : index
    %c11 = arith.constant 11 : index
    %12 = vector.load %arg1[%c0_13, %c0_14, %c11] : memref<1x8x1118xbf16, #tpu.memory_space<vmem>>, vector<1x8x896xbf16>
    %13 = vector.shape_cast %12 : vector<1x8x896xbf16> to vector<8x896xbf16>
    %c32 = arith.constant 32 : index
    %c0_15 = arith.constant 0 : index
    %14 = vector.load %arg9[%c32, %c0_15] : memref<216x896xbf16, #tpu.memory_space<vmem>>, vector<8x896xbf16>
    tpu.vector_store %arg9[%c32, %c0_15], %13 {strides = array<i32>} : memref<216x896xbf16, #tpu.memory_space<vmem>>, vector<8x896xbf16>,
    %c0_16 = arith.constant 0 : index
    %c0_17 = arith.constant 0 : index
    %c12 = arith.constant 12 : index
    %15 = vector.load %arg1[%c0_16, %c0_17, %c12] : memref<1x8x1118xbf16, #tpu.memory_space<vmem>>, vector<1x8x896xbf16>
    %16 = vector.shape_cast %15 : vector<1x8x896xbf16> to vector<8x896xbf16>
    %c40 = arith.constant 40 : index
    %c0_18 = arith.constant 0 : index
    %17 = vector.load %arg9[%c40, %c0_18] : memref<216x896xbf16, #tpu.memory_space<vmem>>, vector<8x896xbf16>
    tpu.vector_store %arg9[%c40, %c0_18], %16 {strides = array<i32>} : memref<216x896xbf16, #tpu.memory_space<vmem>>, vector<8x896xbf16>,
    %c0_19 = arith.constant 0 : index
    %c0_20 = arith.constant 0 : index
    %c20 = arith.constant 20 : index
    %18 = vector.load %arg1[%c0_19, %c0_20, %c20] : memref<1x8x1118xbf16, #tpu.memory_space<vmem>>, vector<1x8x896xbf16>
    %19 = vector.shape_cast %18 : vector<1x8x896xbf16> to vector<8x896xbf16>
    %c48 = arith.constant 48 : index
    %c0_21 = arith.constant 0 : index
    %20 = vector.load %arg9[%c48, %c0_21] : memref<216x896xbf16, #tpu.memory_space<vmem>>, vector<8x896xbf16>
    tpu.vector_store %arg9[%c48, %c0_21], %19 {strides = array<i32>} : memref<216x896xbf16, #tpu.memory_space<vmem>>, vector<8x896xbf16>,
    %c0_22 = arith.constant 0 : index
    %c0_23 = arith.constant 0 : index
    %c21 = arith.constant 21 : index
    %21 = vector.load %arg1[%c0_22, %c0_23, %c21] : memref<1x8x1118xbf16, #tpu.memory_space<vmem>>, vector<1x8x896xbf16>
    %22 = vector.shape_cast %21 : vector<1x8x896xbf16> to vector<8x896xbf16>
    %c56 = arith.constant 56 : index
    %c0_24 = arith.constant 0 : index
    %23 = vector.load %arg9[%c56, %c0_24] : memref<216x896xbf16, #tpu.memory_space<vmem>>, vector<8x896xbf16>
    tpu.vector_store %arg9[%c56, %c0_24], %22 {strides = array<i32>} : memref<216x896xbf16, #tpu.memory_space<vmem>>, vector<8x896xbf16>,
    %c0_25 = arith.constant 0 : index
    %c0_26 = arith.constant 0 : index
    %c22 = arith.constant 22 : index
    %24 = vector.load %arg1[%c0_25, %c0_26, %c22] : memref<1x8x1118xbf16, #tpu.memory_space<vmem>>, vector<1x8x896xbf16>
    %25 = vector.shape_cast %24 : vector<1x8x896xbf16> to vector<8x896xbf16>
    %c64 = arith.constant 64 : index
    %c0_27 = arith.constant 0 : index
    %26 = vector.load %arg9[%c64, %c0_27] : memref<216x896xbf16, #tpu.memory_space<vmem>>, vector<8x896xbf16>
    tpu.vector_store %arg9[%c64, %c0_27], %25 {strides = array<i32>} : memref<216x896xbf16, #tpu.memory_space<vmem>>, vector<8x896xbf16>,
    %c0_28 = arith.constant 0 : index
    %c0_29 = arith.constant 0 : index
    %c100 = arith.constant 100 : index
    %27 = vector.load %arg1[%c0_28, %c0_29, %c100] : memref<1x8x1118xbf16, #tpu.memory_space<vmem>>, vector<1x8x896xbf16>
    %28 = vector.shape_cast %27 : vector<1x8x896xbf16> to vector<8x896xbf16>
    %c72 = arith.constant 72 : index
    %c0_30 = arith.constant 0 : index
    %29 = vector.load %arg9[%c72, %c0_30] : memref<216x896xbf16, #tpu.memory_space<vmem>>, vector<8x896xbf16>
    tpu.vector_store %arg9[%c72, %c0_30], %28 {strides = array<i32>} : memref<216x896xbf16, #tpu.memory_space<vmem>>, vector<8x896xbf16>,
    %c0_31 = arith.constant 0 : index
    %c0_32 = arith.constant 0 : index
    %c101 = arith.constant 101 : index
    %30 = vector.load %arg1[%c0_31, %c0_32, %c101] : memref<1x8x1118xbf16, #tpu.memory_space<vmem>>, vector<1x8x896xbf16>
    %31 = vector.shape_cast %30 : vector<1x8x896xbf16> to vector<8x896xbf16>
    %c80 = arith.constant 80 : index
    %c0_33 = arith.constant 0 : index
    %32 = vector.load %arg9[%c80, %c0_33] : memref<216x896xbf16, #tpu.memory_space<vmem>>, vector<8x896xbf16>
    tpu.vector_store %arg9[%c80, %c0_33], %31 {strides = array<i32>} : memref<216x896xbf16, #tpu.memory_space<vmem>>, vector<8x896xbf16>,
    %c0_34 = arith.constant 0 : index
    %c0_35 = arith.constant 0 : index
    %c102 = arith.constant 102 : index
    %33 = vector.load %arg1[%c0_34, %c0_35, %c102] : memref<1x8x1118xbf16, #tpu.memory_space<vmem>>, vector<1x8x896xbf16>
    %34 = vector.shape_cast %33 : vector<1x8x896xbf16> to vector<8x896xbf16>
    %c88 = arith.constant 88 : index
    %c0_36 = arith.constant 0 : index
    %35 = vector.load %arg9[%c88, %c0_36] : memref<216x896xbf16, #tpu.memory_space<vmem>>, vector<8x896xbf16>
    tpu.vector_store %arg9[%c88, %c0_36], %34 {strides = array<i32>} : memref<216x896xbf16, #tpu.memory_space<vmem>>, vector<8x896xbf16>,
    %c0_37 = arith.constant 0 : index
    %c0_38 = arith.constant 0 : index
    %c110 = arith.constant 110 : index
    %36 = vector.load %arg1[%c0_37, %c0_38, %c110] : memref<1x8x1118xbf16, #tpu.memory_space<vmem>>, vector<1x8x896xbf16>
    %37 = vector.shape_cast %36 : vector<1x8x896xbf16> to vector<8x896xbf16>
    %c96 = arith.constant 96 : index
    %c0_39 = arith.constant 0 : index
    %38 = vector.load %arg9[%c96, %c0_39] : memref<216x896xbf16, #tpu.memory_space<vmem>>, vector<8x896xbf16>
    tpu.vector_store %arg9[%c96, %c0_39], %37 {strides = array<i32>} : memref<216x896xbf16, #tpu.memory_space<vmem>>, vector<8x896xbf16>,
    %c0_40 = arith.constant 0 : index
    %c0_41 = arith.constant 0 : index
    %c111 = arith.constant 111 : index
    %39 = vector.load %arg1[%c0_40, %c0_41, %c111] : memref<1x8x1118xbf16, #tpu.memory_space<vmem>>, vector<1x8x896xbf16>
    %40 = vector.shape_cast %39 : vector<1x8x896xbf16> to vector<8x896xbf16>
    %c104 = arith.constant 104 : index
    %c0_42 = arith.constant 0 : index
    %41 = vector.load %arg9[%c104, %c0_42] : memref<216x896xbf16, #tpu.memory_space<vmem>>, vector<8x896xbf16>
    tpu.vector_store %arg9[%c104, %c0_42], %40 {strides = array<i32>} : memref<216x896xbf16, #tpu.memory_space<vmem>>, vector<8x896xbf16>,
    %c0_43 = arith.constant 0 : index
    %c0_44 = arith.constant 0 : index
    %c112 = arith.constant 112 : index
    %42 = vector.load %arg1[%c0_43, %c0_44, %c112] : memref<1x8x1118xbf16, #tpu.memory_space<vmem>>, vector<1x8x896xbf16>
    %43 = vector.shape_cast %42 : vector<1x8x896xbf16> to vector<8x896xbf16>
    %c112_45 = arith.constant 112 : index
    %c0_46 = arith.constant 0 : index
    %44 = vector.load %arg9[%c112_45, %c0_46] : memref<216x896xbf16, #tpu.memory_space<vmem>>, vector<8x896xbf16>
    tpu.vector_store %arg9[%c112_45, %c0_46], %43 {strides = array<i32>} : memref<216x896xbf16, #tpu.memory_space<vmem>>, vector<8x896xbf16>,
    %c0_47 = arith.constant 0 : index
    %c0_48 = arith.constant 0 : index
    %c120 = arith.constant 120 : index
    %45 = vector.load %arg1[%c0_47, %c0_48, %c120] : memref<1x8x1118xbf16, #tpu.memory_space<vmem>>, vector<1x8x896xbf16>
    %46 = vector.shape_cast %45 : vector<1x8x896xbf16> to vector<8x896xbf16>
    %c120_49 = arith.constant 120 : index
    %c0_50 = arith.constant 0 : index
    %47 = vector.load %arg9[%c120_49, %c0_50] : memref<216x896xbf16, #tpu.memory_space<vmem>>, vector<8x896xbf16>
    tpu.vector_store %arg9[%c120_49, %c0_50], %46 {strides = array<i32>} : memref<216x896xbf16, #tpu.memory_space<vmem>>, vector<8x896xbf16>,
    %c0_51 = arith.constant 0 : index
    %c0_52 = arith.constant 0 : index
    %c121 = arith.constant 121 : index
    %48 = vector.load %arg1[%c0_51, %c0_52, %c121] : memref<1x8x1118xbf16, #tpu.memory_space<vmem>>, vector<1x8x896xbf16>
    %49 = vector.shape_cast %48 : vector<1x8x896xbf16> to vector<8x896xbf16>
    %c128 = arith.constant 128 : index
    %c0_53 = arith.constant 0 : index
    %50 = vector.load %arg9[%c128, %c0_53] : memref<216x896xbf16, #tpu.memory_space<vmem>>, vector<8x896xbf16>
    tpu.vector_store %arg9[%c128, %c0_53], %49 {strides = array<i32>} : memref<216x896xbf16, #tpu.memory_space<vmem>>, vector<8x896xbf16>,
    %c0_54 = arith.constant 0 : index
    %c0_55 = arith.constant 0 : index
    %c122 = arith.constant 122 : index
    %51 = vector.load %arg1[%c0_54, %c0_55, %c122] : memref<1x8x1118xbf16, #tpu.memory_space<vmem>>, vector<1x8x896xbf16>
    %52 = vector.shape_cast %51 : vector<1x8x896xbf16> to vector<8x896xbf16>
    %c136 = arith.constant 136 : index
    %c0_56 = arith.constant 0 : index
    %53 = vector.load %arg9[%c136, %c0_56] : memref<216x896xbf16, #tpu.memory_space<vmem>>, vector<8x896xbf16>
    tpu.vector_store %arg9[%c136, %c0_56], %52 {strides = array<i32>} : memref<216x896xbf16, #tpu.memory_space<vmem>>, vector<8x896xbf16>,
    %c0_57 = arith.constant 0 : index
    %c0_58 = arith.constant 0 : index
    %c200 = arith.constant 200 : index
    %54 = vector.load %arg1[%c0_57, %c0_58, %c200] : memref<1x8x1118xbf16, #tpu.memory_space<vmem>>, vector<1x8x896xbf16>
    %55 = vector.shape_cast %54 : vector<1x8x896xbf16> to vector<8x896xbf16>
    %c144 = arith.constant 144 : index
    %c0_59 = arith.constant 0 : index
    %56 = vector.load %arg9[%c144, %c0_59] : memref<216x896xbf16, #tpu.memory_space<vmem>>, vector<8x896xbf16>
    tpu.vector_store %arg9[%c144, %c0_59], %55 {strides = array<i32>} : memref<216x896xbf16, #tpu.memory_space<vmem>>, vector<8x896xbf16>,
    %c0_60 = arith.constant 0 : index
    %c0_61 = arith.constant 0 : index
    %c201 = arith.constant 201 : index
    %57 = vector.load %arg1[%c0_60, %c0_61, %c201] : memref<1x8x1118xbf16, #tpu.memory_space<vmem>>, vector<1x8x896xbf16>
    %58 = vector.shape_cast %57 : vector<1x8x896xbf16> to vector<8x896xbf16>
    %c152 = arith.constant 152 : index
    %c0_62 = arith.constant 0 : index
    %59 = vector.load %arg9[%c152, %c0_62] : memref<216x896xbf16, #tpu.memory_space<vmem>>, vector<8x896xbf16>
    tpu.vector_store %arg9[%c152, %c0_62], %58 {strides = array<i32>} : memref<216x896xbf16, #tpu.memory_space<vmem>>, vector<8x896xbf16>,
    %c0_63 = arith.constant 0 : index
    %c0_64 = arith.constant 0 : index
    %c202 = arith.constant 202 : index
    %60 = vector.load %arg1[%c0_63, %c0_64, %c202] : memref<1x8x1118xbf16, #tpu.memory_space<vmem>>, vector<1x8x896xbf16>
    %61 = vector.shape_cast %60 : vector<1x8x896xbf16> to vector<8x896xbf16>
    %c160 = arith.constant 160 : index
    %c0_65 = arith.constant 0 : index
    %62 = vector.load %arg9[%c160, %c0_65] : memref<216x896xbf16, #tpu.memory_space<vmem>>, vector<8x896xbf16>
    tpu.vector_store %arg9[%c160, %c0_65], %61 {strides = array<i32>} : memref<216x896xbf16, #tpu.memory_space<vmem>>, vector<8x896xbf16>,
    %c0_66 = arith.constant 0 : index
    %c0_67 = arith.constant 0 : index
    %c210 = arith.constant 210 : index
    %63 = vector.load %arg1[%c0_66, %c0_67, %c210] : memref<1x8x1118xbf16, #tpu.memory_space<vmem>>, vector<1x8x896xbf16>
    %64 = vector.shape_cast %63 : vector<1x8x896xbf16> to vector<8x896xbf16>
    %c168 = arith.constant 168 : index
    %c0_68 = arith.constant 0 : index
    %65 = vector.load %arg9[%c168, %c0_68] : memref<216x896xbf16, #tpu.memory_space<vmem>>, vector<8x896xbf16>
    tpu.vector_store %arg9[%c168, %c0_68], %64 {strides = array<i32>} : memref<216x896xbf16, #tpu.memory_space<vmem>>, vector<8x896xbf16>,
    %c0_69 = arith.constant 0 : index
    %c0_70 = arith.constant 0 : index
    %c211 = arith.constant 211 : index
    %66 = vector.load %arg1[%c0_69, %c0_70, %c211] : memref<1x8x1118xbf16, #tpu.memory_space<vmem>>, vector<1x8x896xbf16>
    %67 = vector.shape_cast %66 : vector<1x8x896xbf16> to vector<8x896xbf16>
    %c176 = arith.constant 176 : index
    %c0_71 = arith.constant 0 : index
    %68 = vector.load %arg9[%c176, %c0_71] : memref<216x896xbf16, #tpu.memory_space<vmem>>, vector<8x896xbf16>
    tpu.vector_store %arg9[%c176, %c0_71], %67 {strides = array<i32>} : memref<216x896xbf16, #tpu.memory_space<vmem>>, vector<8x896xbf16>,
    %c0_72 = arith.constant 0 : index
    %c0_73 = arith.constant 0 : index
    %c212 = arith.constant 212 : index
    %69 = vector.load %arg1[%c0_72, %c0_73, %c212] : memref<1x8x1118xbf16, #tpu.memory_space<vmem>>, vector<1x8x896xbf16>
    %70 = vector.shape_cast %69 : vector<1x8x896xbf16> to vector<8x896xbf16>
    %c184 = arith.constant 184 : index
    %c0_74 = arith.constant 0 : index
    %71 = vector.load %arg9[%c184, %c0_74] : memref<216x896xbf16, #tpu.memory_space<vmem>>, vector<8x896xbf16>
    tpu.vector_store %arg9[%c184, %c0_74], %70 {strides = array<i32>} : memref<216x896xbf16, #tpu.memory_space<vmem>>, vector<8x896xbf16>,
    %c0_75 = arith.constant 0 : index
    %c0_76 = arith.constant 0 : index
    %c220 = arith.constant 220 : index
    %72 = vector.load %arg1[%c0_75, %c0_76, %c220] : memref<1x8x1118xbf16, #tpu.memory_space<vmem>>, vector<1x8x896xbf16>
    %73 = vector.shape_cast %72 : vector<1x8x896xbf16> to vector<8x896xbf16>
    %c192 = arith.constant 192 : index
    %c0_77 = arith.constant 0 : index
    %74 = vector.load %arg9[%c192, %c0_77] : memref<216x896xbf16, #tpu.memory_space<vmem>>, vector<8x896xbf16>
    tpu.vector_store %arg9[%c192, %c0_77], %73 {strides = array<i32>} : memref<216x896xbf16, #tpu.memory_space<vmem>>, vector<8x896xbf16>,
    %c0_78 = arith.constant 0 : index
    %c0_79 = arith.constant 0 : index
    %c221 = arith.constant 221 : index
    %75 = vector.load %arg1[%c0_78, %c0_79, %c221] : memref<1x8x1118xbf16, #tpu.memory_space<vmem>>, vector<1x8x896xbf16>
    %76 = vector.shape_cast %75 : vector<1x8x896xbf16> to vector<8x896xbf16>
    %c200_80 = arith.constant 200 : index
    %c0_81 = arith.constant 0 : index
    %77 = vector.load %arg9[%c200_80, %c0_81] : memref<216x896xbf16, #tpu.memory_space<vmem>>, vector<8x896xbf16>
    tpu.vector_store %arg9[%c200_80, %c0_81], %76 {strides = array<i32>} : memref<216x896xbf16, #tpu.memory_space<vmem>>, vector<8x896xbf16>,
    %c0_82 = arith.constant 0 : index
    %c0_83 = arith.constant 0 : index
    %c222 = arith.constant 222 : index
    %78 = vector.load %arg1[%c0_82, %c0_83, %c222] : memref<1x8x1118xbf16, #tpu.memory_space<vmem>>, vector<1x8x896xbf16>
    %79 = vector.shape_cast %78 : vector<1x8x896xbf16> to vector<8x896xbf16>
    %c208 = arith.constant 208 : index
    %c0_84 = arith.constant 0 : index
    %80 = vector.load %arg9[%c208, %c0_84] : memref<216x896xbf16, #tpu.memory_space<vmem>>, vector<8x896xbf16>
    tpu.vector_store %arg9[%c208, %c0_84], %79 {strides = array<i32>} : memref<216x896xbf16, #tpu.memory_space<vmem>>, vector<8x896xbf16>,
    %c0_85 = arith.constant 0 : index
    %c0_86 = arith.constant 0 : index
    %81 = vector.load %arg2[%c0_85, %c0_86] : memref<16x216xbf16, #tpu.memory_space<vmem>>, vector<16x216xbf16>
    %c0_87 = arith.constant 0 : index
    %c0_88 = arith.constant 0 : index
    %82 = vector.load %arg9[%c0_87, %c0_88] : memref<216x896xbf16, #tpu.memory_space<vmem>>, vector<216x896xbf16>
    %cst = arith.constant dense<0.000000e+00> : vector<16x896xf32>
    %83 = tpu.matmul %81, %82, %cst {dimension_numbers = #tpu.dot_dimension_numbers<[1], [0], [0], [1], [0, 0, 1, 1], [], []>} : vector<16x216xbf16>, vector<216x896xbf16>, vector<16x896xf32> -> vector<16x896xf32>
    %c0_89 = arith.constant 0 : index
    %c0_90 = arith.constant 0 : index
    %84 = vector.load %arg3[%c0_89, %c0_90] : memref<16x1xf32, #tpu.memory_space<vmem>>, vector<16x1xf32>
    %85 = vector.broadcast %84 : vector<16x1xf32> to vector<16x896xf32>
    %86 = arith.addf %83, %85 : vector<16x896xf32>
    %c0_91 = arith.constant 0 : index
    %c0_92 = arith.constant 0 : index
    %87 = vector.load %arg7[%c0_91, %c0_92] : memref<1x896xf32, #tpu.memory_space<vmem>>, vector<1x896xf32>
    %88 = vector.broadcast %87 : vector<1x896xf32> to vector<16x896xf32>
    %89 = arith.mulf %86, %88 : vector<16x896xf32>
    %cst_93 = arith.constant dense<0.000000e+00> : vector<16xf32>
    %90 = vector.multi_reduction <add>, %89, %cst_93 [1] : vector<16x896xf32> to vector<16xf32>
    %91 = vector.shape_cast %90 : vector<16xf32> to vector<16x1xf32>
    %92 = arith.mulf %89, %86 : vector<16x896xf32>
    %cst_94 = arith.constant dense<0.000000e+00> : vector<16xf32>
    %93 = vector.multi_reduction <add>, %92, %cst_94 [1] : vector<16x896xf32> to vector<16xf32>
    %94 = vector.shape_cast %93 : vector<16xf32> to vector<16x1xf32>
    %c0_95 = arith.constant 0 : index
    %c0_96 = arith.constant 0 : index
    %95 = vector.load %arg6[%c0_95, %c0_96] : memref<16x16xf32, #tpu.memory_space<vmem>>, vector<16x16xf32>
    %cst_97 = arith.constant dense<0.000000e+00> : vector<16x1xf32>
    %96 = tpu.matmul %95, %91, %cst_97 {dimension_numbers = #tpu.dot_dimension_numbers<[1], [0], [0], [1], [0, 0, 1, 1], [], []>} : vector<16x16xf32>, vector<16x1xf32>, vector<16x1xf32> -> vector<16x1xf32>
    %c0_98 = arith.constant 0 : index
    %c0_99 = arith.constant 0 : index
    %97 = vector.load %arg6[%c0_98, %c0_99] : memref<16x16xf32, #tpu.memory_space<vmem>>, vector<16x16xf32>
    %cst_100 = arith.constant dense<0.000000e+00> : vector<16x1xf32>
    %98 = tpu.matmul %97, %94, %cst_100 {dimension_numbers = #tpu.dot_dimension_numbers<[1], [0], [0], [1], [0, 0, 1, 1], [], []>} : vector<16x16xf32>, vector<16x1xf32>, vector<16x1xf32> -> vector<16x1xf32>
    %cst_101 = arith.constant 7.812500e-03 : f32
    %99 = vector.broadcast %cst_101 : f32 to vector<16x1xf32>
    %100 = arith.mulf %96, %99 : vector<16x1xf32>
    %cst_102 = arith.constant 7.812500e-03 : f32
    %101 = vector.broadcast %cst_102 : f32 to vector<16x1xf32>
    %102 = arith.mulf %98, %101 : vector<16x1xf32>
    %103 = arith.mulf %100, %100 : vector<16x1xf32>
    %104 = arith.subf %102, %103 : vector<16x1xf32>
    %cst_103 = arith.constant 9.99999974E-6 : f32
    %105 = vector.broadcast %cst_103 : f32 to vector<16x1xf32>
    %106 = arith.addf %104, %105 : vector<16x1xf32>
    %107 = math.rsqrt %106 : vector<16x1xf32>
    %108 = vector.broadcast %100 : vector<16x1xf32> to vector<16x896xf32>
    %109 = arith.subf %86, %108 : vector<16x896xf32>
    %c0_104 = arith.constant 0 : index
    %c0_105 = arith.constant 0 : index
    %110 = vector.load %arg4[%c0_104, %c0_105] : memref<16x1xf32, #tpu.memory_space<vmem>>, vector<16x1xf32>
    %111 = arith.mulf %107, %110 : vector<16x1xf32>
    %112 = vector.broadcast %111 : vector<16x1xf32> to vector<16x896xf32>
    %113 = arith.mulf %109, %112 : vector<16x896xf32>
    %c0_106 = arith.constant 0 : index
    %c0_107 = arith.constant 0 : index
    %114 = vector.load %arg5[%c0_106, %c0_107] : memref<16x1xf32, #tpu.memory_space<vmem>>, vector<16x1xf32>
    %115 = vector.broadcast %114 : vector<16x1xf32> to vector<16x896xf32>
    %116 = arith.addf %113, %115 : vector<16x896xf32>
    %cst_108 = arith.constant 0.000000e+00 : f32
    %117 = vector.broadcast %cst_108 : f32 to vector<16x896xf32>
    %118 = arith.cmpf oge, %116, %117 : vector<16x896xf32>
    %cst_109 = arith.constant 0.00999999977 : f32
    %119 = vector.broadcast %cst_109 : f32 to vector<16x896xf32>
    %120 = arith.mulf %119, %116 : vector<16x896xf32>
    %121 = arith.select %118, %116, %120 : vector<16x896xi1>, vector<16x896xf32>
    %122 = arith.truncf %121 : vector<16x896xf32> to vector<16x896xbf16>
    %c0_110 = arith.constant 0 : index
    %c0_111 = arith.constant 0 : index
    %c0_112 = arith.constant 0 : index
    %123 = vector.load %arg8[%c0_110, %c0_111, %c0_112] : memref<1x16x896xbf16, #tpu.memory_space<vmem>>, vector<1x16x896xbf16>
    %124 = vector.shape_cast %123 : vector<1x16x896xbf16> to vector<16x896xbf16>
    %125 = vector.shape_cast %122 : vector<16x896xbf16> to vector<1x16x896xbf16>
    tpu.vector_store %arg8[%c0_110, %c0_111, %c0_112], %125 {strides = array<i32>} : memref<1x16x896xbf16, #tpu.memory_space<vmem>>, vector<1x16x896xbf16>,
    return
  }
  func.func @transform_0(%arg0: i32) -> (i32, i32, i32) {
    %c0_i32 = arith.constant 0 : i32
    %c0_i32_0 = arith.constant 0 : i32
    %c0_i32_1 = arith.constant 0 : i32
    return %arg0, %c0_i32, %c0_i32_0 : i32, i32, i32
  }
  func.func @transform_1(%arg0: i32) -> (i32, i32) {
    %c0_i32 = arith.constant 0 : i32
    %c0_i32_0 = arith.constant 0 : i32
    %c0_i32_1 = arith.constant 0 : i32
    return %c0_i32, %c0_i32_0 : i32, i32
  }
  func.func @transform_2(%arg0: i32) -> (i32, i32) {
    %c0_i32 = arith.constant 0 : i32
    %c0_i32_0 = arith.constant 0 : i32
    %c0_i32_1 = arith.constant 0 : i32
    return %c0_i32, %c0_i32_0 : i32, i32
  }
  func.func @transform_3(%arg0: i32) -> (i32, i32) {
    %c0_i32 = arith.constant 0 : i32
    %c0_i32_0 = arith.constant 0 : i32
    %c0_i32_1 = arith.constant 0 : i32
    return %c0_i32, %c0_i32_0 : i32, i32
  }
  func.func @transform_4(%arg0: i32) -> (i32, i32) {
    %c0_i32 = arith.constant 0 : i32
    %c0_i32_0 = arith.constant 0 : i32
    %c0_i32_1 = arith.constant 0 : i32
    return %c0_i32, %c0_i32_0 : i32, i32
  }
  func.func @transform_5(%arg0: i32) -> (i32, i32) {
    %c0_i32 = arith.constant 0 : i32
    %c0_i32_0 = arith.constant 0 : i32
    %c0_i32_1 = arith.constant 0 : i32
    return %c0_i32, %c0_i32_0 : i32, i32
  }
  func.func @transform_6(%arg0: i32) -> (i32, i32) {
    %c0_i32 = arith.constant 0 : i32
    %c0_i32_0 = arith.constant 0 : i32
    %c0_i32_1 = arith.constant 0 : i32
    return %c0_i32, %c0_i32_0 : i32, i32
  }
  func.func @transform_7(%arg0: i32) -> (i32, i32, i32) {
    %c0_i32 = arith.constant 0 : i32
    %c0_i32_0 = arith.constant 0 : i32
    %c0_i32_1 = arith.constant 0 : i32
    return %arg0, %c0_i32, %c0_i32_0 : i32, i32, i32
  }
}

module attributes {stable_mosaic.version = 11 : i64} {
  func.func @kernel(%arg0: i32, %arg1: memref<1x16x342xbf16, #tpu.memory_space<vmem>>, %arg2: memref<16x432xbf16, #tpu.memory_space<vmem>>, %arg3: memref<16x1xf32, #tpu.memory_space<vmem>>, %arg4: memref<16x1xf32, #tpu.memory_space<vmem>>, %arg5: memref<16x1xf32, #tpu.memory_space<vmem>>, %arg6: memref<16x16xf32, #tpu.memory_space<vmem>>, %arg7: memref<1x256xf32, #tpu.memory_space<vmem>>, %arg8: memref<1x8x256xbf16, #tpu.memory_space<vmem>>, %arg9: memref<16x8xbf16, #tpu.memory_space<vmem>>, %arg10: memref<1x16x256xf32, #tpu.memory_space<vmem>>, %arg11: memref<432x256xbf16, #tpu.memory_space<vmem>>) attributes {dimension_semantics = [#tpu.dimension_semantics<parallel>], iteration_bounds = array<i64: 2>, scalar_prefetch = 0 : i64, scratch_operands = 1 : i64, tpu.core_type = #tpu.core_type<tc>, window_params = [{transform_indices = @transform_0, window_bounds = array<i64: 1, 16, 342>}, {pipeline_mode = #tpu.pipeline_mode<synchronous>, transform_indices = @transform_1, window_bounds = array<i64: 16, 432>}, {pipeline_mode = #tpu.pipeline_mode<synchronous>, transform_indices = @transform_2, window_bounds = array<i64: 16, 1>}, {pipeline_mode = #tpu.pipeline_mode<synchronous>, transform_indices = @transform_3, window_bounds = array<i64: 16, 1>}, {pipeline_mode = #tpu.pipeline_mode<synchronous>, transform_indices = @transform_4, window_bounds = array<i64: 16, 1>}, {pipeline_mode = #tpu.pipeline_mode<synchronous>, transform_indices = @transform_5, window_bounds = array<i64: 16, 16>}, {pipeline_mode = #tpu.pipeline_mode<synchronous>, transform_indices = @transform_6, window_bounds = array<i64: 1, 256>}, {transform_indices = @transform_7, window_bounds = array<i64: 1, 8, 256>}, {pipeline_mode = #tpu.pipeline_mode<synchronous>, transform_indices = @transform_8, window_bounds = array<i64: 16, 8>}, {transform_indices = @transform_9, window_bounds = array<i64: 1, 16, 256>}]} {
    %c0 = arith.constant 0 : index
    %c0_0 = arith.constant 0 : index
    %c0_1 = arith.constant 0 : index
    %0 = vector.load %arg1[%c0, %c0_0, %c0_1] : memref<1x16x342xbf16, #tpu.memory_space<vmem>>, vector<1x16x256xbf16>
    %1 = vector.shape_cast %0 : vector<1x16x256xbf16> to vector<16x256xbf16>
    %c0_2 = arith.constant 0 : index
    %c0_3 = arith.constant 0 : index
    %2 = vector.load %arg11[%c0_2, %c0_3] : memref<432x256xbf16, #tpu.memory_space<vmem>>, vector<16x256xbf16>
    tpu.vector_store %arg11[%c0_2, %c0_3], %1 {strides = array<i32>} : memref<432x256xbf16, #tpu.memory_space<vmem>>, vector<16x256xbf16>,
    %c0_4 = arith.constant 0 : index
    %c0_5 = arith.constant 0 : index
    %c1 = arith.constant 1 : index
    %3 = vector.load %arg1[%c0_4, %c0_5, %c1] : memref<1x16x342xbf16, #tpu.memory_space<vmem>>, vector<1x16x256xbf16>
    %4 = vector.shape_cast %3 : vector<1x16x256xbf16> to vector<16x256xbf16>
    %c16 = arith.constant 16 : index
    %c0_6 = arith.constant 0 : index
    %5 = vector.load %arg11[%c16, %c0_6] : memref<432x256xbf16, #tpu.memory_space<vmem>>, vector<16x256xbf16>
    tpu.vector_store %arg11[%c16, %c0_6], %4 {strides = array<i32>} : memref<432x256xbf16, #tpu.memory_space<vmem>>, vector<16x256xbf16>,
    %c0_7 = arith.constant 0 : index
    %c0_8 = arith.constant 0 : index
    %c2 = arith.constant 2 : index
    %6 = vector.load %arg1[%c0_7, %c0_8, %c2] : memref<1x16x342xbf16, #tpu.memory_space<vmem>>, vector<1x16x256xbf16>
    %7 = vector.shape_cast %6 : vector<1x16x256xbf16> to vector<16x256xbf16>
    %c32 = arith.constant 32 : index
    %c0_9 = arith.constant 0 : index
    %8 = vector.load %arg11[%c32, %c0_9] : memref<432x256xbf16, #tpu.memory_space<vmem>>, vector<16x256xbf16>
    tpu.vector_store %arg11[%c32, %c0_9], %7 {strides = array<i32>} : memref<432x256xbf16, #tpu.memory_space<vmem>>, vector<16x256xbf16>,
    %c0_10 = arith.constant 0 : index
    %c0_11 = arith.constant 0 : index
    %c6 = arith.constant 6 : index
    %9 = vector.load %arg1[%c0_10, %c0_11, %c6] : memref<1x16x342xbf16, #tpu.memory_space<vmem>>, vector<1x16x256xbf16>
    %10 = vector.shape_cast %9 : vector<1x16x256xbf16> to vector<16x256xbf16>
    %c48 = arith.constant 48 : index
    %c0_12 = arith.constant 0 : index
    %11 = vector.load %arg11[%c48, %c0_12] : memref<432x256xbf16, #tpu.memory_space<vmem>>, vector<16x256xbf16>
    tpu.vector_store %arg11[%c48, %c0_12], %10 {strides = array<i32>} : memref<432x256xbf16, #tpu.memory_space<vmem>>, vector<16x256xbf16>,
    %c0_13 = arith.constant 0 : index
    %c0_14 = arith.constant 0 : index
    %c7 = arith.constant 7 : index
    %12 = vector.load %arg1[%c0_13, %c0_14, %c7] : memref<1x16x342xbf16, #tpu.memory_space<vmem>>, vector<1x16x256xbf16>
    %13 = vector.shape_cast %12 : vector<1x16x256xbf16> to vector<16x256xbf16>
    %c64 = arith.constant 64 : index
    %c0_15 = arith.constant 0 : index
    %14 = vector.load %arg11[%c64, %c0_15] : memref<432x256xbf16, #tpu.memory_space<vmem>>, vector<16x256xbf16>
    tpu.vector_store %arg11[%c64, %c0_15], %13 {strides = array<i32>} : memref<432x256xbf16, #tpu.memory_space<vmem>>, vector<16x256xbf16>,
    %c0_16 = arith.constant 0 : index
    %c0_17 = arith.constant 0 : index
    %c8 = arith.constant 8 : index
    %15 = vector.load %arg1[%c0_16, %c0_17, %c8] : memref<1x16x342xbf16, #tpu.memory_space<vmem>>, vector<1x16x256xbf16>
    %16 = vector.shape_cast %15 : vector<1x16x256xbf16> to vector<16x256xbf16>
    %c80 = arith.constant 80 : index
    %c0_18 = arith.constant 0 : index
    %17 = vector.load %arg11[%c80, %c0_18] : memref<432x256xbf16, #tpu.memory_space<vmem>>, vector<16x256xbf16>
    tpu.vector_store %arg11[%c80, %c0_18], %16 {strides = array<i32>} : memref<432x256xbf16, #tpu.memory_space<vmem>>, vector<16x256xbf16>,
    %c0_19 = arith.constant 0 : index
    %c0_20 = arith.constant 0 : index
    %c12 = arith.constant 12 : index
    %18 = vector.load %arg1[%c0_19, %c0_20, %c12] : memref<1x16x342xbf16, #tpu.memory_space<vmem>>, vector<1x16x256xbf16>
    %19 = vector.shape_cast %18 : vector<1x16x256xbf16> to vector<16x256xbf16>
    %c96 = arith.constant 96 : index
    %c0_21 = arith.constant 0 : index
    %20 = vector.load %arg11[%c96, %c0_21] : memref<432x256xbf16, #tpu.memory_space<vmem>>, vector<16x256xbf16>
    tpu.vector_store %arg11[%c96, %c0_21], %19 {strides = array<i32>} : memref<432x256xbf16, #tpu.memory_space<vmem>>, vector<16x256xbf16>,
    %c0_22 = arith.constant 0 : index
    %c0_23 = arith.constant 0 : index
    %c13 = arith.constant 13 : index
    %21 = vector.load %arg1[%c0_22, %c0_23, %c13] : memref<1x16x342xbf16, #tpu.memory_space<vmem>>, vector<1x16x256xbf16>
    %22 = vector.shape_cast %21 : vector<1x16x256xbf16> to vector<16x256xbf16>
    %c112 = arith.constant 112 : index
    %c0_24 = arith.constant 0 : index
    %23 = vector.load %arg11[%c112, %c0_24] : memref<432x256xbf16, #tpu.memory_space<vmem>>, vector<16x256xbf16>
    tpu.vector_store %arg11[%c112, %c0_24], %22 {strides = array<i32>} : memref<432x256xbf16, #tpu.memory_space<vmem>>, vector<16x256xbf16>,
    %c0_25 = arith.constant 0 : index
    %c0_26 = arith.constant 0 : index
    %c14 = arith.constant 14 : index
    %24 = vector.load %arg1[%c0_25, %c0_26, %c14] : memref<1x16x342xbf16, #tpu.memory_space<vmem>>, vector<1x16x256xbf16>
    %25 = vector.shape_cast %24 : vector<1x16x256xbf16> to vector<16x256xbf16>
    %c128 = arith.constant 128 : index
    %c0_27 = arith.constant 0 : index
    %26 = vector.load %arg11[%c128, %c0_27] : memref<432x256xbf16, #tpu.memory_space<vmem>>, vector<16x256xbf16>
    tpu.vector_store %arg11[%c128, %c0_27], %25 {strides = array<i32>} : memref<432x256xbf16, #tpu.memory_space<vmem>>, vector<16x256xbf16>,
    %c0_28 = arith.constant 0 : index
    %c0_29 = arith.constant 0 : index
    %c36 = arith.constant 36 : index
    %27 = vector.load %arg1[%c0_28, %c0_29, %c36] : memref<1x16x342xbf16, #tpu.memory_space<vmem>>, vector<1x16x256xbf16>
    %28 = vector.shape_cast %27 : vector<1x16x256xbf16> to vector<16x256xbf16>
    %c144 = arith.constant 144 : index
    %c0_30 = arith.constant 0 : index
    %29 = vector.load %arg11[%c144, %c0_30] : memref<432x256xbf16, #tpu.memory_space<vmem>>, vector<16x256xbf16>
    tpu.vector_store %arg11[%c144, %c0_30], %28 {strides = array<i32>} : memref<432x256xbf16, #tpu.memory_space<vmem>>, vector<16x256xbf16>,
    %c0_31 = arith.constant 0 : index
    %c0_32 = arith.constant 0 : index
    %c37 = arith.constant 37 : index
    %30 = vector.load %arg1[%c0_31, %c0_32, %c37] : memref<1x16x342xbf16, #tpu.memory_space<vmem>>, vector<1x16x256xbf16>
    %31 = vector.shape_cast %30 : vector<1x16x256xbf16> to vector<16x256xbf16>
    %c160 = arith.constant 160 : index
    %c0_33 = arith.constant 0 : index
    %32 = vector.load %arg11[%c160, %c0_33] : memref<432x256xbf16, #tpu.memory_space<vmem>>, vector<16x256xbf16>
    tpu.vector_store %arg11[%c160, %c0_33], %31 {strides = array<i32>} : memref<432x256xbf16, #tpu.memory_space<vmem>>, vector<16x256xbf16>,
    %c0_34 = arith.constant 0 : index
    %c0_35 = arith.constant 0 : index
    %c38 = arith.constant 38 : index
    %33 = vector.load %arg1[%c0_34, %c0_35, %c38] : memref<1x16x342xbf16, #tpu.memory_space<vmem>>, vector<1x16x256xbf16>
    %34 = vector.shape_cast %33 : vector<1x16x256xbf16> to vector<16x256xbf16>
    %c176 = arith.constant 176 : index
    %c0_36 = arith.constant 0 : index
    %35 = vector.load %arg11[%c176, %c0_36] : memref<432x256xbf16, #tpu.memory_space<vmem>>, vector<16x256xbf16>
    tpu.vector_store %arg11[%c176, %c0_36], %34 {strides = array<i32>} : memref<432x256xbf16, #tpu.memory_space<vmem>>, vector<16x256xbf16>,
    %c0_37 = arith.constant 0 : index
    %c0_38 = arith.constant 0 : index
    %c42 = arith.constant 42 : index
    %36 = vector.load %arg1[%c0_37, %c0_38, %c42] : memref<1x16x342xbf16, #tpu.memory_space<vmem>>, vector<1x16x256xbf16>
    %37 = vector.shape_cast %36 : vector<1x16x256xbf16> to vector<16x256xbf16>
    %c192 = arith.constant 192 : index
    %c0_39 = arith.constant 0 : index
    %38 = vector.load %arg11[%c192, %c0_39] : memref<432x256xbf16, #tpu.memory_space<vmem>>, vector<16x256xbf16>
    tpu.vector_store %arg11[%c192, %c0_39], %37 {strides = array<i32>} : memref<432x256xbf16, #tpu.memory_space<vmem>>, vector<16x256xbf16>,
    %c0_40 = arith.constant 0 : index
    %c0_41 = arith.constant 0 : index
    %c43 = arith.constant 43 : index
    %39 = vector.load %arg1[%c0_40, %c0_41, %c43] : memref<1x16x342xbf16, #tpu.memory_space<vmem>>, vector<1x16x256xbf16>
    %40 = vector.shape_cast %39 : vector<1x16x256xbf16> to vector<16x256xbf16>
    %c208 = arith.constant 208 : index
    %c0_42 = arith.constant 0 : index
    %41 = vector.load %arg11[%c208, %c0_42] : memref<432x256xbf16, #tpu.memory_space<vmem>>, vector<16x256xbf16>
    tpu.vector_store %arg11[%c208, %c0_42], %40 {strides = array<i32>} : memref<432x256xbf16, #tpu.memory_space<vmem>>, vector<16x256xbf16>,
    %c0_43 = arith.constant 0 : index
    %c0_44 = arith.constant 0 : index
    %c44 = arith.constant 44 : index
    %42 = vector.load %arg1[%c0_43, %c0_44, %c44] : memref<1x16x342xbf16, #tpu.memory_space<vmem>>, vector<1x16x256xbf16>
    %43 = vector.shape_cast %42 : vector<1x16x256xbf16> to vector<16x256xbf16>
    %c224 = arith.constant 224 : index
    %c0_45 = arith.constant 0 : index
    %44 = vector.load %arg11[%c224, %c0_45] : memref<432x256xbf16, #tpu.memory_space<vmem>>, vector<16x256xbf16>
    tpu.vector_store %arg11[%c224, %c0_45], %43 {strides = array<i32>} : memref<432x256xbf16, #tpu.memory_space<vmem>>, vector<16x256xbf16>,
    %c0_46 = arith.constant 0 : index
    %c0_47 = arith.constant 0 : index
    %c48_48 = arith.constant 48 : index
    %45 = vector.load %arg1[%c0_46, %c0_47, %c48_48] : memref<1x16x342xbf16, #tpu.memory_space<vmem>>, vector<1x16x256xbf16>
    %46 = vector.shape_cast %45 : vector<1x16x256xbf16> to vector<16x256xbf16>
    %c240 = arith.constant 240 : index
    %c0_49 = arith.constant 0 : index
    %47 = vector.load %arg11[%c240, %c0_49] : memref<432x256xbf16, #tpu.memory_space<vmem>>, vector<16x256xbf16>
    tpu.vector_store %arg11[%c240, %c0_49], %46 {strides = array<i32>} : memref<432x256xbf16, #tpu.memory_space<vmem>>, vector<16x256xbf16>,
    %c0_50 = arith.constant 0 : index
    %c0_51 = arith.constant 0 : index
    %c49 = arith.constant 49 : index
    %48 = vector.load %arg1[%c0_50, %c0_51, %c49] : memref<1x16x342xbf16, #tpu.memory_space<vmem>>, vector<1x16x256xbf16>
    %49 = vector.shape_cast %48 : vector<1x16x256xbf16> to vector<16x256xbf16>
    %c256 = arith.constant 256 : index
    %c0_52 = arith.constant 0 : index
    %50 = vector.load %arg11[%c256, %c0_52] : memref<432x256xbf16, #tpu.memory_space<vmem>>, vector<16x256xbf16>
    tpu.vector_store %arg11[%c256, %c0_52], %49 {strides = array<i32>} : memref<432x256xbf16, #tpu.memory_space<vmem>>, vector<16x256xbf16>,
    %c0_53 = arith.constant 0 : index
    %c0_54 = arith.constant 0 : index
    %c50 = arith.constant 50 : index
    %51 = vector.load %arg1[%c0_53, %c0_54, %c50] : memref<1x16x342xbf16, #tpu.memory_space<vmem>>, vector<1x16x256xbf16>
    %52 = vector.shape_cast %51 : vector<1x16x256xbf16> to vector<16x256xbf16>
    %c272 = arith.constant 272 : index
    %c0_55 = arith.constant 0 : index
    %53 = vector.load %arg11[%c272, %c0_55] : memref<432x256xbf16, #tpu.memory_space<vmem>>, vector<16x256xbf16>
    tpu.vector_store %arg11[%c272, %c0_55], %52 {strides = array<i32>} : memref<432x256xbf16, #tpu.memory_space<vmem>>, vector<16x256xbf16>,
    %c0_56 = arith.constant 0 : index
    %c0_57 = arith.constant 0 : index
    %c72 = arith.constant 72 : index
    %54 = vector.load %arg1[%c0_56, %c0_57, %c72] : memref<1x16x342xbf16, #tpu.memory_space<vmem>>, vector<1x16x256xbf16>
    %55 = vector.shape_cast %54 : vector<1x16x256xbf16> to vector<16x256xbf16>
    %c288 = arith.constant 288 : index
    %c0_58 = arith.constant 0 : index
    %56 = vector.load %arg11[%c288, %c0_58] : memref<432x256xbf16, #tpu.memory_space<vmem>>, vector<16x256xbf16>
    tpu.vector_store %arg11[%c288, %c0_58], %55 {strides = array<i32>} : memref<432x256xbf16, #tpu.memory_space<vmem>>, vector<16x256xbf16>,
    %c0_59 = arith.constant 0 : index
    %c0_60 = arith.constant 0 : index
    %c73 = arith.constant 73 : index
    %57 = vector.load %arg1[%c0_59, %c0_60, %c73] : memref<1x16x342xbf16, #tpu.memory_space<vmem>>, vector<1x16x256xbf16>
    %58 = vector.shape_cast %57 : vector<1x16x256xbf16> to vector<16x256xbf16>
    %c304 = arith.constant 304 : index
    %c0_61 = arith.constant 0 : index
    %59 = vector.load %arg11[%c304, %c0_61] : memref<432x256xbf16, #tpu.memory_space<vmem>>, vector<16x256xbf16>
    tpu.vector_store %arg11[%c304, %c0_61], %58 {strides = array<i32>} : memref<432x256xbf16, #tpu.memory_space<vmem>>, vector<16x256xbf16>,
    %c0_62 = arith.constant 0 : index
    %c0_63 = arith.constant 0 : index
    %c74 = arith.constant 74 : index
    %60 = vector.load %arg1[%c0_62, %c0_63, %c74] : memref<1x16x342xbf16, #tpu.memory_space<vmem>>, vector<1x16x256xbf16>
    %61 = vector.shape_cast %60 : vector<1x16x256xbf16> to vector<16x256xbf16>
    %c320 = arith.constant 320 : index
    %c0_64 = arith.constant 0 : index
    %62 = vector.load %arg11[%c320, %c0_64] : memref<432x256xbf16, #tpu.memory_space<vmem>>, vector<16x256xbf16>
    tpu.vector_store %arg11[%c320, %c0_64], %61 {strides = array<i32>} : memref<432x256xbf16, #tpu.memory_space<vmem>>, vector<16x256xbf16>,
    %c0_65 = arith.constant 0 : index
    %c0_66 = arith.constant 0 : index
    %c78 = arith.constant 78 : index
    %63 = vector.load %arg1[%c0_65, %c0_66, %c78] : memref<1x16x342xbf16, #tpu.memory_space<vmem>>, vector<1x16x256xbf16>
    %64 = vector.shape_cast %63 : vector<1x16x256xbf16> to vector<16x256xbf16>
    %c336 = arith.constant 336 : index
    %c0_67 = arith.constant 0 : index
    %65 = vector.load %arg11[%c336, %c0_67] : memref<432x256xbf16, #tpu.memory_space<vmem>>, vector<16x256xbf16>
    tpu.vector_store %arg11[%c336, %c0_67], %64 {strides = array<i32>} : memref<432x256xbf16, #tpu.memory_space<vmem>>, vector<16x256xbf16>,
    %c0_68 = arith.constant 0 : index
    %c0_69 = arith.constant 0 : index
    %c79 = arith.constant 79 : index
    %66 = vector.load %arg1[%c0_68, %c0_69, %c79] : memref<1x16x342xbf16, #tpu.memory_space<vmem>>, vector<1x16x256xbf16>
    %67 = vector.shape_cast %66 : vector<1x16x256xbf16> to vector<16x256xbf16>
    %c352 = arith.constant 352 : index
    %c0_70 = arith.constant 0 : index
    %68 = vector.load %arg11[%c352, %c0_70] : memref<432x256xbf16, #tpu.memory_space<vmem>>, vector<16x256xbf16>
    tpu.vector_store %arg11[%c352, %c0_70], %67 {strides = array<i32>} : memref<432x256xbf16, #tpu.memory_space<vmem>>, vector<16x256xbf16>,
    %c0_71 = arith.constant 0 : index
    %c0_72 = arith.constant 0 : index
    %c80_73 = arith.constant 80 : index
    %69 = vector.load %arg1[%c0_71, %c0_72, %c80_73] : memref<1x16x342xbf16, #tpu.memory_space<vmem>>, vector<1x16x256xbf16>
    %70 = vector.shape_cast %69 : vector<1x16x256xbf16> to vector<16x256xbf16>
    %c368 = arith.constant 368 : index
    %c0_74 = arith.constant 0 : index
    %71 = vector.load %arg11[%c368, %c0_74] : memref<432x256xbf16, #tpu.memory_space<vmem>>, vector<16x256xbf16>
    tpu.vector_store %arg11[%c368, %c0_74], %70 {strides = array<i32>} : memref<432x256xbf16, #tpu.memory_space<vmem>>, vector<16x256xbf16>,
    %c0_75 = arith.constant 0 : index
    %c0_76 = arith.constant 0 : index
    %c84 = arith.constant 84 : index
    %72 = vector.load %arg1[%c0_75, %c0_76, %c84] : memref<1x16x342xbf16, #tpu.memory_space<vmem>>, vector<1x16x256xbf16>
    %73 = vector.shape_cast %72 : vector<1x16x256xbf16> to vector<16x256xbf16>
    %c384 = arith.constant 384 : index
    %c0_77 = arith.constant 0 : index
    %74 = vector.load %arg11[%c384, %c0_77] : memref<432x256xbf16, #tpu.memory_space<vmem>>, vector<16x256xbf16>
    tpu.vector_store %arg11[%c384, %c0_77], %73 {strides = array<i32>} : memref<432x256xbf16, #tpu.memory_space<vmem>>, vector<16x256xbf16>,
    %c0_78 = arith.constant 0 : index
    %c0_79 = arith.constant 0 : index
    %c85 = arith.constant 85 : index
    %75 = vector.load %arg1[%c0_78, %c0_79, %c85] : memref<1x16x342xbf16, #tpu.memory_space<vmem>>, vector<1x16x256xbf16>
    %76 = vector.shape_cast %75 : vector<1x16x256xbf16> to vector<16x256xbf16>
    %c400 = arith.constant 400 : index
    %c0_80 = arith.constant 0 : index
    %77 = vector.load %arg11[%c400, %c0_80] : memref<432x256xbf16, #tpu.memory_space<vmem>>, vector<16x256xbf16>
    tpu.vector_store %arg11[%c400, %c0_80], %76 {strides = array<i32>} : memref<432x256xbf16, #tpu.memory_space<vmem>>, vector<16x256xbf16>,
    %c0_81 = arith.constant 0 : index
    %c0_82 = arith.constant 0 : index
    %c86 = arith.constant 86 : index
    %78 = vector.load %arg1[%c0_81, %c0_82, %c86] : memref<1x16x342xbf16, #tpu.memory_space<vmem>>, vector<1x16x256xbf16>
    %79 = vector.shape_cast %78 : vector<1x16x256xbf16> to vector<16x256xbf16>
    %c416 = arith.constant 416 : index
    %c0_83 = arith.constant 0 : index
    %80 = vector.load %arg11[%c416, %c0_83] : memref<432x256xbf16, #tpu.memory_space<vmem>>, vector<16x256xbf16>
    tpu.vector_store %arg11[%c416, %c0_83], %79 {strides = array<i32>} : memref<432x256xbf16, #tpu.memory_space<vmem>>, vector<16x256xbf16>,
    %c0_84 = arith.constant 0 : index
    %c0_85 = arith.constant 0 : index
    %81 = vector.load %arg2[%c0_84, %c0_85] : memref<16x432xbf16, #tpu.memory_space<vmem>>, vector<16x432xbf16>
    %c0_86 = arith.constant 0 : index
    %c0_87 = arith.constant 0 : index
    %82 = vector.load %arg11[%c0_86, %c0_87] : memref<432x256xbf16, #tpu.memory_space<vmem>>, vector<432x256xbf16>
    %cst = arith.constant dense<0.000000e+00> : vector<16x256xf32>
    %83 = tpu.matmul %81, %82, %cst {dimension_numbers = #tpu.dot_dimension_numbers<[1], [0], [0], [1], [0, 0, 1, 1], [], []>} : vector<16x432xbf16>, vector<432x256xbf16>, vector<16x256xf32> -> vector<16x256xf32>
    %c0_88 = arith.constant 0 : index
    %c0_89 = arith.constant 0 : index
    %84 = vector.load %arg3[%c0_88, %c0_89] : memref<16x1xf32, #tpu.memory_space<vmem>>, vector<16x1xf32>
    %85 = vector.broadcast %84 : vector<16x1xf32> to vector<16x256xf32>
    %86 = arith.addf %83, %85 : vector<16x256xf32>
    %c0_90 = arith.constant 0 : index
    %c0_91 = arith.constant 0 : index
    %87 = vector.load %arg7[%c0_90, %c0_91] : memref<1x256xf32, #tpu.memory_space<vmem>>, vector<1x256xf32>
    %88 = vector.broadcast %87 : vector<1x256xf32> to vector<16x256xf32>
    %89 = arith.mulf %86, %88 : vector<16x256xf32>
    %cst_92 = arith.constant dense<0.000000e+00> : vector<16xf32>
    %90 = vector.multi_reduction <add>, %89, %cst_92 [1] : vector<16x256xf32> to vector<16xf32>
    %91 = vector.shape_cast %90 : vector<16xf32> to vector<16x1xf32>
    %92 = arith.mulf %89, %86 : vector<16x256xf32>
    %cst_93 = arith.constant dense<0.000000e+00> : vector<16xf32>
    %93 = vector.multi_reduction <add>, %92, %cst_93 [1] : vector<16x256xf32> to vector<16xf32>
    %94 = vector.shape_cast %93 : vector<16xf32> to vector<16x1xf32>
    %c0_94 = arith.constant 0 : index
    %c0_95 = arith.constant 0 : index
    %95 = vector.load %arg6[%c0_94, %c0_95] : memref<16x16xf32, #tpu.memory_space<vmem>>, vector<16x16xf32>
    %cst_96 = arith.constant dense<0.000000e+00> : vector<16x1xf32>
    %96 = tpu.matmul %95, %91, %cst_96 {dimension_numbers = #tpu.dot_dimension_numbers<[1], [0], [0], [1], [0, 0, 1, 1], [], []>} : vector<16x16xf32>, vector<16x1xf32>, vector<16x1xf32> -> vector<16x1xf32>
    %c0_97 = arith.constant 0 : index
    %c0_98 = arith.constant 0 : index
    %97 = vector.load %arg6[%c0_97, %c0_98] : memref<16x16xf32, #tpu.memory_space<vmem>>, vector<16x16xf32>
    %cst_99 = arith.constant dense<0.000000e+00> : vector<16x1xf32>
    %98 = tpu.matmul %97, %94, %cst_99 {dimension_numbers = #tpu.dot_dimension_numbers<[1], [0], [0], [1], [0, 0, 1, 1], [], []>} : vector<16x16xf32>, vector<16x1xf32>, vector<16x1xf32> -> vector<16x1xf32>
    %cst_100 = arith.constant 7.812500e-03 : f32
    %99 = vector.broadcast %cst_100 : f32 to vector<16x1xf32>
    %100 = arith.mulf %96, %99 : vector<16x1xf32>
    %cst_101 = arith.constant 7.812500e-03 : f32
    %101 = vector.broadcast %cst_101 : f32 to vector<16x1xf32>
    %102 = arith.mulf %98, %101 : vector<16x1xf32>
    %103 = arith.mulf %100, %100 : vector<16x1xf32>
    %104 = arith.subf %102, %103 : vector<16x1xf32>
    %cst_102 = arith.constant 9.99999974E-6 : f32
    %105 = vector.broadcast %cst_102 : f32 to vector<16x1xf32>
    %106 = arith.addf %104, %105 : vector<16x1xf32>
    %107 = math.rsqrt %106 : vector<16x1xf32>
    %108 = vector.broadcast %100 : vector<16x1xf32> to vector<16x256xf32>
    %109 = arith.subf %86, %108 : vector<16x256xf32>
    %c0_103 = arith.constant 0 : index
    %c0_104 = arith.constant 0 : index
    %110 = vector.load %arg4[%c0_103, %c0_104] : memref<16x1xf32, #tpu.memory_space<vmem>>, vector<16x1xf32>
    %111 = arith.mulf %107, %110 : vector<16x1xf32>
    %112 = vector.broadcast %111 : vector<16x1xf32> to vector<16x256xf32>
    %113 = arith.mulf %109, %112 : vector<16x256xf32>
    %c0_105 = arith.constant 0 : index
    %c0_106 = arith.constant 0 : index
    %114 = vector.load %arg5[%c0_105, %c0_106] : memref<16x1xf32, #tpu.memory_space<vmem>>, vector<16x1xf32>
    %115 = vector.broadcast %114 : vector<16x1xf32> to vector<16x256xf32>
    %116 = arith.addf %113, %115 : vector<16x256xf32>
    %c0_107 = arith.constant 0 : index
    %c0_108 = arith.constant 0 : index
    %c0_109 = arith.constant 0 : index
    %117 = vector.load %arg8[%c0_107, %c0_108, %c0_109] : memref<1x8x256xbf16, #tpu.memory_space<vmem>>, vector<1x8x256xbf16>
    %118 = vector.shape_cast %117 : vector<1x8x256xbf16> to vector<8x256xbf16>
    %c0_110 = arith.constant 0 : index
    %c0_111 = arith.constant 0 : index
    %119 = vector.load %arg9[%c0_110, %c0_111] : memref<16x8xbf16, #tpu.memory_space<vmem>>, vector<16x8xbf16>
    %cst_112 = arith.constant dense<0.000000e+00> : vector<16x256xf32>
    %120 = tpu.matmul %119, %118, %cst_112 {dimension_numbers = #tpu.dot_dimension_numbers<[1], [0], [0], [1], [0, 0, 1, 1], [], []>} : vector<16x8xbf16>, vector<8x256xbf16>, vector<16x256xf32> -> vector<16x256xf32>
    %121 = arith.addf %116, %120 : vector<16x256xf32>
    %cst_113 = arith.constant 0.000000e+00 : f32
    %122 = vector.broadcast %cst_113 : f32 to vector<16x256xf32>
    %123 = arith.cmpf oge, %121, %122 : vector<16x256xf32>
    %cst_114 = arith.constant 0.00999999977 : f32
    %124 = vector.broadcast %cst_114 : f32 to vector<16x256xf32>
    %125 = arith.mulf %124, %121 : vector<16x256xf32>
    %126 = arith.select %123, %121, %125 : vector<16x256xi1>, vector<16x256xf32>
    %c0_115 = arith.constant 0 : index
    %c0_116 = arith.constant 0 : index
    %c0_117 = arith.constant 0 : index
    %127 = vector.load %arg10[%c0_115, %c0_116, %c0_117] : memref<1x16x256xf32, #tpu.memory_space<vmem>>, vector<1x16x256xf32>
    %128 = vector.shape_cast %127 : vector<1x16x256xf32> to vector<16x256xf32>
    %129 = vector.shape_cast %126 : vector<16x256xf32> to vector<1x16x256xf32>
    tpu.vector_store %arg10[%c0_115, %c0_116, %c0_117], %129 {strides = array<i32>} : memref<1x16x256xf32, #tpu.memory_space<vmem>>, vector<1x16x256xf32>,
    return
  }
  func.func @transform_0(%arg0: i32) -> (i32, i32, i32) {
    %c0_i32 = arith.constant 0 : i32
    %c0_i32_0 = arith.constant 0 : i32
    %c0_i32_1 = arith.constant 0 : i32
    return %arg0, %c0_i32, %c0_i32_0 : i32, i32, i32
  }
  func.func @transform_1(%arg0: i32) -> (i32, i32) {
    %c0_i32 = arith.constant 0 : i32
    %c0_i32_0 = arith.constant 0 : i32
    %c0_i32_1 = arith.constant 0 : i32
    return %c0_i32, %c0_i32_0 : i32, i32
  }
  func.func @transform_2(%arg0: i32) -> (i32, i32) {
    %c0_i32 = arith.constant 0 : i32
    %c0_i32_0 = arith.constant 0 : i32
    %c0_i32_1 = arith.constant 0 : i32
    return %c0_i32, %c0_i32_0 : i32, i32
  }
  func.func @transform_3(%arg0: i32) -> (i32, i32) {
    %c0_i32 = arith.constant 0 : i32
    %c0_i32_0 = arith.constant 0 : i32
    %c0_i32_1 = arith.constant 0 : i32
    return %c0_i32, %c0_i32_0 : i32, i32
  }
  func.func @transform_4(%arg0: i32) -> (i32, i32) {
    %c0_i32 = arith.constant 0 : i32
    %c0_i32_0 = arith.constant 0 : i32
    %c0_i32_1 = arith.constant 0 : i32
    return %c0_i32, %c0_i32_0 : i32, i32
  }
  func.func @transform_5(%arg0: i32) -> (i32, i32) {
    %c0_i32 = arith.constant 0 : i32
    %c0_i32_0 = arith.constant 0 : i32
    %c0_i32_1 = arith.constant 0 : i32
    return %c0_i32, %c0_i32_0 : i32, i32
  }
  func.func @transform_6(%arg0: i32) -> (i32, i32) {
    %c0_i32 = arith.constant 0 : i32
    %c0_i32_0 = arith.constant 0 : i32
    %c0_i32_1 = arith.constant 0 : i32
    return %c0_i32, %c0_i32_0 : i32, i32
  }
  func.func @transform_7(%arg0: i32) -> (i32, i32, i32) {
    %c0_i32 = arith.constant 0 : i32
    %c0_i32_0 = arith.constant 0 : i32
    %c0_i32_1 = arith.constant 0 : i32
    return %arg0, %c0_i32, %c0_i32_0 : i32, i32, i32
  }
  func.func @transform_8(%arg0: i32) -> (i32, i32) {
    %c0_i32 = arith.constant 0 : i32
    %c0_i32_0 = arith.constant 0 : i32
    %c0_i32_1 = arith.constant 0 : i32
    return %c0_i32, %c0_i32_0 : i32, i32
  }
  func.func @transform_9(%arg0: i32) -> (i32, i32, i32) {
    %c0_i32 = arith.constant 0 : i32
    %c0_i32_0 = arith.constant 0 : i32
    %c0_i32_1 = arith.constant 0 : i32
    return %arg0, %c0_i32, %c0_i32_0 : i32, i32, i32
  }
}

</mosaic_0001>

<llo_original>
// kernel: basic_block_forward.3
$region0: #{basic_block_forward.3}
  #allocation0 [shape = 'u32[]', space=smem, size = 0x4, offset = 0x4, fixed_abs, tag = 'smem constant byte address 0x4 - core index']
  #allocation1 [shape = 'u32[144,128]{1,0:T(1,128)}', space=vmem, size = 0x12000, scoped, tag = 'internal scratch']
  #allocation2 [shape = 'bf16[432,256]{1,0:T(16,128)(2,1)}', space=vmem, size = 0x36000, scoped, tag = 'scratch operand']
  %s0 = inlined_call_operand.vmem [shape: bf16[2,16,342], index: 0, kind: input, shape index: {}]
  %s1 = inlined_call_operand.vmem [shape: bf16[16,432], index: 1, kind: input, shape index: {}]
  %s2 = inlined_call_operand.vmem [shape: f32[16,1], index: 2, kind: input, shape index: {}]
  %s3 = inlined_call_operand.vmem [shape: f32[16,1], index: 3, kind: input, shape index: {}]
  %s4 = inlined_call_operand.vmem [shape: f32[16,1], index: 4, kind: input, shape index: {}]
  %s5 = inlined_call_operand.vmem [shape: f32[16,16], index: 5, kind: input, shape index: {}]
  %s6 = inlined_call_operand.vmem [shape: f32[1,256], index: 6, kind: input, shape index: {}]
  %s7 = inlined_call_operand.vmem [shape: bf16[2,8,256], index: 7, kind: input, shape index: {}]
  %s8 = inlined_call_operand.vmem [shape: bf16[16,8], index: 8, kind: input, shape index: {}]
  %s9 = inlined_call_operand.vmem [shape: f32[2,16,256], index: 9, kind: output, shape index: {}]
  %s10 = sld [smem:[#allocation0]]
  $region69: #{basic_block_forward.3} parent=0
    _
  %s12 = ssub.s32 1, %s10
  %s13 = scalar_select 0, %s12, %s10
  loop: start=0, step=1, limit=4
  $region2: #{basic_block_forward.3} parent=0 // loop_pre_header
    _
  $region3: #{basic_block_forward.3} parent=0 // loop_header
    %s15 = sphi 0, %s19
    %p16 = scmp.ge.s32.totalorder %s15, 4
    %s25 = sphi 0, %s27
    %s28 = sphi 0, %s25
    %s29 = sphi 0, %s28
    %s45 = sphi 0, %s29
    %s49 = sphi 0, %s49
    %s51 = sphi 0, %s49
    %s52 = sphi 0, %s51
    %s66 = sphi 0, %s52
    %s70 = sphi 0, %s70
    %s72 = sphi 0, %s70
    %s73 = sphi 0, %s72
    %s87 = sphi 0, %s73
    %s91 = sphi 0, %s91
    %s93 = sphi 0, %s91
    %s94 = sphi 0, %s93
    %s108 = sphi 0, %s94
    %s112 = sphi 0, %s112
    %s114 = sphi 0, %s112
    %s115 = sphi 0, %s114
    %s129 = sphi 0, %s115
    %s133 = sphi 0, %s133
    %s135 = sphi 0, %s133
    %s136 = sphi 0, %s135
    %s150 = sphi 0, %s136
    %s154 = sphi 0, %s154
    %s156 = sphi 0, %s154
    %s157 = sphi 0, %s156
    %s171 = sphi 0, %s157
    %s177 = sphi 0, %s179
    %s180 = sphi 0, %s177
    %s181 = sphi 0, %s180
    %s197 = sphi 0, %s181
    %s201 = sphi 0, %s201
    %s203 = sphi 0, %s201
    %s204 = sphi 0, %s203
    %s218 = sphi 0, %s204
    %s224 = sphi 0, %s226
    %s227 = sphi 0, %s224
    %s228 = sphi 0, %s227
    %s244 = sphi 0, %s228
  $region4: #{basic_block_forward.3} parent=0 // loop_header_branch
    %18 = sbr.rel (%p16) target = $region8
  $region5: #{basic_block_forward.3} parent=0 // loop_body
    %s20 = ssub.s32 %s15, 1
    %s21 = ssub.s32 %s15, 2
    %s22 = sadd.s32 %s15, 1
    %s23 = ssub.s32 %s15, %s22
    %p24 = scmp.eq.s32.totalorder %s23, 0
    %s26 = sadd.s32 %s25, 1
    %s27 = scalar_select %p24, %s25, %s26
    %p30 = pneg %p24
    %p31 = scmp.eq.s32.totalorder %s15, 1
    %p32 = por %p30, %p31
    %p33 = scmp.ne.s32.totalorder %s25, %s28
    %p34 = scmp.eq.s32.totalorder %s15, 0
    %p35 = por %p33, %p34
    %p36 = scmp.ne.s32.totalorder %s25, %s28
    %p37 = scmp.eq.s32.totalorder %s20, 1
    %p38 = por %p36, %p37
    %p39 = scmp.ne.s32.totalorder %s28, %s29
    %p40 = scmp.eq.s32.totalorder %s20, 0
    %p41 = por %p39, %p40
    %p42 = scmp.ne.s32.totalorder %s28, %s29
    %p43 = scmp.eq.s32.totalorder %s21, 1
    %p44 = por %p42, %p43
    %p46 = scmp.ne.s32.totalorder %s29, %s45
    %p47 = scmp.eq.s32.totalorder %s21, 0
    %p48 = por %p46, %p47
    %s50 = sadd.s32 %s49, 1
    %p53 = scmp.eq.s32.totalorder %s15, 1
    %p54 = scmp.ne.s32.totalorder %s49, %s51
    %p55 = scmp.eq.s32.totalorder %s15, 0
    %p56 = por %p54, %p55
    %p57 = scmp.ne.s32.totalorder %s49, %s51
    %p58 = scmp.eq.s32.totalorder %s20, 1
    %p59 = por %p57, %p58
    %p60 = scmp.ne.s32.totalorder %s51, %s52
    %p61 = scmp.eq.s32.totalorder %s20, 0
    %p62 = por %p60, %p61
    %p63 = scmp.ne.s32.totalorder %s51, %s52
    %p64 = scmp.eq.s32.totalorder %s21, 1
    %p65 = por %p63, %p64
    %p67 = scmp.ne.s32.totalorder %s52, %s66
    %p68 = scmp.eq.s32.totalorder %s21, 0
    %p69 = por %p67, %p68
    %s71 = sadd.s32 %s70, 1
    %p74 = scmp.eq.s32.totalorder %s15, 1
    %p75 = scmp.ne.s32.totalorder %s70, %s72
    %p76 = scmp.eq.s32.totalorder %s15, 0
    %p77 = por %p75, %p76
    %p78 = scmp.ne.s32.totalorder %s70, %s72
    %p79 = scmp.eq.s32.totalorder %s20, 1
    %p80 = por %p78, %p79
    %p81 = scmp.ne.s32.totalorder %s72, %s73
    %p82 = scmp.eq.s32.totalorder %s20, 0
    %p83 = por %p81, %p82
    %p84 = scmp.ne.s32.totalorder %s72, %s73
    %p85 = scmp.eq.s32.totalorder %s21, 1
    %p86 = por %p84, %p85
    %p88 = scmp.ne.s32.totalorder %s73, %s87
    %p89 = scmp.eq.s32.totalorder %s21, 0
    %p90 = por %p88, %p89
    %s92 = sadd.s32 %s91, 1
    %p95 = scmp.eq.s32.totalorder %s15, 1
    %p96 = scmp.ne.s32.totalorder %s91, %s93
    %p97 = scmp.eq.s32.totalorder %s15, 0
    %p98 = por %p96, %p97
    %p99 = scmp.ne.s32.totalorder %s91, %s93
    %p100 = scmp.eq.s32.totalorder %s20, 1
    %p101 = por %p99, %p100
    %p102 = scmp.ne.s32.totalorder %s93, %s94
    %p103 = scmp.eq.s32.totalorder %s20, 0
    %p104 = por %p102, %p103
    %p105 = scmp.ne.s32.totalorder %s93, %s94
    %p106 = scmp.eq.s32.totalorder %s21, 1
    %p107 = por %p105, %p106
    %p109 = scmp.ne.s32.totalorder %s94, %s108
    %p110 = scmp.eq.s32.totalorder %s21, 0
    %p111 = por %p109, %p110
    %s113 = sadd.s32 %s112, 1
    %p116 = scmp.eq.s32.totalorder %s15, 1
    %p117 = scmp.ne.s32.totalorder %s112, %s114
    %p118 = scmp.eq.s32.totalorder %s15, 0
    %p119 = por %p117, %p118
    %p120 = scmp.ne.s32.totalorder %s112, %s114
    %p121 = scmp.eq.s32.totalorder %s20, 1
    %p122 = por %p120, %p121
    %p123 = scmp.ne.s32.totalorder %s114, %s115
    %p124 = scmp.eq.s32.totalorder %s20, 0
    %p125 = por %p123, %p124
    %p126 = scmp.ne.s32.totalorder %s114, %s115
    %p127 = scmp.eq.s32.totalorder %s21, 1
    %p128 = por %p126, %p127
    %p130 = scmp.ne.s32.totalorder %s115, %s129
    %p131 = scmp.eq.s32.totalorder %s21, 0
    %p132 = por %p130, %p131
    %s134 = sadd.s32 %s133, 1
    %p137 = scmp.eq.s32.totalorder %s15, 1
    %p138 = scmp.ne.s32.totalorder %s133, %s135
    %p139 = scmp.eq.s32.totalorder %s15, 0
    %p140 = por %p138, %p139
    %p141 = scmp.ne.s32.totalorder %s133, %s135
    %p142 = scmp.eq.s32.totalorder %s20, 1
    %p143 = por %p141, %p142
    %p144 = scmp.ne.s32.totalorder %s135, %s136
    %p145 = scmp.eq.s32.totalorder %s20, 0
    %p146 = por %p144, %p145
    %p147 = scmp.ne.s32.totalorder %s135, %s136
    %p148 = scmp.eq.s32.totalorder %s21, 1
    %p149 = por %p147, %p148
    %p151 = scmp.ne.s32.totalorder %s136, %s150
    %p152 = scmp.eq.s32.totalorder %s21, 0
    %p153 = por %p151, %p152
    %s155 = sadd.s32 %s154, 1
    %p158 = scmp.eq.s32.totalorder %s15, 1
    %p159 = scmp.ne.s32.totalorder %s154, %s156
    %p160 = scmp.eq.s32.totalorder %s15, 0
    %p161 = por %p159, %p160
    %p162 = scmp.ne.s32.totalorder %s154, %s156
    %p163 = scmp.eq.s32.totalorder %s20, 1
    %p164 = por %p162, %p163
    %p165 = scmp.ne.s32.totalorder %s156, %s157
    %p166 = scmp.eq.s32.totalorder %s20, 0
    %p167 = por %p165, %p166
    %p168 = scmp.ne.s32.totalorder %s156, %s157
    %p169 = scmp.eq.s32.totalorder %s21, 1
    %p170 = por %p168, %p169
    %p172 = scmp.ne.s32.totalorder %s157, %s171
    %p173 = scmp.eq.s32.totalorder %s21, 0
    %p174 = por %p172, %p173
    %s175 = ssub.s32 %s15, %s22
    %p176 = scmp.eq.s32.totalorder %s175, 0
    %s178 = sadd.s32 %s177, 1
    %s179 = scalar_select %p176, %s177, %s178
    %p182 = pneg %p176
    %p183 = scmp.eq.s32.totalorder %s15, 1
    %p184 = por %p182, %p183
    %p185 = scmp.ne.s32.totalorder %s177, %s180
    %p186 = scmp.eq.s32.totalorder %s15, 0
    %p187 = por %p185, %p186
    %p188 = scmp.ne.s32.totalorder %s177, %s180
    %p189 = scmp.eq.s32.totalorder %s20, 1
    %p190 = por %p188, %p189
    %p191 = scmp.ne.s32.totalorder %s180, %s181
    %p192 = scmp.eq.s32.totalorder %s20, 0
    %p193 = por %p191, %p192
    %p194 = scmp.ne.s32.totalorder %s180, %s181
    %p195 = scmp.eq.s32.totalorder %s21, 1
    %p196 = por %p194, %p195
    %p198 = scmp.ne.s32.totalorder %s181, %s197
    %p199 = scmp.eq.s32.totalorder %s21, 0
    %p200 = por %p198, %p199
    %s202 = sadd.s32 %s201, 1
    %p205 = scmp.eq.s32.totalorder %s15, 1
    %p206 = scmp.ne.s32.totalorder %s201, %s203
    %p207 = scmp.eq.s32.totalorder %s15, 0
    %p208 = por %p206, %p207
    %p209 = scmp.ne.s32.totalorder %s201, %s203
    %p210 = scmp.eq.s32.totalorder %s20, 1
    %p211 = por %p209, %p210
    %p212 = scmp.ne.s32.totalorder %s203, %s204
    %p213 = scmp.eq.s32.totalorder %s20, 0
    %p214 = por %p212, %p213
    %p215 = scmp.ne.s32.totalorder %s203, %s204
    %p216 = scmp.eq.s32.totalorder %s21, 1
    %p217 = por %p215, %p216
    %p219 = scmp.ne.s32.totalorder %s204, %s218
    %p220 = scmp.eq.s32.totalorder %s21, 0
    %p221 = por %p219, %p220
    %s222 = ssub.s32 %s15, %s22
    %p223 = scmp.eq.s32.totalorder %s222, 0
    %s225 = sadd.s32 %s224, 1
    %s226 = scalar_select %p223, %s224, %s225
    %p229 = pneg %p223
    %p230 = scmp.eq.s32.totalorder %s15, 1
    %p231 = por %p229, %p230
    %p232 = scmp.ne.s32.totalorder %s224, %s227
    %p233 = scmp.eq.s32.totalorder %s15, 0
    %p234 = por %p232, %p233
    %p235 = scmp.ne.s32.totalorder %s224, %s227
    %p236 = scmp.eq.s32.totalorder %s20, 1
    %p237 = por %p235, %p236
    %p238 = scmp.ne.s32.totalorder %s227, %s228
    %p239 = scmp.eq.s32.totalorder %s20, 0
    %p240 = por %p238, %p239
    %p241 = scmp.ne.s32.totalorder %s227, %s228
    %p242 = scmp.eq.s32.totalorder %s21, 1
    %p243 = por %p241, %p242
    %p245 = scmp.ne.s32.totalorder %s228, %s244
    %p246 = scmp.eq.s32.totalorder %s21, 0
    %p247 = por %p245, %p246
    %p248 = scmp.le.s32.totalorder 1, %s15
    %p249 = scmp.lt.s32.totalorder %s15, 3
    %p250 = pnand %p248, %p249
    %p251 = pneg %p250
    // Predicated region
    $region9: #{basic_block_forward.3} parent=5 // pred_check
      _
    $region10: #{basic_block_forward.3} parent=5 // pred_check_branch
      %253 = sbr.rel (%p250) target = $region12
    $region11: #{basic_block_forward.3} parent=5 // pred_region
      %s254 = ssub.s32 %s15, 1
      // Predicated region
      $region13: #{basic_block_forward.3} parent=11 // pred_check
        %p255 = pneg %p62
      $region14: #{basic_block_forward.3} parent=11 // pred_check_branch
        %257 = sbr.rel (%p255) target = $region16
      $region15: #{basic_block_forward.3} parent=11 // pred_region
        _
      $region16: #{basic_block_forward.3} parent=11 // pred_fallthru
        _
      // Predicated region
      $region17: #{basic_block_forward.3} parent=11 // pred_check
        %p258 = pneg %p83
      $region18: #{basic_block_forward.3} parent=11 // pred_check_branch
        %260 = sbr.rel (%p258) target = $region20
      $region19: #{basic_block_forward.3} parent=11 // pred_region
        _
      $region20: #{basic_block_forward.3} parent=11 // pred_fallthru
        _
      // Predicated region
      $region21: #{basic_block_forward.3} parent=11 // pred_check
        %p261 = pneg %p104
      $region22: #{basic_block_forward.3} parent=11 // pred_check_branch
        %263 = sbr.rel (%p261) target = $region24
      $region23: #{basic_block_forward.3} parent=11 // pred_region
        _
      $region24: #{basic_block_forward.3} parent=11 // pred_fallthru
        _
      // Predicated region
      $region25: #{basic_block_forward.3} parent=11 // pred_check
        %p264 = pneg %p125
      $region26: #{basic_block_forward.3} parent=11 // pred_check_branch
        %266 = sbr.rel (%p264) target = $region28
      $region27: #{basic_block_forward.3} parent=11 // pred_region
        _
      $region28: #{basic_block_forward.3} parent=11 // pred_fallthru
        _
      // Predicated region
      $region29: #{basic_block_forward.3} parent=11 // pred_check
        %p267 = pneg %p146
      $region30: #{basic_block_forward.3} parent=11 // pred_check_branch
        %269 = sbr.rel (%p267) target = $region32
      $region31: #{basic_block_forward.3} parent=11 // pred_region
        _
      $region32: #{basic_block_forward.3} parent=11 // pred_fallthru
        _
      // Predicated region
      $region33: #{basic_block_forward.3} parent=11 // pred_check
        %p270 = pneg %p167
      $region34: #{basic_block_forward.3} parent=11 // pred_check_branch
        %272 = sbr.rel (%p270) target = $region36
      $region35: #{basic_block_forward.3} parent=11 // pred_region
        _
      $region36: #{basic_block_forward.3} parent=11 // pred_fallthru
        _
      // Predicated region
      $region37: #{basic_block_forward.3} parent=11 // pred_check
        %p273 = pneg %p214
      $region38: #{basic_block_forward.3} parent=11 // pred_check_branch
        %275 = sbr.rel (%p273) target = $region40
      $region39: #{basic_block_forward.3} parent=11 // pred_region
        _
      $region40: #{basic_block_forward.3} parent=11 // pred_fallthru
        _
    $region12: #{basic_block_forward.3} parent=5 // pred_fallthru
      _
    %p276 = scmp.lt.s32.totalorder %s15, 2
    // Predicated region
    $region41: #{basic_block_forward.3} parent=5 // pred_check
      %p277 = pneg %p276
    $region42: #{basic_block_forward.3} parent=5 // pred_check_branch
      %279 = sbr.rel (%p277) target = $region44
    $region43: #{basic_block_forward.3} parent=5 // pred_region
      // Predicated region
      $region45: #{basic_block_forward.3} parent=43 // pred_check
        %p280 = pneg %p35
      $region46: #{basic_block_forward.3} parent=43 // pred_check_branch
        %282 = sbr.rel (%p280) target = $region48
      $region47: #{basic_block_forward.3} parent=43 // pred_region
        %p283 = scmp.lt.s32.totalorder %s15, 1
        %s284 = scalar_select %p283, %s15, 1
        %s285 = smul.addr %s284, 6
        %s286 = smul.addr %s285, 4
        %s287 = scalar_lea.vmem %s0, %s286
      $region48: #{basic_block_forward.3} parent=43 // pred_fallthru
        _
      // Predicated region
      $region49: #{basic_block_forward.3} parent=43 // pred_check
        %p288 = pneg %p187
      $region50: #{basic_block_forward.3} parent=43 // pred_check_branch
        %290 = sbr.rel (%p288) target = $region52
      $region51: #{basic_block_forward.3} parent=43 // pred_region
        %p291 = scmp.lt.s32.totalorder %s15, 1
        %s292 = scalar_select %p291, %s15, 1
        %s293 = smul.addr %s292, 2
        %s294 = smul.addr %s293, 4
        %s295 = scalar_lea.vmem %s7, %s294
      $region52: #{basic_block_forward.3} parent=43 // pred_fallthru
        _
    $region44: #{basic_block_forward.3} parent=5 // pred_fallthru
      _
    %p296 = scmp.le.s32.totalorder 1, %s15
    %p297 = scmp.lt.s32.totalorder %s15, 3
    %p298 = pnand %p296, %p297
    %p299 = pneg %p298
    // Predicated region
    $region53: #{basic_block_forward.3} parent=5 // pred_check
      _
    $region54: #{basic_block_forward.3} parent=5 // pred_check_branch
      %301 = sbr.rel (%p298) target = $region56
    $region55: #{basic_block_forward.3} parent=5 // pred_region
      %s302 = ssub.s32 %s15, 1
      %p303 = scmp.lt.s32.totalorder %s20, 1
      %s304 = scalar_select %p303, %s20, 1
      %s305 = smul.addr %s304, 6
      %s306 = smul.addr %s305, 4
      %s307 = scalar_lea.vmem %s0, %s306
      %p308 = pneg %p41
      %p309 = pneg %p38
      %p310 = pneg %p62
      %p311 = pneg %p59
      %p312 = pneg %p83
      %p313 = pneg %p80
      %p314 = pneg %p104
      %p315 = pneg %p101
      %p316 = pneg %p125
      %p317 = pneg %p122
      %p318 = pneg %p146
      %p319 = pneg %p143
      %p320 = pneg %p167
      %p321 = pneg %p164
      %p322 = scmp.lt.s32.totalorder %s20, 1
      %s323 = scalar_select %p322, %s20, 1
      %s324 = smul.addr %s323, 2
      %s325 = smul.addr %s324, 4
      %s326 = scalar_lea.vmem %s7, %s325
      %p327 = pneg %p193
      %p328 = pneg %p190
      %p329 = pneg %p214
      %p330 = pneg %p211
      %p331 = pneg %p240
      %p332 = pneg %p237
      %p333 = scmp.lt.s32.totalorder %s20, 1
      %s334 = scalar_select %p333, %s20, 1
      %s335 = smul.addr %s334, 4
      %s336 = smul.addr %s335, 8
      %s337 = scalar_lea.vmem %s9, %s336
      %p338 = scmp.lt.s32.totalorder %s20, 1
      %s339 = scalar_select %p338, %s20, 1
      %s340 = smul.addr %s339, 6
      %s341 = smul.addr %s340, 4
      %s342 = scalar_lea.vmem %s0, %s341
      %p343 = scmp.lt.s32.totalorder %s20, 1
      %s344 = scalar_select %p343, %s20, 1
      %s345 = smul.addr %s344, 2
      %s346 = smul.addr %s345, 4
      %s347 = scalar_lea.vmem %s7, %s346
      %p348 = scmp.lt.s32.totalorder %s20, 1
      %s349 = scalar_select %p348, %s20, 1
      %s350 = smul.addr %s349, 4
      %s351 = smul.addr %s350, 8
      %s352 = scalar_lea.vmem %s9, %s351
      %v354 = vld [vmem:[%s342] sm:$0xff]
      %v355 = vld [vmem:[%s342 + $0xc] sm:$0xff]
      %v358 = vunpack.c.l.b16 %v354
      %v359 = vunpack.c.h.b16 %v354
      %v360 = vunpack.c.l.b16 %v355
      %v361 = vunpack.c.h.b16 %v355
      %v362 = vpack.c.b16 %v360, %v358
      %v363 = vpack.c.b16 %v361, %v359
      %366 = vst [vmem:[#allocation2] sm:$0xff] %v362
      %367 = vst [vmem:[#allocation2 + $0x8] sm:$0xff] %v363
      %v368 = vld [vmem:[%s342] sm:$0xff]
      %v369 = vld [vmem:[%s342 + $0x8] sm:$0xf]
      %v370 = vld [vmem:[%s342 + $0xc] sm:$0xff]
      %v371 = vld [vmem:[%s342 + $0x14] sm:$0xf]
      %v376 = vunpack.c.l.b16 %v368
      %v377 = vunpack.c.h.b16 %v368
      %v378 = vunpack.c.l.b16 %v369
      %v379 = vunpack.c.l.b16 %v370
      %v380 = vunpack.c.h.b16 %v370
      %v381 = vunpack.c.l.b16 %v371
      %v382 = vpack.c.b16 %v379, %v376
      %v383 = vpack.c.b16 %v380, %v377
      %v384 = vpack.c.b16 %v381, %v378
      %385 = vrot.lane.b32.xlu0 %v382, 127
      %v386 = vpop.permute.xlu0 %385
      %387 = vrot.lane.b32.xlu0 %v383, 127
      %v388 = vpop.permute.xlu0 %387
      %389 = vrot.lane.b32.xlu0 %v384, 127
      %v390 = vpop.permute.xlu0 %389
      %vm391 = vcmask 1039360
      %v392 = vsel %vm391, %v386, %v388
      %v393 = vsel %vm391, %v388, %v390
      %396 = vst [vmem:[#allocation2 + $0x10] sm:$0xff] %v392
      %397 = vst [vmem:[#allocation2 + $0x18] sm:$0xff] %v393
      %v398 = vld [vmem:[%s342] sm:$0xff]
      %v399 = vld [vmem:[%s342 + $0x8] sm:$0xf]
      %v400 = vld [vmem:[%s342 + $0xc] sm:$0xff]
      %v401 = vld [vmem:[%s342 + $0x14] sm:$0xf]
      %v406 = vunpack.c.l.b16 %v398
      %v407 = vunpack.c.h.b16 %v398
      %v408 = vunpack.c.l.b16 %v399
      %v409 = vunpack.c.l.b16 %v400
      %v410 = vunpack.c.h.b16 %v400
      %v411 = vunpack.c.l.b16 %v401
      %v412 = vpack.c.b16 %v409, %v406
      %v413 = vpack.c.b16 %v410, %v407
      %v414 = vpack.c.b16 %v411, %v408
      %415 = vrot.lane.b32.xlu0 %v412, 126
      %v416 = vpop.permute.xlu0 %415
      %417 = vrot.lane.b32.xlu0 %v413, 126
      %v418 = vpop.permute.xlu0 %417
      %419 = vrot.lane.b32.xlu0 %v414, 126
      %v420 = vpop.permute.xlu0 %419
      %vm421 = vcmask 1031168
      %v422 = vsel %vm421, %v416, %v418
      %v423 = vsel %vm421, %v418, %v420
      %426 = vst [vmem:[#allocation2 + $0x20] sm:$0xff] %v422
      %427 = vst [vmem:[#allocation2 + $0x28] sm:$0xff] %v423
      %v428 = vld [vmem:[%s342] sm:$0xff]
      %v429 = vld [vmem:[%s342 + $0x8] sm:$0xf]
      %v430 = vld [vmem:[%s342 + $0xc] sm:$0xff]
      %v431 = vld [vmem:[%s342 + $0x14] sm:$0xf]
      %v436 = vunpack.c.l.b16 %v428
      %v437 = vunpack.c.h.b16 %v428
      %v438 = vunpack.c.l.b16 %v429
      %v439 = vunpack.c.l.b16 %v430
      %v440 = vunpack.c.h.b16 %v430
      %v441 = vunpack.c.l.b16 %v431
      %v442 = vpack.c.b16 %v439, %v436
      %v443 = vpack.c.b16 %v440, %v437
      %v444 = vpack.c.b16 %v441, %v438
      %445 = vrot.lane.b32.xlu0 %v442, 122
      %v446 = vpop.permute.xlu0 %445
      %447 = vrot.lane.b32.xlu0 %v443, 122
      %v448 = vpop.permute.xlu0 %447
      %449 = vrot.lane.b32.xlu0 %v444, 122
      %v450 = vpop.permute.xlu0 %449
      %vm451 = vcmask 998400
      %v452 = vsel %vm451, %v446, %v448
      %v453 = vsel %vm451, %v448, %v450
      %456 = vst [vmem:[#allocation2 + $0x30] sm:$0xff] %v452
      %457 = vst [vmem:[#allocation2 + $0x38] sm:$0xff] %v453
      %v458 = vld [vmem:[%s342] sm:$0xff]
      %v459 = vld [vmem:[%s342 + $0x8] sm:$0xf]
      %v460 = vld [vmem:[%s342 + $0xc] sm:$0xff]
      %v461 = vld [vmem:[%s342 + $0x14] sm:$0xf]
      %v466 = vunpack.c.l.b16 %v458
      %v467 = vunpack.c.h.b16 %v458
      %v468 = vunpack.c.l.b16 %v459
      %v469 = vunpack.c.l.b16 %v460
      %v470 = vunpack.c.h.b16 %v460
      %v471 = vunpack.c.l.b16 %v461
      %v472 = vpack.c.b16 %v469, %v466
      %v473 = vpack.c.b16 %v470, %v467
      %v474 = vpack.c.b16 %v471, %v468
      %475 = vrot.lane.b32.xlu0 %v472, 121
      %v476 = vpop.permute.xlu0 %475
      %477 = vrot.lane.b32.xlu0 %v473, 121
      %v478 = vpop.permute.xlu0 %477
      %479 = vrot.lane.b32.xlu0 %v474, 121
      %v480 = vpop.permute.xlu0 %479
      %vm481 = vcmask 990208
      %v482 = vsel %vm481, %v476, %v478
      %v483 = vsel %vm481, %v478, %v480
      %486 = vst [vmem:[#allocation2 + $0x40] sm:$0xff] %v482
      %487 = vst [vmem:[#allocation2 + $0x48] sm:$0xff] %v483
      %v488 = vld [vmem:[%s342] sm:$0xff]
      %v489 = vld [vmem:[%s342 + $0x8] sm:$0xf]
      %v490 = vld [vmem:[%s342 + $0xc] sm:$0xff]
      %v491 = vld [vmem:[%s342 + $0x14] sm:$0xf]
      %v496 = vunpack.c.l.b16 %v488
      %v497 = vunpack.c.h.b16 %v488
      %v498 = vunpack.c.l.b16 %v489
      %v499 = vunpack.c.l.b16 %v490
      %v500 = vunpack.c.h.b16 %v490
      %v501 = vunpack.c.l.b16 %v491
      %v502 = vpack.c.b16 %v499, %v496
      %v503 = vpack.c.b16 %v500, %v497
      %v504 = vpack.c.b16 %v501, %v498
      %505 = vrot.lane.b32.xlu0 %v502, 120
      %v506 = vpop.permute.xlu0 %505
      %507 = vrot.lane.b32.xlu0 %v503, 120
      %v508 = vpop.permute.xlu0 %507
      %509 = vrot.lane.b32.xlu0 %v504, 120
      %v510 = vpop.permute.xlu0 %509
      %vm511 = vcmask 982016
      %v512 = vsel %vm511, %v506, %v508
      %v513 = vsel %vm511, %v508, %v510
      %516 = vst [vmem:[#allocation2 + $0x50] sm:$0xff] %v512
      %517 = vst [vmem:[#allocation2 + $0x58] sm:$0xff] %v513
      %v518 = vld [vmem:[%s342] sm:$0xff]
      %v519 = vld [vmem:[%s342 + $0x8] sm:$0xf]
      %v520 = vld [vmem:[%s342 + $0xc] sm:$0xff]
      %v521 = vld [vmem:[%s342 + $0x14] sm:$0xf]
      %v526 = vunpack.c.l.b16 %v518
      %v527 = vunpack.c.h.b16 %v518
      %v528 = vunpack.c.l.b16 %v519
      %v529 = vunpack.c.l.b16 %v520
      %v530 = vunpack.c.h.b16 %v520
      %v531 = vunpack.c.l.b16 %v521
      %v532 = vpack.c.b16 %v529, %v526
      %v533 = vpack.c.b16 %v530, %v527
      %v534 = vpack.c.b16 %v531, %v528
      %535 = vrot.lane.b32.xlu0 %v532, 116
      %v536 = vpop.permute.xlu0 %535
      %537 = vrot.lane.b32.xlu0 %v533, 116
      %v538 = vpop.permute.xlu0 %537
      %539 = vrot.lane.b32.xlu0 %v534, 116
      %v540 = vpop.permute.xlu0 %539
      %vm541 = vcmask 949248
      %v542 = vsel %vm541, %v536, %v538
      %v543 = vsel %vm541, %v538, %v540
      %546 = vst [vmem:[#allocation2 + $0x60] sm:$0xff] %v542
      %547 = vst [vmem:[#allocation2 + $0x68] sm:$0xff] %v543
      %v548 = vld [vmem:[%s342] sm:$0xff]
      %v549 = vld [vmem:[%s342 + $0x8] sm:$0xf]
      %v550 = vld [vmem:[%s342 + $0xc] sm:$0xff]
      %v551 = vld [vmem:[%s342 + $0x14] sm:$0xf]
      %v556 = vunpack.c.l.b16 %v548
      %v557 = vunpack.c.h.b16 %v548
      %v558 = vunpack.c.l.b16 %v549
      %v559 = vunpack.c.l.b16 %v550
      %v560 = vunpack.c.h.b16 %v550
      %v561 = vunpack.c.l.b16 %v551
      %v562 = vpack.c.b16 %v559, %v556
      %v563 = vpack.c.b16 %v560, %v557
      %v564 = vpack.c.b16 %v561, %v558
      %565 = vrot.lane.b32.xlu0 %v562, 115
      %v566 = vpop.permute.xlu0 %565
      %567 = vrot.lane.b32.xlu0 %v563, 115
      %v568 = vpop.permute.xlu0 %567
      %569 = vrot.lane.b32.xlu0 %v564, 115
      %v570 = vpop.permute.xlu0 %569
      %vm571 = vcmask 941056
      %v572 = vsel %vm571, %v566, %v568
      %v573 = vsel %vm571, %v568, %v570
      %576 = vst [vmem:[#allocation2 + $0x70] sm:$0xff] %v572
      %577 = vst [vmem:[#allocation2 + $0x78] sm:$0xff] %v573
      %v578 = vld [vmem:[%s342] sm:$0xff]
      %v579 = vld [vmem:[%s342 + $0x8] sm:$0xf]
      %v580 = vld [vmem:[%s342 + $0xc] sm:$0xff]
      %v581 = vld [vmem:[%s342 + $0x14] sm:$0xf]
      %v586 = vunpack.c.l.b16 %v578
      %v587 = vunpack.c.h.b16 %v578
      %v588 = vunpack.c.l.b16 %v579
      %v589 = vunpack.c.l.b16 %v580
      %v590 = vunpack.c.h.b16 %v580
      %v591 = vunpack.c.l.b16 %v581
      %v592 = vpack.c.b16 %v589, %v586
      %v593 = vpack.c.b16 %v590, %v587
      %v594 = vpack.c.b16 %v591, %v588
      %595 = vrot.lane.b32.xlu0 %v592, 114
      %v596 = vpop.permute.xlu0 %595
      %597 = vrot.lane.b32.xlu0 %v593, 114
      %v598 = vpop.permute.xlu0 %597
      %599 = vrot.lane.b32.xlu0 %v594, 114
      %v600 = vpop.permute.xlu0 %599
      %vm601 = vcmask 932864
      %v602 = vsel %vm601, %v596, %v598
      %v603 = vsel %vm601, %v598, %v600
      %606 = vst [vmem:[#allocation2 + $0x80] sm:$0xff] %v602
      %607 = vst [vmem:[#allocation2 + $0x88] sm:$0xff] %v603
      %v608 = vld [vmem:[%s342] sm:$0xff]
      %v609 = vld [vmem:[%s342 + $0x8] sm:$0xf]
      %v610 = vld [vmem:[%s342 + $0xc] sm:$0xff]
      %v611 = vld [vmem:[%s342 + $0x14] sm:$0xf]
      %v616 = vunpack.c.l.b16 %v608
      %v617 = vunpack.c.h.b16 %v608
      %v618 = vunpack.c.l.b16 %v609
      %v619 = vunpack.c.l.b16 %v610
      %v620 = vunpack.c.h.b16 %v610
      %v621 = vunpack.c.l.b16 %v611
      %v622 = vpack.c.b16 %v619, %v616
      %v623 = vpack.c.b16 %v620, %v617
      %v624 = vpack.c.b16 %v621, %v618
      %625 = vrot.lane.b32.xlu0 %v622, 92
      %v626 = vpop.permute.xlu0 %625
      %627 = vrot.lane.b32.xlu0 %v623, 92
      %v628 = vpop.permute.xlu0 %627
      %629 = vrot.lane.b32.xlu0 %v624, 92
      %v630 = vpop.permute.xlu0 %629
      %vm631 = vcmask 752640
      %v632 = vsel %vm631, %v626, %v628
      %v633 = vsel %vm631, %v628, %v630
      %636 = vst [vmem:[#allocation2 + $0x90] sm:$0xff] %v632
      %637 = vst [vmem:[#allocation2 + $0x98] sm:$0xff] %v633
      %v638 = vld [vmem:[%s342] sm:$0xff]
      %v639 = vld [vmem:[%s342 + $0x8] sm:$0xf]
      %v640 = vld [vmem:[%s342 + $0xc] sm:$0xff]
      %v641 = vld [vmem:[%s342 + $0x14] sm:$0xf]
      %v646 = vunpack.c.l.b16 %v638
      %v647 = vunpack.c.h.b16 %v638
      %v648 = vunpack.c.l.b16 %v639
      %v649 = vunpack.c.l.b16 %v640
      %v650 = vunpack.c.h.b16 %v640
      %v651 = vunpack.c.l.b16 %v641
      %v652 = vpack.c.b16 %v649, %v646
      %v653 = vpack.c.b16 %v650, %v647
      %v654 = vpack.c.b16 %v651, %v648
      %655 = vrot.lane.b32.xlu0 %v652, 91
      %v656 = vpop.permute.xlu0 %655
      %657 = vrot.lane.b32.xlu0 %v653, 91
      %v658 = vpop.permute.xlu0 %657
      %659 = vrot.lane.b32.xlu0 %v654, 91
      %v660 = vpop.permute.xlu0 %659
      %vm661 = vcmask 744448
      %v662 = vsel %vm661, %v656, %v658
      %v663 = vsel %vm661, %v658, %v660
      %666 = vst [vmem:[#allocation2 + $0xa0] sm:$0xff] %v662
      %667 = vst [vmem:[#allocation2 + $0xa8] sm:$0xff] %v663
      %v668 = vld [vmem:[%s342] sm:$0xff]
      %v669 = vld [vmem:[%s342 + $0x8] sm:$0xf]
      %v670 = vld [vmem:[%s342 + $0xc] sm:$0xff]
      %v671 = vld [vmem:[%s342 + $0x14] sm:$0xf]
      %v676 = vunpack.c.l.b16 %v668
      %v677 = vunpack.c.h.b16 %v668
      %v678 = vunpack.c.l.b16 %v669
      %v679 = vunpack.c.l.b16 %v670
      %v680 = vunpack.c.h.b16 %v670
      %v681 = vunpack.c.l.b16 %v671
      %v682 = vpack.c.b16 %v679, %v676
      %v683 = vpack.c.b16 %v680, %v677
      %v684 = vpack.c.b16 %v681, %v678
      %685 = vrot.lane.b32.xlu0 %v682, 90
      %v686 = vpop.permute.xlu0 %685
      %687 = vrot.lane.b32.xlu0 %v683, 90
      %v688 = vpop.permute.xlu0 %687
      %689 = vrot.lane.b32.xlu0 %v684, 90
      %v690 = vpop.permute.xlu0 %689
      %vm691 = vcmask 736256
      %v692 = vsel %vm691, %v686, %v688
      %v693 = vsel %vm691, %v688, %v690
      %696 = vst [vmem:[#allocation2 + $0xb0] sm:$0xff] %v692
      %697 = vst [vmem:[#allocation2 + $0xb8] sm:$0xff] %v693
      %v698 = vld [vmem:[%s342] sm:$0xff]
      %v699 = vld [vmem:[%s342 + $0x8] sm:$0xf]
      %v700 = vld [vmem:[%s342 + $0xc] sm:$0xff]
      %v701 = vld [vmem:[%s342 + $0x14] sm:$0xf]
      %v706 = vunpack.c.l.b16 %v698
      %v707 = vunpack.c.h.b16 %v698
      %v708 = vunpack.c.l.b16 %v699
      %v709 = vunpack.c.l.b16 %v700
      %v710 = vunpack.c.h.b16 %v700
      %v711 = vunpack.c.l.b16 %v701
      %v712 = vpack.c.b16 %v709, %v706
      %v713 = vpack.c.b16 %v710, %v707
      %v714 = vpack.c.b16 %v711, %v708
      %715 = vrot.lane.b32.xlu0 %v712, 86
      %v716 = vpop.permute.xlu0 %715
      %717 = vrot.lane.b32.xlu0 %v713, 86
      %v718 = vpop.permute.xlu0 %717
      %719 = vrot.lane.b32.xlu0 %v714, 86
      %v720 = vpop.permute.xlu0 %719
      %vm721 = vcmask 703488
      %v722 = vsel %vm721, %v716, %v718
      %v723 = vsel %vm721, %v718, %v720
      %726 = vst [vmem:[#allocation2 + $0xc0] sm:$0xff] %v722
      %727 = vst [vmem:[#allocation2 + $0xc8] sm:$0xff] %v723
      %v728 = vld [vmem:[%s342] sm:$0xff]
      %v729 = vld [vmem:[%s342 + $0x8] sm:$0xf]
      %v730 = vld [vmem:[%s342 + $0xc] sm:$0xff]
      %v731 = vld [vmem:[%s342 + $0x14] sm:$0xf]
      %v736 = vunpack.c.l.b16 %v728
      %v737 = vunpack.c.h.b16 %v728
      %v738 = vunpack.c.l.b16 %v729
      %v739 = vunpack.c.l.b16 %v730
      %v740 = vunpack.c.h.b16 %v730
      %v741 = vunpack.c.l.b16 %v731
      %v742 = vpack.c.b16 %v739, %v736
      %v743 = vpack.c.b16 %v740, %v737
      %v744 = vpack.c.b16 %v741, %v738
      %745 = vrot.lane.b32.xlu0 %v742, 85
      %v746 = vpop.permute.xlu0 %745
      %747 = vrot.lane.b32.xlu0 %v743, 85
      %v748 = vpop.permute.xlu0 %747
      %749 = vrot.lane.b32.xlu0 %v744, 85
      %v750 = vpop.permute.xlu0 %749
      %vm751 = vcmask 695296
      %v752 = vsel %vm751, %v746, %v748
      %v753 = vsel %vm751, %v748, %v750
      %756 = vst [vmem:[#allocation2 + $0xd0] sm:$0xff] %v752
      %757 = vst [vmem:[#allocation2 + $0xd8] sm:$0xff] %v753
      %v758 = vld [vmem:[%s342] sm:$0xff]
      %v759 = vld [vmem:[%s342 + $0x8] sm:$0xf]
      %v760 = vld [vmem:[%s342 + $0xc] sm:$0xff]
      %v761 = vld [vmem:[%s342 + $0x14] sm:$0xf]
      %v766 = vunpack.c.l.b16 %v758
      %v767 = vunpack.c.h.b16 %v758
      %v768 = vunpack.c.l.b16 %v759
      %v769 = vunpack.c.l.b16 %v760
      %v770 = vunpack.c.h.b16 %v760
      %v771 = vunpack.c.l.b16 %v761
      %v772 = vpack.c.b16 %v769, %v766
      %v773 = vpack.c.b16 %v770, %v767
      %v774 = vpack.c.b16 %v771, %v768
      %775 = vrot.lane.b32.xlu0 %v772, 84
      %v776 = vpop.permute.xlu0 %775
      %777 = vrot.lane.b32.xlu0 %v773, 84
      %v778 = vpop.permute.xlu0 %777
      %779 = vrot.lane.b32.xlu0 %v774, 84
      %v780 = vpop.permute.xlu0 %779
      %vm781 = vcmask 687104
      %v782 = vsel %vm781, %v776, %v778
      %v783 = vsel %vm781, %v778, %v780
      %786 = vst [vmem:[#allocation2 + $0xe0] sm:$0xff] %v782
      %787 = vst [vmem:[#allocation2 + $0xe8] sm:$0xff] %v783
      %v788 = vld [vmem:[%s342] sm:$0xff]
      %v789 = vld [vmem:[%s342 + $0x8] sm:$0xf]
      %v790 = vld [vmem:[%s342 + $0xc] sm:$0xff]
      %v791 = vld [vmem:[%s342 + $0x14] sm:$0xf]
      %v796 = vunpack.c.l.b16 %v788
      %v797 = vunpack.c.h.b16 %v788
      %v798 = vunpack.c.l.b16 %v789
      %v799 = vunpack.c.l.b16 %v790
      %v800 = vunpack.c.h.b16 %v790
      %v801 = vunpack.c.l.b16 %v791
      %v802 = vpack.c.b16 %v799, %v796
      %v803 = vpack.c.b16 %v800, %v797
      %v804 = vpack.c.b16 %v801, %v798
      %805 = vrot.lane.b32.xlu0 %v802, 80
      %v806 = vpop.permute.xlu0 %805
      %807 = vrot.lane.b32.xlu0 %v803, 80
      %v808 = vpop.permute.xlu0 %807
      %809 = vrot.lane.b32.xlu0 %v804, 80
      %v810 = vpop.permute.xlu0 %809
      %vm811 = vcmask 654336
      %v812 = vsel %vm811, %v806, %v808
      %v813 = vsel %vm811, %v808, %v810
      %816 = vst [vmem:[#allocation2 + $0xf0] sm:$0xff] %v812
      %817 = vst [vmem:[#allocation2 + $0xf8] sm:$0xff] %v813
      %v818 = vld [vmem:[%s342] sm:$0xff]
      %v819 = vld [vmem:[%s342 + $0x8] sm:$0xf]
      %v820 = vld [vmem:[%s342 + $0xc] sm:$0xff]
      %v821 = vld [vmem:[%s342 + $0x14] sm:$0xf]
      %v826 = vunpack.c.l.b16 %v818
      %v827 = vunpack.c.h.b16 %v818
      %v828 = vunpack.c.l.b16 %v819
      %v829 = vunpack.c.l.b16 %v820
      %v830 = vunpack.c.h.b16 %v820
      %v831 = vunpack.c.l.b16 %v821
      %v832 = vpack.c.b16 %v829, %v826
      %v833 = vpack.c.b16 %v830, %v827
      %v834 = vpack.c.b16 %v831, %v828
      %835 = vrot.lane.b32.xlu0 %v832, 79
      %v836 = vpop.permute.xlu0 %835
      %837 = vrot.lane.b32.xlu0 %v833, 79
      %v838 = vpop.permute.xlu0 %837
      %839 = vrot.lane.b32.xlu0 %v834, 79
      %v840 = vpop.permute.xlu0 %839
      %vm841 = vcmask 646144
      %v842 = vsel %vm841, %v836, %v838
      %v843 = vsel %vm841, %v838, %v840
      %846 = vst [vmem:[#allocation2 + $0x100] sm:$0xff] %v842
      %847 = vst [vmem:[#allocation2 + $0x108] sm:$0xff] %v843
      %v848 = vld [vmem:[%s342] sm:$0xff]
      %v849 = vld [vmem:[%s342 + $0x8] sm:$0xf]
      %v850 = vld [vmem:[%s342 + $0xc] sm:$0xff]
      %v851 = vld [vmem:[%s342 + $0x14] sm:$0xf]
      %v856 = vunpack.c.l.b16 %v848
      %v857 = vunpack.c.h.b16 %v848
      %v858 = vunpack.c.l.b16 %v849
      %v859 = vunpack.c.l.b16 %v850
      %v860 = vunpack.c.h.b16 %v850
      %v861 = vunpack.c.l.b16 %v851
      %v862 = vpack.c.b16 %v859, %v856
      %v863 = vpack.c.b16 %v860, %v857
      %v864 = vpack.c.b16 %v861, %v858
      %865 = vrot.lane.b32.xlu0 %v862, 78
      %v866 = vpop.permute.xlu0 %865
      %867 = vrot.lane.b32.xlu0 %v863, 78
      %v868 = vpop.permute.xlu0 %867
      %869 = vrot.lane.b32.xlu0 %v864, 78
      %v870 = vpop.permute.xlu0 %869
      %vm871 = vcmask 637952
      %v872 = vsel %vm871, %v866, %v868
      %v873 = vsel %vm871, %v868, %v870
      %876 = vst [vmem:[#allocation2 + $0x110] sm:$0xff] %v872
      %877 = vst [vmem:[#allocation2 + $0x118] sm:$0xff] %v873
      %v878 = vld [vmem:[%s342] sm:$0xff]
      %v879 = vld [vmem:[%s342 + $0x8] sm:$0xf]
      %v880 = vld [vmem:[%s342 + $0xc] sm:$0xff]
      %v881 = vld [vmem:[%s342 + $0x14] sm:$0xf]
      %v886 = vunpack.c.l.b16 %v878
      %v887 = vunpack.c.h.b16 %v878
      %v888 = vunpack.c.l.b16 %v879
      %v889 = vunpack.c.l.b16 %v880
      %v890 = vunpack.c.h.b16 %v880
      %v891 = vunpack.c.l.b16 %v881
      %v892 = vpack.c.b16 %v889, %v886
      %v893 = vpack.c.b16 %v890, %v887
      %v894 = vpack.c.b16 %v891, %v888
      %895 = vrot.lane.b32.xlu0 %v892, 56
      %v896 = vpop.permute.xlu0 %895
      %897 = vrot.lane.b32.xlu0 %v893, 56
      %v898 = vpop.permute.xlu0 %897
      %899 = vrot.lane.b32.xlu0 %v894, 56
      %v900 = vpop.permute.xlu0 %899
      %vm901 = vcmask 457728
      %v902 = vsel %vm901, %v896, %v898
      %v903 = vsel %vm901, %v898, %v900
      %906 = vst [vmem:[#allocation2 + $0x120] sm:$0xff] %v902
      %907 = vst [vmem:[#allocation2 + $0x128] sm:$0xff] %v903
      %v908 = vld [vmem:[%s342] sm:$0xff]
      %v909 = vld [vmem:[%s342 + $0x8] sm:$0xf]
      %v910 = vld [vmem:[%s342 + $0xc] sm:$0xff]
      %v911 = vld [vmem:[%s342 + $0x14] sm:$0xf]
      %v916 = vunpack.c.l.b16 %v908
      %v917 = vunpack.c.h.b16 %v908
      %v918 = vunpack.c.l.b16 %v909
      %v919 = vunpack.c.l.b16 %v910
      %v920 = vunpack.c.h.b16 %v910
      %v921 = vunpack.c.l.b16 %v911
      %v922 = vpack.c.b16 %v919, %v916
      %v923 = vpack.c.b16 %v920, %v917
      %v924 = vpack.c.b16 %v921, %v918
      %925 = vrot.lane.b32.xlu0 %v922, 55
      %v926 = vpop.permute.xlu0 %925
      %927 = vrot.lane.b32.xlu0 %v923, 55
      %v928 = vpop.permute.xlu0 %927
      %929 = vrot.lane.b32.xlu0 %v924, 55
      %v930 = vpop.permute.xlu0 %929
      %vm931 = vcmask 449536
      %v932 = vsel %vm931, %v926, %v928
      %v933 = vsel %vm931, %v928, %v930
      %936 = vst [vmem:[#allocation2 + $0x130] sm:$0xff] %v932
      %937 = vst [vmem:[#allocation2 + $0x138] sm:$0xff] %v933
      %v938 = vld [vmem:[%s342] sm:$0xff]
      %v939 = vld [vmem:[%s342 + $0x8] sm:$0xf]
      %v940 = vld [vmem:[%s342 + $0xc] sm:$0xff]
      %v941 = vld [vmem:[%s342 + $0x14] sm:$0xf]
      %v946 = vunpack.c.l.b16 %v938
      %v947 = vunpack.c.h.b16 %v938
      %v948 = vunpack.c.l.b16 %v939
      %v949 = vunpack.c.l.b16 %v940
      %v950 = vunpack.c.h.b16 %v940
      %v951 = vunpack.c.l.b16 %v941
      %v952 = vpack.c.b16 %v949, %v946
      %v953 = vpack.c.b16 %v950, %v947
      %v954 = vpack.c.b16 %v951, %v948
      %955 = vrot.lane.b32.xlu0 %v952, 54
      %v956 = vpop.permute.xlu0 %955
      %957 = vrot.lane.b32.xlu0 %v953, 54
      %v958 = vpop.permute.xlu0 %957
      %959 = vrot.lane.b32.xlu0 %v954, 54
      %v960 = vpop.permute.xlu0 %959
      %vm961 = vcmask 441344
      %v962 = vsel %vm961, %v956, %v958
      %v963 = vsel %vm961, %v958, %v960
      %966 = vst [vmem:[#allocation2 + $0x140] sm:$0xff] %v962
      %967 = vst [vmem:[#allocation2 + $0x148] sm:$0xff] %v963
      %v968 = vld [vmem:[%s342] sm:$0xff]
      %v969 = vld [vmem:[%s342 + $0x8] sm:$0xf]
      %v970 = vld [vmem:[%s342 + $0xc] sm:$0xff]
      %v971 = vld [vmem:[%s342 + $0x14] sm:$0xf]
      %v976 = vunpack.c.l.b16 %v968
      %v977 = vunpack.c.h.b16 %v968
      %v978 = vunpack.c.l.b16 %v969
      %v979 = vunpack.c.l.b16 %v970
      %v980 = vunpack.c.h.b16 %v970
      %v981 = vunpack.c.l.b16 %v971
      %v982 = vpack.c.b16 %v979, %v976
      %v983 = vpack.c.b16 %v980, %v977
      %v984 = vpack.c.b16 %v981, %v978
      %985 = vrot.lane.b32.xlu0 %v982, 50
      %v986 = vpop.permute.xlu0 %985
      %987 = vrot.lane.b32.xlu0 %v983, 50
      %v988 = vpop.permute.xlu0 %987
      %989 = vrot.lane.b32.xlu0 %v984, 50
      %v990 = vpop.permute.xlu0 %989
      %vm991 = vcmask 408576
      %v992 = vsel %vm991, %v986, %v988
      %v993 = vsel %vm991, %v988, %v990
      %996 = vst [vmem:[#allocation2 + $0x150] sm:$0xff] %v992
      %997 = vst [vmem:[#allocation2 + $0x158] sm:$0xff] %v993
      %v998 = vld [vmem:[%s342] sm:$0xff]
      %v999 = vld [vmem:[%s342 + $0x8] sm:$0xf]
      %v1000 = vld [vmem:[%s342 + $0xc] sm:$0xff]
      %v1001 = vld [vmem:[%s342 + $0x14] sm:$0xf]
      %v1006 = vunpack.c.l.b16 %v998
      %v1007 = vunpack.c.h.b16 %v998
      %v1008 = vunpack.c.l.b16 %v999
      %v1009 = vunpack.c.l.b16 %v1000
      %v1010 = vunpack.c.h.b16 %v1000
      %v1011 = vunpack.c.l.b16 %v1001
      %v1012 = vpack.c.b16 %v1009, %v1006
      %v1013 = vpack.c.b16 %v1010, %v1007
      %v1014 = vpack.c.b16 %v1011, %v1008
      %1015 = vrot.lane.b32.xlu0 %v1012, 49
      %v1016 = vpop.permute.xlu0 %1015
      %1017 = vrot.lane.b32.xlu0 %v1013, 49
      %v1018 = vpop.permute.xlu0 %1017
      %1019 = vrot.lane.b32.xlu0 %v1014, 49
      %v1020 = vpop.permute.xlu0 %1019
      %vm1021 = vcmask 400384
      %v1022 = vsel %vm1021, %v1016, %v1018
      %v1023 = vsel %vm1021, %v1018, %v1020
      %1026 = vst [vmem:[#allocation2 + $0x160] sm:$0xff] %v1022
      %1027 = vst [vmem:[#allocation2 + $0x168] sm:$0xff] %v1023
      %v1028 = vld [vmem:[%s342] sm:$0xff]
      %v1029 = vld [vmem:[%s342 + $0x8] sm:$0xf]
      %v1030 = vld [vmem:[%s342 + $0xc] sm:$0xff]
      %v1031 = vld [vmem:[%s342 + $0x14] sm:$0xf]
      %v1036 = vunpack.c.l.b16 %v1028
      %v1037 = vunpack.c.h.b16 %v1028
      %v1038 = vunpack.c.l.b16 %v1029
      %v1039 = vunpack.c.l.b16 %v1030
      %v1040 = vunpack.c.h.b16 %v1030
      %v1041 = vunpack.c.l.b16 %v1031
      %v1042 = vpack.c.b16 %v1039, %v1036
      %v1043 = vpack.c.b16 %v1040, %v1037
      %v1044 = vpack.c.b16 %v1041, %v1038
      %1045 = vrot.lane.b32.xlu0 %v1042, 48
      %v1046 = vpop.permute.xlu0 %1045
      %1047 = vrot.lane.b32.xlu0 %v1043, 48
      %v1048 = vpop.permute.xlu0 %1047
      %1049 = vrot.lane.b32.xlu0 %v1044, 48
      %v1050 = vpop.permute.xlu0 %1049
      %vm1051 = vcmask 392192
      %v1052 = vsel %vm1051, %v1046, %v1048
      %v1053 = vsel %vm1051, %v1048, %v1050
      %1056 = vst [vmem:[#allocation2 + $0x170] sm:$0xff] %v1052
      %1057 = vst [vmem:[#allocation2 + $0x178] sm:$0xff] %v1053
      %v1058 = vld [vmem:[%s342] sm:$0xff]
      %v1059 = vld [vmem:[%s342 + $0x8] sm:$0xf]
      %v1060 = vld [vmem:[%s342 + $0xc] sm:$0xff]
      %v1061 = vld [vmem:[%s342 + $0x14] sm:$0xf]
      %v1066 = vunpack.c.l.b16 %v1058
      %v1067 = vunpack.c.h.b16 %v1058
      %v1068 = vunpack.c.l.b16 %v1059
      %v1069 = vunpack.c.l.b16 %v1060
      %v1070 = vunpack.c.h.b16 %v1060
      %v1071 = vunpack.c.l.b16 %v1061
      %v1072 = vpack.c.b16 %v1069, %v1066
      %v1073 = vpack.c.b16 %v1070, %v1067
      %v1074 = vpack.c.b16 %v1071, %v1068
      %1075 = vrot.lane.b32.xlu0 %v1072, 44
      %v1076 = vpop.permute.xlu0 %1075
      %1077 = vrot.lane.b32.xlu0 %v1073, 44
      %v1078 = vpop.permute.xlu0 %1077
      %1079 = vrot.lane.b32.xlu0 %v1074, 44
      %v1080 = vpop.permute.xlu0 %1079
      %vm1081 = vcmask 359424
      %v1082 = vsel %vm1081, %v1076, %v1078
      %v1083 = vsel %vm1081, %v1078, %v1080
      %1086 = vst [vmem:[#allocation2 + $0x180] sm:$0xff] %v1082
      %1087 = vst [vmem:[#allocation2 + $0x188] sm:$0xff] %v1083
      %v1088 = vld [vmem:[%s342] sm:$0xff]
      %v1089 = vld [vmem:[%s342 + $0x8] sm:$0xf]
      %v1090 = vld [vmem:[%s342 + $0xc] sm:$0xff]
      %v1091 = vld [vmem:[%s342 + $0x14] sm:$0xf]
      %v1096 = vunpack.c.l.b16 %v1088
      %v1097 = vunpack.c.h.b16 %v1088
      %v1098 = vunpack.c.l.b16 %v1089
      %v1099 = vunpack.c.l.b16 %v1090
      %v1100 = vunpack.c.h.b16 %v1090
      %v1101 = vunpack.c.l.b16 %v1091
      %v1102 = vpack.c.b16 %v1099, %v1096
      %v1103 = vpack.c.b16 %v1100, %v1097
      %v1104 = vpack.c.b16 %v1101, %v1098
      %1105 = vrot.lane.b32.xlu0 %v1102, 43
      %v1106 = vpop.permute.xlu0 %1105
      %1107 = vrot.lane.b32.xlu0 %v1103, 43
      %v1108 = vpop.permute.xlu0 %1107
      %1109 = vrot.lane.b32.xlu0 %v1104, 43
      %v1110 = vpop.permute.xlu0 %1109
      %vm1111 = vcmask 351232
      %v1112 = vsel %vm1111, %v1106, %v1108
      %v1113 = vsel %vm1111, %v1108, %v1110
      %1116 = vst [vmem:[#allocation2 + $0x190] sm:$0xff] %v1112
      %1117 = vst [vmem:[#allocation2 + $0x198] sm:$0xff] %v1113
      %v1118 = vld [vmem:[%s342] sm:$0xff]
      %v1119 = vld [vmem:[%s342 + $0x8] sm:$0xf]
      %v1120 = vld [vmem:[%s342 + $0xc] sm:$0xff]
      %v1121 = vld [vmem:[%s342 + $0x14] sm:$0xf]
      %v1126 = vunpack.c.l.b16 %v1118
      %v1127 = vunpack.c.h.b16 %v1118
      %v1128 = vunpack.c.l.b16 %v1119
      %v1129 = vunpack.c.l.b16 %v1120
      %v1130 = vunpack.c.h.b16 %v1120
      %v1131 = vunpack.c.l.b16 %v1121
      %v1132 = vpack.c.b16 %v1129, %v1126
      %v1133 = vpack.c.b16 %v1130, %v1127
      %v1134 = vpack.c.b16 %v1131, %v1128
      %1135 = vrot.lane.b32.xlu0 %v1132, 42
      %v1136 = vpop.permute.xlu0 %1135
      %1137 = vrot.lane.b32.xlu0 %v1133, 42
      %v1138 = vpop.permute.xlu0 %1137
      %1139 = vrot.lane.b32.xlu0 %v1134, 42
      %v1140 = vpop.permute.xlu0 %1139
      %vm1141 = vcmask 343040
      %v1142 = vsel %vm1141, %v1136, %v1138
      %v1143 = vsel %vm1141, %v1138, %v1140
      %1146 = vst [vmem:[#allocation2 + $0x1a0] sm:$0xff] %v1142
      %1147 = vst [vmem:[#allocation2 + $0x1a8] sm:$0xff] %v1143
      %v1148 = vld [vmem:[%s1] sm:$0xff]
      %v1149 = vld [vmem:[%s1 + $0x8] sm:$0xff]
      %v1150 = vld [vmem:[%s1 + $0x10] sm:$0xff]
      %v1151 = vld [vmem:[%s1 + $0x18] sm:$0xff]
      %v1152 = vld [vmem:[#allocation2] sm:$0xff]
      %v1153 = vld [vmem:[#allocation2 + $0x8] sm:$0xff]
      %v1154 = vld [vmem:[#allocation2 + $0x10] sm:$0xff]
      %v1155 = vld [vmem:[#allocation2 + $0x18] sm:$0xff]
      %v1156 = vld [vmem:[#allocation2 + $0x20] sm:$0xff]
      %v1157 = vld [vmem:[#allocation2 + $0x28] sm:$0xff]
      %v1158 = vld [vmem:[#allocation2 + $0x30] sm:$0xff]
      %v1159 = vld [vmem:[#allocation2 + $0x38] sm:$0xff]
      %v1160 = vld [vmem:[#allocation2 + $0x40] sm:$0xff]
      %v1161 = vld [vmem:[#allocation2 + $0x48] sm:$0xff]
      %v1162 = vld [vmem:[#allocation2 + $0x50] sm:$0xff]
      %v1163 = vld [vmem:[#allocation2 + $0x58] sm:$0xff]
      %v1164 = vld [vmem:[#allocation2 + $0x60] sm:$0xff]
      %v1165 = vld [vmem:[#allocation2 + $0x68] sm:$0xff]
      %v1166 = vld [vmem:[#allocation2 + $0x70] sm:$0xff]
      %v1167 = vld [vmem:[#allocation2 + $0x78] sm:$0xff]
      %v1168 = vld [vmem:[#allocation2 + $0x80] sm:$0xff]
      %v1169 = vld [vmem:[#allocation2 + $0x88] sm:$0xff]
      %v1170 = vld [vmem:[#allocation2 + $0x90] sm:$0xff]
      %v1171 = vld [vmem:[#allocation2 + $0x98] sm:$0xff]
      %v1172 = vld [vmem:[#allocation2 + $0xa0] sm:$0xff]
      %v1173 = vld [vmem:[#allocation2 + $0xa8] sm:$0xff]
      %v1174 = vld [vmem:[#allocation2 + $0xb0] sm:$0xff]
      %v1175 = vld [vmem:[#allocation2 + $0xb8] sm:$0xff]
      %v1176 = vld [vmem:[#allocation2 + $0xc0] sm:$0xff]
      %v1177 = vld [vmem:[#allocation2 + $0xc8] sm:$0xff]
      %v1178 = vld [vmem:[#allocation2 + $0xd0] sm:$0xff]
      %v1179 = vld [vmem:[#allocation2 + $0xd8] sm:$0xff]
      %v1180 = vld [vmem:[#allocation2 + $0xe0] sm:$0xff]
      %v1181 = vld [vmem:[#allocation2 + $0xe8] sm:$0xff]
      %v1182 = vld [vmem:[#allocation2 + $0xf0] sm:$0xff]
      %v1183 = vld [vmem:[#allocation2 + $0xf8] sm:$0xff]
      %v1184 = vld [vmem:[#allocation2 + $0x100] sm:$0xff]
      %v1185 = vld [vmem:[#allocation2 + $0x108] sm:$0xff]
      %v1186 = vld [vmem:[#allocation2 + $0x110] sm:$0xff]
      %v1187 = vld [vmem:[#allocation2 + $0x118] sm:$0xff]
      %v1188 = vld [vmem:[#allocation2 + $0x120] sm:$0xff]
      %v1189 = vld [vmem:[#allocation2 + $0x128] sm:$0xff]
      %v1190 = vld [vmem:[#allocation2 + $0x130] sm:$0xff]
      %v1191 = vld [vmem:[#allocation2 + $0x138] sm:$0xff]
      %v1192 = vld [vmem:[#allocation2 + $0x140] sm:$0xff]
      %v1193 = vld [vmem:[#allocation2 + $0x148] sm:$0xff]
      %v1194 = vld [vmem:[#allocation2 + $0x150] sm:$0xff]
      %v1195 = vld [vmem:[#allocation2 + $0x158] sm:$0xff]
      %v1196 = vld [vmem:[#allocation2 + $0x160] sm:$0xff]
      %v1197 = vld [vmem:[#allocation2 + $0x168] sm:$0xff]
      %v1198 = vld [vmem:[#allocation2 + $0x170] sm:$0xff]
      %v1199 = vld [vmem:[#allocation2 + $0x178] sm:$0xff]
      %v1200 = vld [vmem:[#allocation2 + $0x180] sm:$0xff]
      %v1201 = vld [vmem:[#allocation2 + $0x188] sm:$0xff]
      %v1202 = vld [vmem:[#allocation2 + $0x190] sm:$0xff]
      %v1203 = vld [vmem:[#allocation2 + $0x198] sm:$0xff]
      %v1204 = vld [vmem:[#allocation2 + $0x1a0] sm:$0xff]
      %v1205 = vld [vmem:[#allocation2 + $0x1a8] sm:$0xff]
      %v1206 = vld [vmem:[%s2] sm:$0xff]
      %v1207 = vld [vmem:[%s2 + $0x8] sm:$0xff]
      %1209 = vset.pattern.permute.xlu0 0
      %1210 = vperm.xlu0 %1209, %v1206
      %v1211 = vpop.permute.xlu0 %1210
      %1214 = vset.pattern.permute.xlu0 0
      %1215 = vperm.xlu0 %1214, %v1207
      %v1216 = vpop.permute.xlu0 %1215
      %v1222 = vunpack.c.l.b16 %v1148
      %v1223 = vunpack.c.h.b16 %v1148
      %v1224 = vunpack.c.l.b16 %v1149
      %v1225 = vunpack.c.h.b16 %v1149
      %v1226 = vunpack.c.l.b16 %v1150
      %v1227 = vunpack.c.h.b16 %v1150
      %v1228 = vunpack.c.l.b16 %v1151
      %v1229 = vunpack.c.h.b16 %v1151
      %v1230 = vpack.c.b16 %v1226, %v1222
      %v1231 = vpack.c.b16 %v1227, %v1223
      %v1232 = vpack.c.b16 %v1228, %v1224
      %v1233 = vpack.c.b16 %v1229, %v1225
      %vm1237 = vcmask 392192
      %v1239 = vsel %vm1237, %v1233, 0
      %1241 = vmatprep.subr.bf16.mxu0 %v1153
      %1242 = vmatpush1.bf16.msra.mxu0 %v1152
      %1243 = vmatprep.subr.bf16.mxu0 %v1155
      %1244 = vmatpush1.bf16.msra.mxu0 %v1154
      %1245 = vmatprep.subr.bf16.mxu0 %v1157
      %1246 = vmatpush1.bf16.msra.mxu0 %v1156
      %1247 = vmatprep.subr.bf16.mxu0 %v1159
      %1248 = vmatpush1.bf16.msra.mxu0 %v1158
      %1249 = vmatprep.subr.bf16.mxu0 %v1161
      %1250 = vmatpush1.bf16.msra.mxu0 %v1160
      %1251 = vmatprep.subr.bf16.mxu0 %v1163
      %1252 = vmatpush1.bf16.msra.mxu0 %v1162
      %1253 = vmatprep.subr.bf16.mxu0 %v1165
      %1254 = vmatpush1.bf16.msra.mxu0 %v1164
      %1255 = vmatprep.subr.bf16.mxu0 %v1167
      %1256 = vmatpush1.bf16.msra.mxu0 %v1166
      %1257 = vmatprep.subr.bf16.mxu0 %v1169
      %1258 = vmatpush1.bf16.msra.mxu0 %v1168
      %1259 = vmatprep.subr.bf16.mxu0 %v1171
      %1260 = vmatpush1.bf16.msra.mxu0 %v1170
      %1261 = vmatprep.subr.bf16.mxu0 %v1173
      %1262 = vmatpush1.bf16.msra.mxu0 %v1172
      %1263 = vmatprep.subr.bf16.mxu0 %v1175
      %1264 = vmatpush1.bf16.msra.mxu0 %v1174
      %1265 = vmatprep.subr.bf16.mxu0 %v1177
      %1266 = vmatpush1.bf16.msra.mxu0 %v1176
      %1267 = vmatprep.subr.bf16.mxu0 %v1179
      %1268 = vmatpush1.bf16.msra.mxu0 %v1178
      %1269 = vmatprep.subr.bf16.mxu0 %v1181
      %1270 = vmatpush1.bf16.msra.mxu0 %v1180
      %1271 = vmatprep.subr.bf16.mxu0 %v1183
      %1272 = vmatpush1.bf16.msra.mxu0 %v1182
      %1273 = vmatprep.mubr.bf16.mxu0 %v1231
      %1274 = vmatmul.mubr.bf16.gmra.mrb[0].mxu0 %v1230
      %v1275 = vpop.f32.mrb[0].mxu0
      %v1276 = vadd.f32 %v1211, %v1275
      %v1277 = vpop.f32.mrb[0].mxu0
      %v1278 = vadd.f32 %v1211, %v1277
      %v1279 = vpop.f32.mrb[0].mxu0
      %v1280 = vadd.f32 %v1216, %v1279
      %v1281 = vpop.f32.mrb[0].mxu0
      %v1282 = vadd.f32 %v1216, %v1281
      %1283 = vdwg.mxu0
      %1284 = vmatprep.subr.bf16.mxu0 %v1185
      %1285 = vmatpush1.bf16.msra.mxu0 %v1184
      %1286 = vmatprep.subr.bf16.mxu0 %v1187
      %1287 = vmatpush1.bf16.msra.mxu0 %v1186
      %1288 = vmatprep.subr.bf16.mxu0 %v1189
      %1289 = vmatpush1.bf16.msra.mxu0 %v1188
      %1290 = vmatprep.subr.bf16.mxu0 %v1191
      %1291 = vmatpush1.bf16.msra.mxu0 %v1190
      %1292 = vmatprep.subr.bf16.mxu0 %v1193
      %1293 = vmatpush1.bf16.msra.mxu0 %v1192
      %1294 = vmatprep.subr.bf16.mxu0 %v1195
      %1295 = vmatpush1.bf16.msra.mxu0 %v1194
      %1296 = vmatprep.subr.bf16.mxu0 %v1197
      %1297 = vmatpush1.bf16.msra.mxu0 %v1196
      %1298 = vmatprep.subr.bf16.mxu0 %v1199
      %1299 = vmatpush1.bf16.msra.mxu0 %v1198
      %1300 = vmatprep.subr.bf16.mxu0 %v1201
      %1301 = vmatpush1.bf16.msra.mxu0 %v1200
      %1302 = vmatprep.subr.bf16.mxu0 %v1203
      %1303 = vmatpush1.bf16.msra.mxu0 %v1202
      %1304 = vmatprep.subr.bf16.mxu0 %v1205
      %1305 = vmatpush1.bf16.msra.mxu0 %v1204
      %1306 = vmatprep.subr.bf16.mxu0 0
      %1307 = vmatpush1.bf16.msra.mxu0 0
      %1308 = vmatprep.subr.bf16.mxu0 0
      %1309 = vmatpush1.bf16.msra.mxu0 0
      %1310 = vmatprep.subr.bf16.mxu0 0
      %1311 = vmatpush1.bf16.msra.mxu0 0
      %1312 = vmatprep.subr.bf16.mxu0 0
      %1313 = vmatpush1.bf16.msra.mxu0 0
      %1314 = vmatprep.subr.bf16.mxu0 0
      %1315 = vmatpush1.bf16.msra.mxu0 0
      %1316 = vmatprep.mubr.bf16.mxu0 %v1239
      %1317 = vmatmul.mubr.bf16.gmra.mrb[0].mxu0 %v1232
      %v1318 = vpop.f32.mrb[0].mxu0
      %v1319 = vadd.f32 %v1276, %v1318
      %v1320 = vpop.f32.mrb[0].mxu0
      %v1321 = vadd.f32 %v1278, %v1320
      %v1322 = vpop.f32.mrb[0].mxu0
      %v1323 = vadd.f32 %v1280, %v1322
      %v1324 = vpop.f32.mrb[0].mxu0
      %v1325 = vadd.f32 %v1282, %v1324
      %1326 = vdwg.mxu0
      %v1327 = vld [vmem:[%s6] sm:$0x3]
      %v1329 = vlaneseq
      %v1330 = vshrl.u32 %v1329, 7
      %v1331 = vsub.s32 0, %v1330
      %v1332 = vrot.slane %v1327, %v1331
      %v1333 = vlaneseq
      %v1334 = vshrl.u32 %v1333, 7
      %v1335 = vsub.s32 1, %v1334
      %v1336 = vrot.slane %v1327, %v1335
      %v1339 = vmul.f32 %v1319, %v1332
      %v1340 = vmul.f32 %v1321, %v1336
      %v1341 = vmul.f32 %v1323, %v1332
      %v1342 = vmul.f32 %v1325, %v1336
      %v1343 = vadd.f32 %v1339, %v1340
      %1344 = vadd.xlane.f32.xlu0 %v1343
      %v1345 = vpop.xlane.xlu0 %1344
      %v1346 = vadd.f32 %v1341, %v1342
      %1347 = vadd.xlane.f32.xlu0 %v1346
      %v1348 = vpop.xlane.xlu0 %1347
      %v1349 = vmul.f32 %v1339, %v1319
      %v1350 = vmul.f32 %v1340, %v1321
      %v1351 = vmul.f32 %v1341, %v1323
      %v1352 = vmul.f32 %v1342, %v1325
      %v1353 = vadd.f32 %v1349, %v1350
      %1354 = vadd.xlane.f32.xlu0 %v1353
      %v1355 = vpop.xlane.xlu0 %1354
      %v1356 = vadd.f32 %v1351, %v1352
      %1357 = vadd.xlane.f32.xlu0 %v1356
      %v1358 = vpop.xlane.xlu0 %1357
      %v1359 = vld [vmem:[%s5] sm:$0xff]
      %v1360 = vld [vmem:[%s5 + $0x8] sm:$0xff]
      %vm1361 = vcmask 130048
      %v1363 = vsel %vm1361, %v1359, 0
      %v1366 = vsel %vm1361, %v1360, 0
      %1368 = vmatprep.subr.mxu0 0.0
      %1369 = vmatpush1.msra.mxu0 %v1345
      %1370 = vmatprep.subr.mxu0 0.0
      %1371 = vmatpush1.msra.mxu0 %v1348
      %1372 = vmatprep.subr.mxu0 0.0
      %1373 = vmatpush1.msra.mxu0 0.0
      %1374 = vmatprep.subr.mxu0 0.0
      %1375 = vmatpush1.msra.mxu0 0.0
      %1376 = vmatprep.subr.mxu0 0.0
      %1377 = vmatpush1.msra.mxu0 0.0
      %1378 = vmatprep.subr.mxu0 0.0
      %1379 = vmatpush1.msra.mxu0 0.0
      %1380 = vmatprep.subr.mxu0 0.0
      %1381 = vmatpush1.msra.mxu0 0.0
      %1382 = vmatprep.subr.mxu0 0.0
      %1383 = vmatpush1.msra.mxu0 0.0
      %1384 = vmatprep.subr.mxu0 0.0
      %1385 = vmatpush1.msra.mxu0 0.0
      %1386 = vmatprep.subr.mxu0 0.0
      %1387 = vmatpush1.msra.mxu0 0.0
      %1388 = vmatprep.subr.mxu0 0.0
      %1389 = vmatpush1.msra.mxu0 0.0
      %1390 = vmatprep.subr.mxu0 0.0
      %1391 = vmatpush1.msra.mxu0 0.0
      %1392 = vmatprep.subr.mxu0 0.0
      %1393 = vmatpush1.msra.mxu0 0.0
      %1394 = vmatprep.subr.mxu0 0.0
      %1395 = vmatpush1.msra.mxu0 0.0
      %1396 = vmatprep.subr.mxu0 0.0
      %1397 = vmatpush1.msra.mxu0 0.0
      %1398 = vmatprep.subr.mxu0 0.0
      %1399 = vmatpush1.msra.mxu0 0.0
      %1400 = vmatprep.subr.mxu0 0.0
      %1401 = vmatpush1.msra.mxu0 0.0
      %1402 = vmatprep.subr.mxu0 0.0
      %1403 = vmatpush1.msra.mxu0 0.0
      %1404 = vmatprep.subr.mxu0 0.0
      %1405 = vmatpush1.msra.mxu0 0.0
      %1406 = vmatprep.subr.mxu0 0.0
      %1407 = vmatpush1.msra.mxu0 0.0
      %1408 = vmatprep.subr.mxu0 0.0
      %1409 = vmatpush1.msra.mxu0 0.0
      %1410 = vmatprep.subr.mxu0 0.0
      %1411 = vmatpush1.msra.mxu0 0.0
      %1412 = vmatprep.subr.mxu0 0.0
      %1413 = vmatpush1.msra.mxu0 0.0
      %1414 = vmatprep.subr.mxu0 0.0
      %1415 = vmatpush1.msra.mxu0 0.0
      %1416 = vmatprep.subr.mxu0 0.0
      %1417 = vmatpush1.msra.mxu0 0.0
      %1418 = vmatprep.subr.mxu0 0.0
      %1419 = vmatpush1.msra.mxu0 0.0
      %1420 = vmatprep.subr.mxu0 0.0
      %1421 = vmatpush1.msra.mxu0 0.0
      %1422 = vmatprep.subr.mxu0 0.0
      %1423 = vmatpush1.msra.mxu0 0.0
      %1424 = vmatprep.subr.mxu0 0.0
      %1425 = vmatpush1.msra.mxu0 0.0
      %1426 = vmatprep.subr.mxu0 0.0
      %1427 = vmatpush1.msra.mxu0 0.0
      %1428 = vmatprep.subr.mxu0 0.0
      %1429 = vmatpush1.msra.mxu0 0.0
      %1430 = vmatprep.subr.mxu0 0.0
      %1431 = vmatpush1.msra.mxu0 0.0
      %1432 = vmatprep.mubr.f32.mxu0 0.0
      %1433 = vmatmul.mubr.f32.gmra.mrb[0].mxu0 %v1363
      %v1434 = vpop.f32.mrb[0].mxu0
      %v1435 = vadd.f32 0.0, %v1434
      %v1436 = vpop.f32.mrb[0].mxu0
      %1437 = vmatprep.mubr.f32.mxu0 0.0
      %1438 = vmatmul.mubr.f32.gmra.mrb[0].mxu0 %v1366
      %v1439 = vpop.f32.mrb[0].mxu0
      %v1440 = vadd.f32 0.0, %v1439
      %v1441 = vpop.f32.mrb[0].mxu0
      %1442 = vdwg.mxu0
      %1443 = vmatprep.subr.mxu0 0.0
      %1444 = vmatpush1.msra.mxu0 %v1355
      %1445 = vmatprep.subr.mxu0 0.0
      %1446 = vmatpush1.msra.mxu0 %v1358
      %1447 = vmatprep.subr.mxu0 0.0
      %1448 = vmatpush1.msra.mxu0 0.0
      %1449 = vmatprep.subr.mxu0 0.0
      %1450 = vmatpush1.msra.mxu0 0.0
      %1451 = vmatprep.subr.mxu0 0.0
      %1452 = vmatpush1.msra.mxu0 0.0
      %1453 = vmatprep.subr.mxu0 0.0
      %1454 = vmatpush1.msra.mxu0 0.0
      %1455 = vmatprep.subr.mxu0 0.0
      %1456 = vmatpush1.msra.mxu0 0.0
      %1457 = vmatprep.subr.mxu0 0.0
      %1458 = vmatpush1.msra.mxu0 0.0
      %1459 = vmatprep.subr.mxu0 0.0
      %1460 = vmatpush1.msra.mxu0 0.0
      %1461 = vmatprep.subr.mxu0 0.0
      %1462 = vmatpush1.msra.mxu0 0.0
      %1463 = vmatprep.subr.mxu0 0.0
      %1464 = vmatpush1.msra.mxu0 0.0
      %1465 = vmatprep.subr.mxu0 0.0
      %1466 = vmatpush1.msra.mxu0 0.0
      %1467 = vmatprep.subr.mxu0 0.0
      %1468 = vmatpush1.msra.mxu0 0.0
      %1469 = vmatprep.subr.mxu0 0.0
      %1470 = vmatpush1.msra.mxu0 0.0
      %1471 = vmatprep.subr.mxu0 0.0
      %1472 = vmatpush1.msra.mxu0 0.0
      %1473 = vmatprep.subr.mxu0 0.0
      %1474 = vmatpush1.msra.mxu0 0.0
      %1475 = vmatprep.subr.mxu0 0.0
      %1476 = vmatpush1.msra.mxu0 0.0
      %1477 = vmatprep.subr.mxu0 0.0
      %1478 = vmatpush1.msra.mxu0 0.0
      %1479 = vmatprep.subr.mxu0 0.0
      %1480 = vmatpush1.msra.mxu0 0.0
      %1481 = vmatprep.subr.mxu0 0.0
      %1482 = vmatpush1.msra.mxu0 0.0
      %1483 = vmatprep.subr.mxu0 0.0
      %1484 = vmatpush1.msra.mxu0 0.0
      %1485 = vmatprep.subr.mxu0 0.0
      %1486 = vmatpush1.msra.mxu0 0.0
      %1487 = vmatprep.subr.mxu0 0.0
      %1488 = vmatpush1.msra.mxu0 0.0
      %1489 = vmatprep.subr.mxu0 0.0
      %1490 = vmatpush1.msra.mxu0 0.0
      %1491 = vmatprep.subr.mxu0 0.0
      %1492 = vmatpush1.msra.mxu0 0.0
      %1493 = vmatprep.subr.mxu0 0.0
      %1494 = vmatpush1.msra.mxu0 0.0
      %1495 = vmatprep.subr.mxu0 0.0
      %1496 = vmatpush1.msra.mxu0 0.0
      %1497 = vmatprep.subr.mxu0 0.0
      %1498 = vmatpush1.msra.mxu0 0.0
      %1499 = vmatprep.subr.mxu0 0.0
      %1500 = vmatpush1.msra.mxu0 0.0
      %1501 = vmatprep.subr.mxu0 0.0
      %1502 = vmatpush1.msra.mxu0 0.0
      %1503 = vmatprep.subr.mxu0 0.0
      %1504 = vmatpush1.msra.mxu0 0.0
      %1505 = vmatprep.subr.mxu0 0.0
      %1506 = vmatpush1.msra.mxu0 0.0
      %1507 = vmatprep.mubr.f32.mxu0 0.0
      %1508 = vmatmul.mubr.f32.gmra.mrb[0].mxu0 %v1363
      %v1509 = vpop.f32.mrb[0].mxu0
      %v1510 = vadd.f32 0.0, %v1509
      %v1511 = vpop.f32.mrb[0].mxu0
      %1512 = vmatprep.mubr.f32.mxu0 0.0
      %1513 = vmatmul.mubr.f32.gmra.mrb[0].mxu0 %v1366
      %v1514 = vpop.f32.mrb[0].mxu0
      %v1515 = vadd.f32 0.0, %v1514
      %v1516 = vpop.f32.mrb[0].mxu0
      %1517 = vdwg.mxu0
      %v1518 = vmul.f32 %v1435, 0.0078125
      %v1519 = vmul.f32 %v1440, 0.0078125
      %v1520 = vmul.f32 %v1510, 0.0078125
      %v1521 = vmul.f32 %v1515, 0.0078125
      %v1522 = vmul.f32 %v1518, %v1518
      %v1523 = vmul.f32 %v1519, %v1519
      %v1524 = vsub.f32 %v1520, %v1522
      %v1525 = vsub.f32 %v1521, %v1523
      %v1526 = vadd.f32 %v1524, 1e-05
      %v1527 = vadd.f32 %v1525, 1e-05
      %v1528 = vrsqrt.pop %v1526
      %v1529 = vrsqrt.pop %v1527
      %1531 = vset.pattern.permute.xlu0 0
      %1532 = vperm.xlu0 %1531, %v1518
      %v1533 = vpop.permute.xlu0 %1532
      %1536 = vset.pattern.permute.xlu0 0
      %1537 = vperm.xlu0 %1536, %v1519
      %v1538 = vpop.permute.xlu0 %1537
      %v1540 = vsub.f32 %v1319, %v1533
      %v1541 = vsub.f32 %v1321, %v1533
      %v1542 = vsub.f32 %v1323, %v1538
      %v1543 = vsub.f32 %v1325, %v1538
      %v1544 = vld [vmem:[%s3] sm:$0xff]
      %v1545 = vld [vmem:[%s3 + $0x8] sm:$0xff]
      %v1546 = vmul.f32 %v1528, %v1544
      %v1547 = vmul.f32 %v1529, %v1545
      %1549 = vset.pattern.permute.xlu0 0
      %1550 = vperm.xlu0 %1549, %v1546
      %v1551 = vpop.permute.xlu0 %1550
      %1554 = vset.pattern.permute.xlu0 0
      %1555 = vperm.xlu0 %1554, %v1547
      %v1556 = vpop.permute.xlu0 %1555
      %v1558 = vmul.f32 %v1540, %v1551
      %v1559 = vmul.f32 %v1541, %v1551
      %v1560 = vmul.f32 %v1542, %v1556
      %v1561 = vmul.f32 %v1543, %v1556
      %v1562 = vld [vmem:[%s4] sm:$0xff]
      %v1563 = vld [vmem:[%s4 + $0x8] sm:$0xff]
      %1565 = vset.pattern.permute.xlu0 0
      %1566 = vperm.xlu0 %1565, %v1562
      %v1567 = vpop.permute.xlu0 %1566
      %1570 = vset.pattern.permute.xlu0 0
      %1571 = vperm.xlu0 %1570, %v1563
      %v1572 = vpop.permute.xlu0 %1571
      %v1574 = vadd.f32 %v1558, %v1567
      %v1575 = vadd.f32 %v1559, %v1567
      %v1576 = vadd.f32 %v1560, %v1572
      %v1577 = vadd.f32 %v1561, %v1572
      %v1578 = vld [vmem:[%s347] sm:$0xff]
      %v1579 = vld [vmem:[%s8] sm:$0xf]
      %v1580 = vld [vmem:[%s8 + $0x4] sm:$0xf]
      %v1583 = vunpack.c.l.b16 %v1579
      %v1584 = vunpack.c.l.b16 %v1580
      %v1585 = vpack.c.b16 %v1584, %v1583
      %v1587 = vunpack.c.l.b16 %v1578
      %v1588 = vunpack.c.h.b16 %v1578
      %v1589 = vpack.c.b16 %v1587, %v1587
      %v1590 = vpack.c.b16 %v1588, %v1588
      %vm1591 = vcmask 64512
      %v1593 = vsel %vm1591, %v1585, 0
      %vm1595 = vcmask 1043456
      %v1597 = vsel %vm1595, %v1589, 0
      %v1600 = vsel %vm1595, %v1590, 0
      %1602 = vmatprep.subr.bf16.mxu0 %v1600
      %1603 = vmatpush1.bf16.msra.mxu0 %v1597
      %1604 = vmatprep.subr.bf16.mxu0 0
      %1605 = vmatpush1.bf16.msra.mxu0 0
      %1606 = vmatprep.subr.bf16.mxu0 0
      %1607 = vmatpush1.bf16.msra.mxu0 0
      %1608 = vmatprep.subr.bf16.mxu0 0
      %1609 = vmatpush1.bf16.msra.mxu0 0
      %1610 = vmatprep.subr.bf16.mxu0 0
      %1611 = vmatpush1.bf16.msra.mxu0 0
      %1612 = vmatprep.subr.bf16.mxu0 0
      %1613 = vmatpush1.bf16.msra.mxu0 0
      %1614 = vmatprep.subr.bf16.mxu0 0
      %1615 = vmatpush1.bf16.msra.mxu0 0
      %1616 = vmatprep.subr.bf16.mxu0 0
      %1617 = vmatpush1.bf16.msra.mxu0 0
      %1618 = vmatprep.subr.bf16.mxu0 0
      %1619 = vmatpush1.bf16.msra.mxu0 0
      %1620 = vmatprep.subr.bf16.mxu0 0
      %1621 = vmatpush1.bf16.msra.mxu0 0
      %1622 = vmatprep.subr.bf16.mxu0 0
      %1623 = vmatpush1.bf16.msra.mxu0 0
      %1624 = vmatprep.subr.bf16.mxu0 0
      %1625 = vmatpush1.bf16.msra.mxu0 0
      %1626 = vmatprep.subr.bf16.mxu0 0
      %1627 = vmatpush1.bf16.msra.mxu0 0
      %1628 = vmatprep.subr.bf16.mxu0 0
      %1629 = vmatpush1.bf16.msra.mxu0 0
      %1630 = vmatprep.subr.bf16.mxu0 0
      %1631 = vmatpush1.bf16.msra.mxu0 0
      %1632 = vmatprep.subr.bf16.mxu0 0
      %1633 = vmatpush1.bf16.msra.mxu0 0
      %1634 = vmatprep.mubr.bf16.mxu0 0
      %1635 = vmatmul.mubr.bf16.gmra.mrb[0].mxu0 %v1593
      %v1636 = vpop.f32.mrb[0].mxu0
      %v1637 = vadd.f32 0.0, %v1636
      %v1638 = vpop.f32.mrb[0].mxu0
      %v1639 = vadd.f32 0.0, %v1638
      %v1640 = vpop.f32.mrb[0].mxu0
      %v1641 = vadd.f32 0.0, %v1640
      %v1642 = vpop.f32.mrb[0].mxu0
      %v1643 = vadd.f32 0.0, %v1642
      %1644 = vdwg.mxu0
      %v1645 = vadd.f32 %v1574, %v1637
      %v1646 = vadd.f32 %v1575, %v1639
      %v1647 = vadd.f32 %v1576, %v1641
      %v1648 = vadd.f32 %v1577, %v1643
      %vm1649 = vcmp.ge.f32.partialorder %v1645, 0.0
      %vm1650 = vcmp.ge.f32.partialorder %v1646, 0.0
      %vm1651 = vcmp.ge.f32.partialorder %v1647, 0.0
      %vm1652 = vcmp.ge.f32.partialorder %v1648, 0.0
      %v1653 = vmul.f32 %v1645, 0.01
      %v1654 = vmul.f32 %v1646, 0.01
      %v1655 = vmul.f32 %v1647, 0.01
      %v1656 = vmul.f32 %v1648, 0.01
      %v1657 = vsel %vm1649, %v1645, %v1653
      %v1658 = vsel %vm1650, %v1646, %v1654
      %v1659 = vsel %vm1651, %v1647, %v1655
      %v1660 = vsel %vm1652, %v1648, %v1656
      %1661 = vst [vmem:[%s352] sm:$0xff] %v1657
      %1662 = vst [vmem:[%s352 + $0x8] sm:$0xff] %v1658
      %1663 = vst [vmem:[%s352 + $0x10] sm:$0xff] %v1659
      %1664 = vst [vmem:[%s352 + $0x18] sm:$0xff] %v1660
      %p1665 = scmp.lt.s32.totalorder %s20, 1
      %s1666 = scalar_select %p1665, %s20, 1
      %s1667 = smul.addr %s1666, 4
      %s1668 = smul.addr %s1667, 8
      %s1669 = scalar_lea.vmem %s9, %s1668
      // Predicated region
      $region57: #{basic_block_forward.3} parent=55 // pred_check
        %p1670 = pneg %p237
      $region58: #{basic_block_forward.3} parent=55 // pred_check_branch
        %1672 = sbr.rel (%p1670) target = $region60
      $region59: #{basic_block_forward.3} parent=55 // pred_region
        _
      $region60: #{basic_block_forward.3} parent=55 // pred_fallthru
        _
    $region56: #{basic_block_forward.3} parent=5 // pred_fallthru
      _
    %p1673 = scmp.le.s32.totalorder 2, %s15
    // Predicated region
    $region61: #{basic_block_forward.3} parent=5 // pred_check
      %p1674 = pneg %p1673
    $region62: #{basic_block_forward.3} parent=5 // pred_check_branch
      %1676 = sbr.rel (%p1674) target = $region64
    $region63: #{basic_block_forward.3} parent=5 // pred_region
      %s1677 = ssub.s32 %s15, 2
      // Predicated region
      $region65: #{basic_block_forward.3} parent=63 // pred_check
        %p1678 = pneg %p243
      $region66: #{basic_block_forward.3} parent=63 // pred_check_branch
        %1680 = sbr.rel (%p1678) target = $region68
      $region67: #{basic_block_forward.3} parent=63 // pred_region
        %p1681 = scmp.lt.s32.totalorder %s21, 1
        %s1682 = scalar_select %p1681, %s21, 1
        %s1683 = smul.addr %s1682, 4
        %s1684 = smul.addr %s1683, 8
        %s1685 = scalar_lea.vmem %s9, %s1684
      $region68: #{basic_block_forward.3} parent=63 // pred_fallthru
        _
    $region64: #{basic_block_forward.3} parent=5 // pred_fallthru
      _
  $region6: #{basic_block_forward.3} parent=0 // loop_footer
    %s19 = sadd.s32 1, %s15
  $region7: #{basic_block_forward.3} parent=0 // loop_footer_branch
    %14 = sbr.rel target = $region3
  $region8: #{basic_block_forward.3} parent=0 // loop_exit
    _

// kernel: basic_block_forward.2
$region0: #{basic_block_forward.2}
  #allocation0 [shape = 'u32[]', space=smem, size = 0x4, offset = 0x4, fixed_abs, tag = 'smem constant byte address 0x4 - core index']
  #allocation1 [shape = 'u32[144,128]{1,0:T(1,128)}', space=vmem, size = 0x12000, scoped, tag = 'internal scratch']
  #allocation2 [shape = 'bf16[216,896]{1,0:T(8,128)(2,1)}', space=vmem, size = 0x5e800, scoped, tag = 'scratch operand']
  %s0 = inlined_call_operand.vmem [shape: bf16[2,8,1118], index: 0, kind: input, shape index: {}]
  %s1 = inlined_call_operand.vmem [shape: bf16[16,216], index: 1, kind: input, shape index: {}]
  %s2 = inlined_call_operand.vmem [shape: f32[16,1], index: 2, kind: input, shape index: {}]
  %s3 = inlined_call_operand.vmem [shape: f32[16,1], index: 3, kind: input, shape index: {}]
  %s4 = inlined_call_operand.vmem [shape: f32[16,1], index: 4, kind: input, shape index: {}]
  %s5 = inlined_call_operand.vmem [shape: f32[16,16], index: 5, kind: input, shape index: {}]
  %s6 = inlined_call_operand.vmem [shape: f32[1,896], index: 6, kind: input, shape index: {}]
  %s7 = inlined_call_operand.vmem [shape: bf16[2,16,896], index: 7, kind: output, shape index: {}]
  %s8 = sld [smem:[#allocation0]]
  $region61: #{basic_block_forward.2} parent=0
    _
  %s10 = ssub.s32 1, %s8
  %s11 = scalar_select 0, %s10, %s8
  loop: start=0, step=1, limit=4
  $region2: #{basic_block_forward.2} parent=0 // loop_pre_header
    _
  $region3: #{basic_block_forward.2} parent=0 // loop_header
    %s13 = sphi 0, %s17
    %p14 = scmp.ge.s32.totalorder %s13, 4
    %s23 = sphi 0, %s25
    %s26 = sphi 0, %s23
    %s27 = sphi 0, %s26
    %s43 = sphi 0, %s27
    %s47 = sphi 0, %s47
    %s49 = sphi 0, %s47
    %s50 = sphi 0, %s49
    %s64 = sphi 0, %s50
    %s68 = sphi 0, %s68
    %s70 = sphi 0, %s68
    %s71 = sphi 0, %s70
    %s85 = sphi 0, %s71
    %s89 = sphi 0, %s89
    %s91 = sphi 0, %s89
    %s92 = sphi 0, %s91
    %s106 = sphi 0, %s92
    %s110 = sphi 0, %s110
    %s112 = sphi 0, %s110
    %s113 = sphi 0, %s112
    %s127 = sphi 0, %s113
    %s131 = sphi 0, %s131
    %s133 = sphi 0, %s131
    %s134 = sphi 0, %s133
    %s148 = sphi 0, %s134
    %s152 = sphi 0, %s152
    %s154 = sphi 0, %s152
    %s155 = sphi 0, %s154
    %s169 = sphi 0, %s155
    %s175 = sphi 0, %s177
    %s178 = sphi 0, %s175
    %s179 = sphi 0, %s178
    %s195 = sphi 0, %s179
  $region4: #{basic_block_forward.2} parent=0 // loop_header_branch
    %16 = sbr.rel (%p14) target = $region8
  $region5: #{basic_block_forward.2} parent=0 // loop_body
    %s18 = ssub.s32 %s13, 1
    %s19 = ssub.s32 %s13, 2
    %s20 = sadd.s32 %s13, 1
    %s21 = ssub.s32 %s13, %s20
    %p22 = scmp.eq.s32.totalorder %s21, 0
    %s24 = sadd.s32 %s23, 1
    %s25 = scalar_select %p22, %s23, %s24
    %p28 = pneg %p22
    %p29 = scmp.eq.s32.totalorder %s13, 1
    %p30 = por %p28, %p29
    %p31 = scmp.ne.s32.totalorder %s23, %s26
    %p32 = scmp.eq.s32.totalorder %s13, 0
    %p33 = por %p31, %p32
    %p34 = scmp.ne.s32.totalorder %s23, %s26
    %p35 = scmp.eq.s32.totalorder %s18, 1
    %p36 = por %p34, %p35
    %p37 = scmp.ne.s32.totalorder %s26, %s27
    %p38 = scmp.eq.s32.totalorder %s18, 0
    %p39 = por %p37, %p38
    %p40 = scmp.ne.s32.totalorder %s26, %s27
    %p41 = scmp.eq.s32.totalorder %s19, 1
    %p42 = por %p40, %p41
    %p44 = scmp.ne.s32.totalorder %s27, %s43
    %p45 = scmp.eq.s32.totalorder %s19, 0
    %p46 = por %p44, %p45
    %s48 = sadd.s32 %s47, 1
    %p51 = scmp.eq.s32.totalorder %s13, 1
    %p52 = scmp.ne.s32.totalorder %s47, %s49
    %p53 = scmp.eq.s32.totalorder %s13, 0
    %p54 = por %p52, %p53
    %p55 = scmp.ne.s32.totalorder %s47, %s49
    %p56 = scmp.eq.s32.totalorder %s18, 1
    %p57 = por %p55, %p56
    %p58 = scmp.ne.s32.totalorder %s49, %s50
    %p59 = scmp.eq.s32.totalorder %s18, 0
    %p60 = por %p58, %p59
    %p61 = scmp.ne.s32.totalorder %s49, %s50
    %p62 = scmp.eq.s32.totalorder %s19, 1
    %p63 = por %p61, %p62
    %p65 = scmp.ne.s32.totalorder %s50, %s64
    %p66 = scmp.eq.s32.totalorder %s19, 0
    %p67 = por %p65, %p66
    %s69 = sadd.s32 %s68, 1
    %p72 = scmp.eq.s32.totalorder %s13, 1
    %p73 = scmp.ne.s32.totalorder %s68, %s70
    %p74 = scmp.eq.s32.totalorder %s13, 0
    %p75 = por %p73, %p74
    %p76 = scmp.ne.s32.totalorder %s68, %s70
    %p77 = scmp.eq.s32.totalorder %s18, 1
    %p78 = por %p76, %p77
    %p79 = scmp.ne.s32.totalorder %s70, %s71
    %p80 = scmp.eq.s32.totalorder %s18, 0
    %p81 = por %p79, %p80
    %p82 = scmp.ne.s32.totalorder %s70, %s71
    %p83 = scmp.eq.s32.totalorder %s19, 1
    %p84 = por %p82, %p83
    %p86 = scmp.ne.s32.totalorder %s71, %s85
    %p87 = scmp.eq.s32.totalorder %s19, 0
    %p88 = por %p86, %p87
    %s90 = sadd.s32 %s89, 1
    %p93 = scmp.eq.s32.totalorder %s13, 1
    %p94 = scmp.ne.s32.totalorder %s89, %s91
    %p95 = scmp.eq.s32.totalorder %s13, 0
    %p96 = por %p94, %p95
    %p97 = scmp.ne.s32.totalorder %s89, %s91
    %p98 = scmp.eq.s32.totalorder %s18, 1
    %p99 = por %p97, %p98
    %p100 = scmp.ne.s32.totalorder %s91, %s92
    %p101 = scmp.eq.s32.totalorder %s18, 0
    %p102 = por %p100, %p101
    %p103 = scmp.ne.s32.totalorder %s91, %s92
    %p104 = scmp.eq.s32.totalorder %s19, 1
    %p105 = por %p103, %p104
    %p107 = scmp.ne.s32.totalorder %s92, %s106
    %p108 = scmp.eq.s32.totalorder %s19, 0
    %p109 = por %p107, %p108
    %s111 = sadd.s32 %s110, 1
    %p114 = scmp.eq.s32.totalorder %s13, 1
    %p115 = scmp.ne.s32.totalorder %s110, %s112
    %p116 = scmp.eq.s32.totalorder %s13, 0
    %p117 = por %p115, %p116
    %p118 = scmp.ne.s32.totalorder %s110, %s112
    %p119 = scmp.eq.s32.totalorder %s18, 1
    %p120 = por %p118, %p119
    %p121 = scmp.ne.s32.totalorder %s112, %s113
    %p122 = scmp.eq.s32.totalorder %s18, 0
    %p123 = por %p121, %p122
    %p124 = scmp.ne.s32.totalorder %s112, %s113
    %p125 = scmp.eq.s32.totalorder %s19, 1
    %p126 = por %p124, %p125
    %p128 = scmp.ne.s32.totalorder %s113, %s127
    %p129 = scmp.eq.s32.totalorder %s19, 0
    %p130 = por %p128, %p129
    %s132 = sadd.s32 %s131, 1
    %p135 = scmp.eq.s32.totalorder %s13, 1
    %p136 = scmp.ne.s32.totalorder %s131, %s133
    %p137 = scmp.eq.s32.totalorder %s13, 0
    %p138 = por %p136, %p137
    %p139 = scmp.ne.s32.totalorder %s131, %s133
    %p140 = scmp.eq.s32.totalorder %s18, 1
    %p141 = por %p139, %p140
    %p142 = scmp.ne.s32.totalorder %s133, %s134
    %p143 = scmp.eq.s32.totalorder %s18, 0
    %p144 = por %p142, %p143
    %p145 = scmp.ne.s32.totalorder %s133, %s134
    %p146 = scmp.eq.s32.totalorder %s19, 1
    %p147 = por %p145, %p146
    %p149 = scmp.ne.s32.totalorder %s134, %s148
    %p150 = scmp.eq.s32.totalorder %s19, 0
    %p151 = por %p149, %p150
    %s153 = sadd.s32 %s152, 1
    %p156 = scmp.eq.s32.totalorder %s13, 1
    %p157 = scmp.ne.s32.totalorder %s152, %s154
    %p158 = scmp.eq.s32.totalorder %s13, 0
    %p159 = por %p157, %p158
    %p160 = scmp.ne.s32.totalorder %s152, %s154
    %p161 = scmp.eq.s32.totalorder %s18, 1
    %p162 = por %p160, %p161
    %p163 = scmp.ne.s32.totalorder %s154, %s155
    %p164 = scmp.eq.s32.totalorder %s18, 0
    %p165 = por %p163, %p164
    %p166 = scmp.ne.s32.totalorder %s154, %s155
    %p167 = scmp.eq.s32.totalorder %s19, 1
    %p168 = por %p166, %p167
    %p170 = scmp.ne.s32.totalorder %s155, %s169
    %p171 = scmp.eq.s32.totalorder %s19, 0
    %p172 = por %p170, %p171
    %s173 = ssub.s32 %s13, %s20
    %p174 = scmp.eq.s32.totalorder %s173, 0
    %s176 = sadd.s32 %s175, 1
    %s177 = scalar_select %p174, %s175, %s176
    %p180 = pneg %p174
    %p181 = scmp.eq.s32.totalorder %s13, 1
    %p182 = por %p180, %p181
    %p183 = scmp.ne.s32.totalorder %s175, %s178
    %p184 = scmp.eq.s32.totalorder %s13, 0
    %p185 = por %p183, %p184
    %p186 = scmp.ne.s32.totalorder %s175, %s178
    %p187 = scmp.eq.s32.totalorder %s18, 1
    %p188 = por %p186, %p187
    %p189 = scmp.ne.s32.totalorder %s178, %s179
    %p190 = scmp.eq.s32.totalorder %s18, 0
    %p191 = por %p189, %p190
    %p192 = scmp.ne.s32.totalorder %s178, %s179
    %p193 = scmp.eq.s32.totalorder %s19, 1
    %p194 = por %p192, %p193
    %p196 = scmp.ne.s32.totalorder %s179, %s195
    %p197 = scmp.eq.s32.totalorder %s19, 0
    %p198 = por %p196, %p197
    %p199 = scmp.le.s32.totalorder 1, %s13
    %p200 = scmp.lt.s32.totalorder %s13, 3
    %p201 = pnand %p199, %p200
    %p202 = pneg %p201
    // Predicated region
    $region9: #{basic_block_forward.2} parent=5 // pred_check
      _
    $region10: #{basic_block_forward.2} parent=5 // pred_check_branch
      %204 = sbr.rel (%p201) target = $region12
    $region11: #{basic_block_forward.2} parent=5 // pred_region
      %s205 = ssub.s32 %s13, 1
      // Predicated region
      $region13: #{basic_block_forward.2} parent=11 // pred_check
        %p206 = pneg %p60
      $region14: #{basic_block_forward.2} parent=11 // pred_check_branch
        %208 = sbr.rel (%p206) target = $region16
      $region15: #{basic_block_forward.2} parent=11 // pred_region
        _
      $region16: #{basic_block_forward.2} parent=11 // pred_fallthru
        _
      // Predicated region
      $region17: #{basic_block_forward.2} parent=11 // pred_check
        %p209 = pneg %p81
      $region18: #{basic_block_forward.2} parent=11 // pred_check_branch
        %211 = sbr.rel (%p209) target = $region20
      $region19: #{basic_block_forward.2} parent=11 // pred_region
        _
      $region20: #{basic_block_forward.2} parent=11 // pred_fallthru
        _
      // Predicated region
      $region21: #{basic_block_forward.2} parent=11 // pred_check
        %p212 = pneg %p102
      $region22: #{basic_block_forward.2} parent=11 // pred_check_branch
        %214 = sbr.rel (%p212) target = $region24
      $region23: #{basic_block_forward.2} parent=11 // pred_region
        _
      $region24: #{basic_block_forward.2} parent=11 // pred_fallthru
        _
      // Predicated region
      $region25: #{basic_block_forward.2} parent=11 // pred_check
        %p215 = pneg %p123
      $region26: #{basic_block_forward.2} parent=11 // pred_check_branch
        %217 = sbr.rel (%p215) target = $region28
      $region27: #{basic_block_forward.2} parent=11 // pred_region
        _
      $region28: #{basic_block_forward.2} parent=11 // pred_fallthru
        _
      // Predicated region
      $region29: #{basic_block_forward.2} parent=11 // pred_check
        %p218 = pneg %p144
      $region30: #{basic_block_forward.2} parent=11 // pred_check_branch
        %220 = sbr.rel (%p218) target = $region32
      $region31: #{basic_block_forward.2} parent=11 // pred_region
        _
      $region32: #{basic_block_forward.2} parent=11 // pred_fallthru
        _
      // Predicated region
      $region33: #{basic_block_forward.2} parent=11 // pred_check
        %p221 = pneg %p165
      $region34: #{basic_block_forward.2} parent=11 // pred_check_branch
        %223 = sbr.rel (%p221) target = $region36
      $region35: #{basic_block_forward.2} parent=11 // pred_region
        _
      $region36: #{basic_block_forward.2} parent=11 // pred_fallthru
        _
    $region12: #{basic_block_forward.2} parent=5 // pred_fallthru
      _
    %p224 = scmp.lt.s32.totalorder %s13, 2
    // Predicated region
    $region37: #{basic_block_forward.2} parent=5 // pred_check
      %p225 = pneg %p224
    $region38: #{basic_block_forward.2} parent=5 // pred_check_branch
      %227 = sbr.rel (%p225) target = $region40
    $region39: #{basic_block_forward.2} parent=5 // pred_region
      // Predicated region
      $region41: #{basic_block_forward.2} parent=39 // pred_check
        %p228 = pneg %p33
      $region42: #{basic_block_forward.2} parent=39 // pred_check_branch
        %230 = sbr.rel (%p228) target = $region44
      $region43: #{basic_block_forward.2} parent=39 // pred_region
        %p231 = scmp.lt.s32.totalorder %s13, 1
        %s232 = scalar_select %p231, %s13, 1
        %s233 = smul.addr %s232, 9
        %s234 = smul.addr %s233, 4
        %s235 = scalar_lea.vmem %s0, %s234
      $region44: #{basic_block_forward.2} parent=39 // pred_fallthru
        _
    $region40: #{basic_block_forward.2} parent=5 // pred_fallthru
      _
    %p236 = scmp.le.s32.totalorder 1, %s13
    %p237 = scmp.lt.s32.totalorder %s13, 3
    %p238 = pnand %p236, %p237
    %p239 = pneg %p238
    // Predicated region
    $region45: #{basic_block_forward.2} parent=5 // pred_check
      _
    $region46: #{basic_block_forward.2} parent=5 // pred_check_branch
      %241 = sbr.rel (%p238) target = $region48
    $region47: #{basic_block_forward.2} parent=5 // pred_region
      %s242 = ssub.s32 %s13, 1
      %p243 = scmp.lt.s32.totalorder %s18, 1
      %s244 = scalar_select %p243, %s18, 1
      %s245 = smul.addr %s244, 9
      %s246 = smul.addr %s245, 4
      %s247 = scalar_lea.vmem %s0, %s246
      %p248 = pneg %p39
      %p249 = pneg %p36
      %p250 = pneg %p60
      %p251 = pneg %p57
      %p252 = pneg %p81
      %p253 = pneg %p78
      %p254 = pneg %p102
      %p255 = pneg %p99
      %p256 = pneg %p123
      %p257 = pneg %p120
      %p258 = pneg %p144
      %p259 = pneg %p141
      %p260 = pneg %p165
      %p261 = pneg %p162
      %p262 = pneg %p191
      %p263 = pneg %p188
      %p264 = scmp.lt.s32.totalorder %s18, 1
      %s265 = scalar_select %p264, %s18, 1
      %s266 = smul.addr %s265, 14
      %s267 = smul.addr %s266, 4
      %s268 = scalar_lea.vmem %s7, %s267
      %p269 = scmp.lt.s32.totalorder %s18, 1
      %s270 = scalar_select %p269, %s18, 1
      %s271 = smul.addr %s270, 9
      %s272 = smul.addr %s271, 4
      %s273 = scalar_lea.vmem %s0, %s272
      %p274 = scmp.lt.s32.totalorder %s18, 1
      %s275 = scalar_select %p274, %s18, 1
      %s276 = smul.addr %s275, 14
      %s277 = smul.addr %s276, 4
      %s278 = scalar_lea.vmem %s7, %s277
      %v280 = vld [vmem:[%s273] sm:$0xff]
      %v281 = vld [vmem:[%s273 + $0x8] sm:$0xff]
      %v282 = vld [vmem:[%s273 + $0x10] sm:$0xff]
      %v283 = vld [vmem:[%s273 + $0x18] sm:$0xf]
      %284 = vst [vmem:[#allocation2] sm:$0xff] %v280
      %285 = vst [vmem:[#allocation2 + $0x8] sm:$0xff] %v281
      %286 = vst [vmem:[#allocation2 + $0x10] sm:$0xff] %v282
      %287 = vst [vmem:[#allocation2 + $0x18] sm:$0xf] %v283
      %v288 = vld [vmem:[%s273] sm:$0xff]
      %v289 = vld [vmem:[%s273 + $0x8] sm:$0xff]
      %v290 = vld [vmem:[%s273 + $0x10] sm:$0xff]
      %v291 = vld [vmem:[%s273 + $0x18] sm:$0xff]
      %296 = vrot.lane.b32.xlu0 %v288, 127
      %v297 = vpop.permute.xlu0 %296
      %298 = vrot.lane.b32.xlu0 %v289, 127
      %v299 = vpop.permute.xlu0 %298
      %300 = vrot.lane.b32.xlu0 %v290, 127
      %v301 = vpop.permute.xlu0 %300
      %302 = vrot.lane.b32.xlu0 %v291, 127
      %v303 = vpop.permute.xlu0 %302
      %v304 = vrot.slane %v297, 4
      %v305 = vrot.slane %v299, 4
      %v306 = vrot.slane %v301, 4
      %v307 = vrot.slane %v303, 4
      %vm308 = vcmask 1043456
      %v309 = vsel %vm308, %v304, %v305
      %vm310 = vcmask 1039360
      %v311 = vsel %vm310, %v297, %v309
      %v312 = vsel %vm308, %v305, %v306
      %v313 = vsel %vm310, %v299, %v312
      %v314 = vsel %vm308, %v306, %v307
      %v315 = vsel %vm310, %v301, %v314
      %v316 = vsel %vm310, %v303, %v307
      %321 = vst [vmem:[#allocation2 + $0x1c] sm:$0xff] %v311
      %322 = vst [vmem:[#allocation2 + $0x24] sm:$0xff] %v313
      %323 = vst [vmem:[#allocation2 + $0x2c] sm:$0xff] %v315
      %324 = vst [vmem:[#allocation2 + $0x34] sm:$0xf] %v316
      %v325 = vld [vmem:[%s273] sm:$0xff]
      %v326 = vld [vmem:[%s273 + $0x8] sm:$0xff]
      %v327 = vld [vmem:[%s273 + $0x10] sm:$0xff]
      %v328 = vld [vmem:[%s273 + $0x18] sm:$0xff]
      %333 = vrot.lane.b32.xlu0 %v325, 126
      %v334 = vpop.permute.xlu0 %333
      %335 = vrot.lane.b32.xlu0 %v326, 126
      %v336 = vpop.permute.xlu0 %335
      %337 = vrot.lane.b32.xlu0 %v327, 126
      %v338 = vpop.permute.xlu0 %337
      %339 = vrot.lane.b32.xlu0 %v328, 126
      %v340 = vpop.permute.xlu0 %339
      %v341 = vrot.slane %v334, 4
      %v342 = vrot.slane %v336, 4
      %v343 = vrot.slane %v338, 4
      %v344 = vrot.slane %v340, 4
      %v345 = vsel %vm308, %v341, %v342
      %vm346 = vcmask 1031168
      %v347 = vsel %vm346, %v334, %v345
      %v348 = vsel %vm308, %v342, %v343
      %v349 = vsel %vm346, %v336, %v348
      %v350 = vsel %vm308, %v343, %v344
      %v351 = vsel %vm346, %v338, %v350
      %v352 = vsel %vm346, %v340, %v344
      %357 = vst [vmem:[#allocation2 + $0x38] sm:$0xff] %v347
      %358 = vst [vmem:[#allocation2 + $0x40] sm:$0xff] %v349
      %359 = vst [vmem:[#allocation2 + $0x48] sm:$0xff] %v351
      %360 = vst [vmem:[#allocation2 + $0x50] sm:$0xf] %v352
      %v361 = vld [vmem:[%s273] sm:$0xff]
      %v362 = vld [vmem:[%s273 + $0x8] sm:$0xff]
      %v363 = vld [vmem:[%s273 + $0x10] sm:$0xff]
      %v364 = vld [vmem:[%s273 + $0x18] sm:$0xff]
      %369 = vrot.lane.b32.xlu0 %v361, 118
      %v370 = vpop.permute.xlu0 %369
      %371 = vrot.lane.b32.xlu0 %v362, 118
      %v372 = vpop.permute.xlu0 %371
      %373 = vrot.lane.b32.xlu0 %v363, 118
      %v374 = vpop.permute.xlu0 %373
      %375 = vrot.lane.b32.xlu0 %v364, 118
      %v376 = vpop.permute.xlu0 %375
      %v377 = vrot.slane %v370, 4
      %v378 = vrot.slane %v372, 4
      %v379 = vrot.slane %v374, 4
      %v380 = vrot.slane %v376, 4
      %v381 = vsel %vm308, %v377, %v378
      %vm382 = vcmask 965632
      %v383 = vsel %vm382, %v370, %v381
      %v384 = vsel %vm308, %v378, %v379
      %v385 = vsel %vm382, %v372, %v384
      %v386 = vsel %vm308, %v379, %v380
      %v387 = vsel %vm382, %v374, %v386
      %v388 = vsel %vm382, %v376, %v380
      %393 = vst [vmem:[#allocation2 + $0x54] sm:$0xff] %v383
      %394 = vst [vmem:[#allocation2 + $0x5c] sm:$0xff] %v385
      %395 = vst [vmem:[#allocation2 + $0x64] sm:$0xff] %v387
      %396 = vst [vmem:[#allocation2 + $0x6c] sm:$0xf] %v388
      %v397 = vld [vmem:[%s273] sm:$0xff]
      %v398 = vld [vmem:[%s273 + $0x8] sm:$0xff]
      %v399 = vld [vmem:[%s273 + $0x10] sm:$0xff]
      %v400 = vld [vmem:[%s273 + $0x18] sm:$0xff]
      %405 = vrot.lane.b32.xlu0 %v397, 117
      %v406 = vpop.permute.xlu0 %405
      %407 = vrot.lane.b32.xlu0 %v398, 117
      %v408 = vpop.permute.xlu0 %407
      %409 = vrot.lane.b32.xlu0 %v399, 117
      %v410 = vpop.permute.xlu0 %409
      %411 = vrot.lane.b32.xlu0 %v400, 117
      %v412 = vpop.permute.xlu0 %411
      %v413 = vrot.slane %v406, 4
      %v414 = vrot.slane %v408, 4
      %v415 = vrot.slane %v410, 4
      %v416 = vrot.slane %v412, 4
      %v417 = vsel %vm308, %v413, %v414
      %vm418 = vcmask 957440
      %v419 = vsel %vm418, %v406, %v417
      %v420 = vsel %vm308, %v414, %v415
      %v421 = vsel %vm418, %v408, %v420
      %v422 = vsel %vm308, %v415, %v416
      %v423 = vsel %vm418, %v410, %v422
      %v424 = vsel %vm418, %v412, %v416
      %429 = vst [vmem:[#allocation2 + $0x70] sm:$0xff] %v419
      %430 = vst [vmem:[#allocation2 + $0x78] sm:$0xff] %v421
      %431 = vst [vmem:[#allocation2 + $0x80] sm:$0xff] %v423
      %432 = vst [vmem:[#allocation2 + $0x88] sm:$0xf] %v424
      %v433 = vld [vmem:[%s273] sm:$0xff]
      %v434 = vld [vmem:[%s273 + $0x8] sm:$0xff]
      %v435 = vld [vmem:[%s273 + $0x10] sm:$0xff]
      %v436 = vld [vmem:[%s273 + $0x18] sm:$0xff]
      %441 = vrot.lane.b32.xlu0 %v433, 116
      %v442 = vpop.permute.xlu0 %441
      %443 = vrot.lane.b32.xlu0 %v434, 116
      %v444 = vpop.permute.xlu0 %443
      %445 = vrot.lane.b32.xlu0 %v435, 116
      %v446 = vpop.permute.xlu0 %445
      %447 = vrot.lane.b32.xlu0 %v436, 116
      %v448 = vpop.permute.xlu0 %447
      %v449 = vrot.slane %v442, 4
      %v450 = vrot.slane %v444, 4
      %v451 = vrot.slane %v446, 4
      %v452 = vrot.slane %v448, 4
      %v453 = vsel %vm308, %v449, %v450
      %vm454 = vcmask 949248
      %v455 = vsel %vm454, %v442, %v453
      %v456 = vsel %vm308, %v450, %v451
      %v457 = vsel %vm454, %v444, %v456
      %v458 = vsel %vm308, %v451, %v452
      %v459 = vsel %vm454, %v446, %v458
      %v460 = vsel %vm454, %v448, %v452
      %465 = vst [vmem:[#allocation2 + $0x8c] sm:$0xff] %v455
      %466 = vst [vmem:[#allocation2 + $0x94] sm:$0xff] %v457
      %467 = vst [vmem:[#allocation2 + $0x9c] sm:$0xff] %v459
      %468 = vst [vmem:[#allocation2 + $0xa4] sm:$0xf] %v460
      %v469 = vld [vmem:[%s273] sm:$0xff]
      %v470 = vld [vmem:[%s273 + $0x8] sm:$0xff]
      %v471 = vld [vmem:[%s273 + $0x10] sm:$0xff]
      %v472 = vld [vmem:[%s273 + $0x18] sm:$0xff]
      %477 = vrot.lane.b32.xlu0 %v469, 108
      %v478 = vpop.permute.xlu0 %477
      %479 = vrot.lane.b32.xlu0 %v470, 108
      %v480 = vpop.permute.xlu0 %479
      %481 = vrot.lane.b32.xlu0 %v471, 108
      %v482 = vpop.permute.xlu0 %481
      %483 = vrot.lane.b32.xlu0 %v472, 108
      %v484 = vpop.permute.xlu0 %483
      %v485 = vrot.slane %v478, 4
      %v486 = vrot.slane %v480, 4
      %v487 = vrot.slane %v482, 4
      %v488 = vrot.slane %v484, 4
      %v489 = vsel %vm308, %v485, %v486
      %vm490 = vcmask 883712
      %v491 = vsel %vm490, %v478, %v489
      %v492 = vsel %vm308, %v486, %v487
      %v493 = vsel %vm490, %v480, %v492
      %v494 = vsel %vm308, %v487, %v488
      %v495 = vsel %vm490, %v482, %v494
      %v496 = vsel %vm490, %v484, %v488
      %501 = vst [vmem:[#allocation2 + $0xa8] sm:$0xff] %v491
      %502 = vst [vmem:[#allocation2 + $0xb0] sm:$0xff] %v493
      %503 = vst [vmem:[#allocation2 + $0xb8] sm:$0xff] %v495
      %504 = vst [vmem:[#allocation2 + $0xc0] sm:$0xf] %v496
      %v505 = vld [vmem:[%s273] sm:$0xff]
      %v506 = vld [vmem:[%s273 + $0x8] sm:$0xff]
      %v507 = vld [vmem:[%s273 + $0x10] sm:$0xff]
      %v508 = vld [vmem:[%s273 + $0x18] sm:$0xff]
      %513 = vrot.lane.b32.xlu0 %v505, 107
      %v514 = vpop.permute.xlu0 %513
      %515 = vrot.lane.b32.xlu0 %v506, 107
      %v516 = vpop.permute.xlu0 %515
      %517 = vrot.lane.b32.xlu0 %v507, 107
      %v518 = vpop.permute.xlu0 %517
      %519 = vrot.lane.b32.xlu0 %v508, 107
      %v520 = vpop.permute.xlu0 %519
      %v521 = vrot.slane %v514, 4
      %v522 = vrot.slane %v516, 4
      %v523 = vrot.slane %v518, 4
      %v524 = vrot.slane %v520, 4
      %v525 = vsel %vm308, %v521, %v522
      %vm526 = vcmask 875520
      %v527 = vsel %vm526, %v514, %v525
      %v528 = vsel %vm308, %v522, %v523
      %v529 = vsel %vm526, %v516, %v528
      %v530 = vsel %vm308, %v523, %v524
      %v531 = vsel %vm526, %v518, %v530
      %v532 = vsel %vm526, %v520, %v524
      %537 = vst [vmem:[#allocation2 + $0xc4] sm:$0xff] %v527
      %538 = vst [vmem:[#allocation2 + $0xcc] sm:$0xff] %v529
      %539 = vst [vmem:[#allocation2 + $0xd4] sm:$0xff] %v531
      %540 = vst [vmem:[#allocation2 + $0xdc] sm:$0xf] %v532
      %v541 = vld [vmem:[%s273] sm:$0xff]
      %v542 = vld [vmem:[%s273 + $0x8] sm:$0xff]
      %v543 = vld [vmem:[%s273 + $0x10] sm:$0xff]
      %v544 = vld [vmem:[%s273 + $0x18] sm:$0xff]
      %549 = vrot.lane.b32.xlu0 %v541, 106
      %v550 = vpop.permute.xlu0 %549
      %551 = vrot.lane.b32.xlu0 %v542, 106
      %v552 = vpop.permute.xlu0 %551
      %553 = vrot.lane.b32.xlu0 %v543, 106
      %v554 = vpop.permute.xlu0 %553
      %555 = vrot.lane.b32.xlu0 %v544, 106
      %v556 = vpop.permute.xlu0 %555
      %v557 = vrot.slane %v550, 4
      %v558 = vrot.slane %v552, 4
      %v559 = vrot.slane %v554, 4
      %v560 = vrot.slane %v556, 4
      %v561 = vsel %vm308, %v557, %v558
      %vm562 = vcmask 867328
      %v563 = vsel %vm562, %v550, %v561
      %v564 = vsel %vm308, %v558, %v559
      %v565 = vsel %vm562, %v552, %v564
      %v566 = vsel %vm308, %v559, %v560
      %v567 = vsel %vm562, %v554, %v566
      %v568 = vsel %vm562, %v556, %v560
      %573 = vst [vmem:[#allocation2 + $0xe0] sm:$0xff] %v563
      %574 = vst [vmem:[#allocation2 + $0xe8] sm:$0xff] %v565
      %575 = vst [vmem:[#allocation2 + $0xf0] sm:$0xff] %v567
      %576 = vst [vmem:[#allocation2 + $0xf8] sm:$0xf] %v568
      %v577 = vld [vmem:[%s273] sm:$0xff]
      %v578 = vld [vmem:[%s273 + $0x8] sm:$0xff]
      %v579 = vld [vmem:[%s273 + $0x10] sm:$0xff]
      %v580 = vld [vmem:[%s273 + $0x18] sm:$0xff]
      %585 = vrot.lane.b32.xlu0 %v577, 28
      %v586 = vpop.permute.xlu0 %585
      %587 = vrot.lane.b32.xlu0 %v578, 28
      %v588 = vpop.permute.xlu0 %587
      %589 = vrot.lane.b32.xlu0 %v579, 28
      %v590 = vpop.permute.xlu0 %589
      %591 = vrot.lane.b32.xlu0 %v580, 28
      %v592 = vpop.permute.xlu0 %591
      %v593 = vrot.slane %v586, 4
      %v594 = vrot.slane %v588, 4
      %v595 = vrot.slane %v590, 4
      %v596 = vrot.slane %v592, 4
      %v597 = vsel %vm308, %v593, %v594
      %vm598 = vcmask 228352
      %v599 = vsel %vm598, %v586, %v597
      %v600 = vsel %vm308, %v594, %v595
      %v601 = vsel %vm598, %v588, %v600
      %v602 = vsel %vm308, %v595, %v596
      %v603 = vsel %vm598, %v590, %v602
      %v604 = vsel %vm598, %v592, %v596
      %609 = vst [vmem:[#allocation2 + $0xfc] sm:$0xff] %v599
      %610 = vst [vmem:[#allocation2 + $0x104] sm:$0xff] %v601
      %611 = vst [vmem:[#allocation2 + $0x10c] sm:$0xff] %v603
      %612 = vst [vmem:[#allocation2 + $0x114] sm:$0xf] %v604
      %v613 = vld [vmem:[%s273] sm:$0xff]
      %v614 = vld [vmem:[%s273 + $0x8] sm:$0xff]
      %v615 = vld [vmem:[%s273 + $0x10] sm:$0xff]
      %v616 = vld [vmem:[%s273 + $0x18] sm:$0xff]
      %621 = vrot.lane.b32.xlu0 %v613, 27
      %v622 = vpop.permute.xlu0 %621
      %623 = vrot.lane.b32.xlu0 %v614, 27
      %v624 = vpop.permute.xlu0 %623
      %625 = vrot.lane.b32.xlu0 %v615, 27
      %v626 = vpop.permute.xlu0 %625
      %627 = vrot.lane.b32.xlu0 %v616, 27
      %v628 = vpop.permute.xlu0 %627
      %v629 = vrot.slane %v622, 4
      %v630 = vrot.slane %v624, 4
      %v631 = vrot.slane %v626, 4
      %v632 = vrot.slane %v628, 4
      %v633 = vsel %vm308, %v629, %v630
      %vm634 = vcmask 220160
      %v635 = vsel %vm634, %v622, %v633
      %v636 = vsel %vm308, %v630, %v631
      %v637 = vsel %vm634, %v624, %v636
      %v638 = vsel %vm308, %v631, %v632
      %v639 = vsel %vm634, %v626, %v638
      %v640 = vsel %vm634, %v628, %v632
      %645 = vst [vmem:[#allocation2 + $0x118] sm:$0xff] %v635
      %646 = vst [vmem:[#allocation2 + $0x120] sm:$0xff] %v637
      %647 = vst [vmem:[#allocation2 + $0x128] sm:$0xff] %v639
      %648 = vst [vmem:[#allocation2 + $0x130] sm:$0xf] %v640
      %v649 = vld [vmem:[%s273] sm:$0xff]
      %v650 = vld [vmem:[%s273 + $0x8] sm:$0xff]
      %v651 = vld [vmem:[%s273 + $0x10] sm:$0xff]
      %v652 = vld [vmem:[%s273 + $0x18] sm:$0xff]
      %657 = vrot.lane.b32.xlu0 %v649, 26
      %v658 = vpop.permute.xlu0 %657
      %659 = vrot.lane.b32.xlu0 %v650, 26
      %v660 = vpop.permute.xlu0 %659
      %661 = vrot.lane.b32.xlu0 %v651, 26
      %v662 = vpop.permute.xlu0 %661
      %663 = vrot.lane.b32.xlu0 %v652, 26
      %v664 = vpop.permute.xlu0 %663
      %v665 = vrot.slane %v658, 4
      %v666 = vrot.slane %v660, 4
      %v667 = vrot.slane %v662, 4
      %v668 = vrot.slane %v664, 4
      %v669 = vsel %vm308, %v665, %v666
      %vm670 = vcmask 211968
      %v671 = vsel %vm670, %v658, %v669
      %v672 = vsel %vm308, %v666, %v667
      %v673 = vsel %vm670, %v660, %v672
      %v674 = vsel %vm308, %v667, %v668
      %v675 = vsel %vm670, %v662, %v674
      %v676 = vsel %vm670, %v664, %v668
      %681 = vst [vmem:[#allocation2 + $0x134] sm:$0xff] %v671
      %682 = vst [vmem:[#allocation2 + $0x13c] sm:$0xff] %v673
      %683 = vst [vmem:[#allocation2 + $0x144] sm:$0xff] %v675
      %684 = vst [vmem:[#allocation2 + $0x14c] sm:$0xf] %v676
      %v685 = vld [vmem:[%s273] sm:$0xff]
      %v686 = vld [vmem:[%s273 + $0x8] sm:$0xff]
      %v687 = vld [vmem:[%s273 + $0x10] sm:$0xff]
      %v688 = vld [vmem:[%s273 + $0x18] sm:$0xff]
      %693 = vrot.lane.b32.xlu0 %v685, 18
      %v694 = vpop.permute.xlu0 %693
      %695 = vrot.lane.b32.xlu0 %v686, 18
      %v696 = vpop.permute.xlu0 %695
      %697 = vrot.lane.b32.xlu0 %v687, 18
      %v698 = vpop.permute.xlu0 %697
      %699 = vrot.lane.b32.xlu0 %v688, 18
      %v700 = vpop.permute.xlu0 %699
      %v701 = vrot.slane %v694, 4
      %v702 = vrot.slane %v696, 4
      %v703 = vrot.slane %v698, 4
      %v704 = vrot.slane %v700, 4
      %v705 = vsel %vm308, %v701, %v702
      %vm706 = vcmask 146432
      %v707 = vsel %vm706, %v694, %v705
      %v708 = vsel %vm308, %v702, %v703
      %v709 = vsel %vm706, %v696, %v708
      %v710 = vsel %vm308, %v703, %v704
      %v711 = vsel %vm706, %v698, %v710
      %v712 = vsel %vm706, %v700, %v704
      %717 = vst [vmem:[#allocation2 + $0x150] sm:$0xff] %v707
      %718 = vst [vmem:[#allocation2 + $0x158] sm:$0xff] %v709
      %719 = vst [vmem:[#allocation2 + $0x160] sm:$0xff] %v711
      %720 = vst [vmem:[#allocation2 + $0x168] sm:$0xf] %v712
      %v721 = vld [vmem:[%s273] sm:$0xff]
      %v722 = vld [vmem:[%s273 + $0x8] sm:$0xff]
      %v723 = vld [vmem:[%s273 + $0x10] sm:$0xff]
      %v724 = vld [vmem:[%s273 + $0x18] sm:$0xff]
      %729 = vrot.lane.b32.xlu0 %v721, 17
      %v730 = vpop.permute.xlu0 %729
      %731 = vrot.lane.b32.xlu0 %v722, 17
      %v732 = vpop.permute.xlu0 %731
      %733 = vrot.lane.b32.xlu0 %v723, 17
      %v734 = vpop.permute.xlu0 %733
      %735 = vrot.lane.b32.xlu0 %v724, 17
      %v736 = vpop.permute.xlu0 %735
      %v737 = vrot.slane %v730, 4
      %v738 = vrot.slane %v732, 4
      %v739 = vrot.slane %v734, 4
      %v740 = vrot.slane %v736, 4
      %v741 = vsel %vm308, %v737, %v738
      %vm742 = vcmask 138240
      %v743 = vsel %vm742, %v730, %v741
      %v744 = vsel %vm308, %v738, %v739
      %v745 = vsel %vm742, %v732, %v744
      %v746 = vsel %vm308, %v739, %v740
      %v747 = vsel %vm742, %v734, %v746
      %v748 = vsel %vm742, %v736, %v740
      %753 = vst [vmem:[#allocation2 + $0x16c] sm:$0xff] %v743
      %754 = vst [vmem:[#allocation2 + $0x174] sm:$0xff] %v745
      %755 = vst [vmem:[#allocation2 + $0x17c] sm:$0xff] %v747
      %756 = vst [vmem:[#allocation2 + $0x184] sm:$0xf] %v748
      %v757 = vld [vmem:[%s273] sm:$0xff]
      %v758 = vld [vmem:[%s273 + $0x8] sm:$0xff]
      %v759 = vld [vmem:[%s273 + $0x10] sm:$0xff]
      %v760 = vld [vmem:[%s273 + $0x18] sm:$0xff]
      %765 = vrot.lane.b32.xlu0 %v757, 16
      %v766 = vpop.permute.xlu0 %765
      %767 = vrot.lane.b32.xlu0 %v758, 16
      %v768 = vpop.permute.xlu0 %767
      %769 = vrot.lane.b32.xlu0 %v759, 16
      %v770 = vpop.permute.xlu0 %769
      %771 = vrot.lane.b32.xlu0 %v760, 16
      %v772 = vpop.permute.xlu0 %771
      %v773 = vrot.slane %v766, 4
      %v774 = vrot.slane %v768, 4
      %v775 = vrot.slane %v770, 4
      %v776 = vrot.slane %v772, 4
      %v777 = vsel %vm308, %v773, %v774
      %vm778 = vcmask 130048
      %v779 = vsel %vm778, %v766, %v777
      %v780 = vsel %vm308, %v774, %v775
      %v781 = vsel %vm778, %v768, %v780
      %v782 = vsel %vm308, %v775, %v776
      %v783 = vsel %vm778, %v770, %v782
      %v784 = vsel %vm778, %v772, %v776
      %789 = vst [vmem:[#allocation2 + $0x188] sm:$0xff] %v779
      %790 = vst [vmem:[#allocation2 + $0x190] sm:$0xff] %v781
      %791 = vst [vmem:[#allocation2 + $0x198] sm:$0xff] %v783
      %792 = vst [vmem:[#allocation2 + $0x1a0] sm:$0xf] %v784
      %v793 = vld [vmem:[%s273] sm:$0xff]
      %v794 = vld [vmem:[%s273 + $0x8] sm:$0xff]
      %v795 = vld [vmem:[%s273 + $0x10] sm:$0xff]
      %v796 = vld [vmem:[%s273 + $0x18] sm:$0xff]
      %801 = vrot.lane.b32.xlu0 %v793, 8
      %v802 = vpop.permute.xlu0 %801
      %803 = vrot.lane.b32.xlu0 %v794, 8
      %v804 = vpop.permute.xlu0 %803
      %805 = vrot.lane.b32.xlu0 %v795, 8
      %v806 = vpop.permute.xlu0 %805
      %807 = vrot.lane.b32.xlu0 %v796, 8
      %v808 = vpop.permute.xlu0 %807
      %v809 = vrot.slane %v802, 4
      %v810 = vrot.slane %v804, 4
      %v811 = vrot.slane %v806, 4
      %v812 = vrot.slane %v808, 4
      %v813 = vsel %vm308, %v809, %v810
      %vm814 = vcmask 64512
      %v815 = vsel %vm814, %v802, %v813
      %v816 = vsel %vm308, %v810, %v811
      %v817 = vsel %vm814, %v804, %v816
      %v818 = vsel %vm308, %v811, %v812
      %v819 = vsel %vm814, %v806, %v818
      %v820 = vsel %vm814, %v808, %v812
      %825 = vst [vmem:[#allocation2 + $0x1a4] sm:$0xff] %v815
      %826 = vst [vmem:[#allocation2 + $0x1ac] sm:$0xff] %v817
      %827 = vst [vmem:[#allocation2 + $0x1b4] sm:$0xff] %v819
      %828 = vst [vmem:[#allocation2 + $0x1bc] sm:$0xf] %v820
      %v829 = vld [vmem:[%s273] sm:$0xff]
      %v830 = vld [vmem:[%s273 + $0x8] sm:$0xff]
      %v831 = vld [vmem:[%s273 + $0x10] sm:$0xff]
      %v832 = vld [vmem:[%s273 + $0x18] sm:$0xff]
      %837 = vrot.lane.b32.xlu0 %v829, 7
      %v838 = vpop.permute.xlu0 %837
      %839 = vrot.lane.b32.xlu0 %v830, 7
      %v840 = vpop.permute.xlu0 %839
      %841 = vrot.lane.b32.xlu0 %v831, 7
      %v842 = vpop.permute.xlu0 %841
      %843 = vrot.lane.b32.xlu0 %v832, 7
      %v844 = vpop.permute.xlu0 %843
      %v845 = vrot.slane %v838, 4
      %v846 = vrot.slane %v840, 4
      %v847 = vrot.slane %v842, 4
      %v848 = vrot.slane %v844, 4
      %v849 = vsel %vm308, %v845, %v846
      %vm850 = vcmask 56320
      %v851 = vsel %vm850, %v838, %v849
      %v852 = vsel %vm308, %v846, %v847
      %v853 = vsel %vm850, %v840, %v852
      %v854 = vsel %vm308, %v847, %v848
      %v855 = vsel %vm850, %v842, %v854
      %v856 = vsel %vm850, %v844, %v848
      %861 = vst [vmem:[#allocation2 + $0x1c0] sm:$0xff] %v851
      %862 = vst [vmem:[#allocation2 + $0x1c8] sm:$0xff] %v853
      %863 = vst [vmem:[#allocation2 + $0x1d0] sm:$0xff] %v855
      %864 = vst [vmem:[#allocation2 + $0x1d8] sm:$0xf] %v856
      %v865 = vld [vmem:[%s273] sm:$0xff]
      %v866 = vld [vmem:[%s273 + $0x8] sm:$0xff]
      %v867 = vld [vmem:[%s273 + $0x10] sm:$0xff]
      %v868 = vld [vmem:[%s273 + $0x18] sm:$0xff]
      %873 = vrot.lane.b32.xlu0 %v865, 6
      %v874 = vpop.permute.xlu0 %873
      %875 = vrot.lane.b32.xlu0 %v866, 6
      %v876 = vpop.permute.xlu0 %875
      %877 = vrot.lane.b32.xlu0 %v867, 6
      %v878 = vpop.permute.xlu0 %877
      %879 = vrot.lane.b32.xlu0 %v868, 6
      %v880 = vpop.permute.xlu0 %879
      %v881 = vrot.slane %v874, 4
      %v882 = vrot.slane %v876, 4
      %v883 = vrot.slane %v878, 4
      %v884 = vrot.slane %v880, 4
      %v885 = vsel %vm308, %v881, %v882
      %vm886 = vcmask 48128
      %v887 = vsel %vm886, %v874, %v885
      %v888 = vsel %vm308, %v882, %v883
      %v889 = vsel %vm886, %v876, %v888
      %v890 = vsel %vm308, %v883, %v884
      %v891 = vsel %vm886, %v878, %v890
      %v892 = vsel %vm886, %v880, %v884
      %897 = vst [vmem:[#allocation2 + $0x1dc] sm:$0xff] %v887
      %898 = vst [vmem:[#allocation2 + $0x1e4] sm:$0xff] %v889
      %899 = vst [vmem:[#allocation2 + $0x1ec] sm:$0xff] %v891
      %900 = vst [vmem:[#allocation2 + $0x1f4] sm:$0xf] %v892
      %v901 = vld [vmem:[%s273 + $0x4] sm:$0xff]
      %v902 = vld [vmem:[%s273 + $0xc] sm:$0xff]
      %v903 = vld [vmem:[%s273 + $0x14] sm:$0xff]
      %v904 = vld [vmem:[%s273 + $0x1c] sm:$0xff]
      %909 = vrot.lane.b32.xlu0 %v901, 56
      %v910 = vpop.permute.xlu0 %909
      %911 = vrot.lane.b32.xlu0 %v902, 56
      %v912 = vpop.permute.xlu0 %911
      %913 = vrot.lane.b32.xlu0 %v903, 56
      %v914 = vpop.permute.xlu0 %913
      %915 = vrot.lane.b32.xlu0 %v904, 56
      %v916 = vpop.permute.xlu0 %915
      %v917 = vrot.slane %v910, 4
      %v918 = vrot.slane %v912, 4
      %v919 = vrot.slane %v914, 4
      %v920 = vrot.slane %v916, 4
      %v921 = vsel %vm308, %v917, %v918
      %vm922 = vcmask 457728
      %v923 = vsel %vm922, %v910, %v921
      %v924 = vsel %vm308, %v918, %v919
      %v925 = vsel %vm922, %v912, %v924
      %v926 = vsel %vm308, %v919, %v920
      %v927 = vsel %vm922, %v914, %v926
      %v928 = vsel %vm922, %v916, %v920
      %933 = vst [vmem:[#allocation2 + $0x1f8] sm:$0xff] %v923
      %934 = vst [vmem:[#allocation2 + $0x200] sm:$0xff] %v925
      %935 = vst [vmem:[#allocation2 + $0x208] sm:$0xff] %v927
      %936 = vst [vmem:[#allocation2 + $0x210] sm:$0xf] %v928
      %v937 = vld [vmem:[%s273 + $0x4] sm:$0xff]
      %v938 = vld [vmem:[%s273 + $0xc] sm:$0xff]
      %v939 = vld [vmem:[%s273 + $0x14] sm:$0xff]
      %v940 = vld [vmem:[%s273 + $0x1c] sm:$0xff]
      %945 = vrot.lane.b32.xlu0 %v937, 55
      %v946 = vpop.permute.xlu0 %945
      %947 = vrot.lane.b32.xlu0 %v938, 55
      %v948 = vpop.permute.xlu0 %947
      %949 = vrot.lane.b32.xlu0 %v939, 55
      %v950 = vpop.permute.xlu0 %949
      %951 = vrot.lane.b32.xlu0 %v940, 55
      %v952 = vpop.permute.xlu0 %951
      %v953 = vrot.slane %v946, 4
      %v954 = vrot.slane %v948, 4
      %v955 = vrot.slane %v950, 4
      %v956 = vrot.slane %v952, 4
      %v957 = vsel %vm308, %v953, %v954
      %vm958 = vcmask 449536
      %v959 = vsel %vm958, %v946, %v957
      %v960 = vsel %vm308, %v954, %v955
      %v961 = vsel %vm958, %v948, %v960
      %v962 = vsel %vm308, %v955, %v956
      %v963 = vsel %vm958, %v950, %v962
      %v964 = vsel %vm958, %v952, %v956
      %969 = vst [vmem:[#allocation2 + $0x214] sm:$0xff] %v959
      %970 = vst [vmem:[#allocation2 + $0x21c] sm:$0xff] %v961
      %971 = vst [vmem:[#allocation2 + $0x224] sm:$0xff] %v963
      %972 = vst [vmem:[#allocation2 + $0x22c] sm:$0xf] %v964
      %v973 = vld [vmem:[%s273 + $0x4] sm:$0xff]
      %v974 = vld [vmem:[%s273 + $0xc] sm:$0xff]
      %v975 = vld [vmem:[%s273 + $0x14] sm:$0xff]
      %v976 = vld [vmem:[%s273 + $0x1c] sm:$0xff]
      %981 = vrot.lane.b32.xlu0 %v973, 54
      %v982 = vpop.permute.xlu0 %981
      %983 = vrot.lane.b32.xlu0 %v974, 54
      %v984 = vpop.permute.xlu0 %983
      %985 = vrot.lane.b32.xlu0 %v975, 54
      %v986 = vpop.permute.xlu0 %985
      %987 = vrot.lane.b32.xlu0 %v976, 54
      %v988 = vpop.permute.xlu0 %987
      %v989 = vrot.slane %v982, 4
      %v990 = vrot.slane %v984, 4
      %v991 = vrot.slane %v986, 4
      %v992 = vrot.slane %v988, 4
      %v993 = vsel %vm308, %v989, %v990
      %vm994 = vcmask 441344
      %v995 = vsel %vm994, %v982, %v993
      %v996 = vsel %vm308, %v990, %v991
      %v997 = vsel %vm994, %v984, %v996
      %v998 = vsel %vm308, %v991, %v992
      %v999 = vsel %vm994, %v986, %v998
      %v1000 = vsel %vm994, %v988, %v992
      %1005 = vst [vmem:[#allocation2 + $0x230] sm:$0xff] %v995
      %1006 = vst [vmem:[#allocation2 + $0x238] sm:$0xff] %v997
      %1007 = vst [vmem:[#allocation2 + $0x240] sm:$0xff] %v999
      %1008 = vst [vmem:[#allocation2 + $0x248] sm:$0xf] %v1000
      %v1009 = vld [vmem:[%s273 + $0x4] sm:$0xff]
      %v1010 = vld [vmem:[%s273 + $0xc] sm:$0xff]
      %v1011 = vld [vmem:[%s273 + $0x14] sm:$0xff]
      %v1012 = vld [vmem:[%s273 + $0x1c] sm:$0xff]
      %1017 = vrot.lane.b32.xlu0 %v1009, 46
      %v1018 = vpop.permute.xlu0 %1017
      %1019 = vrot.lane.b32.xlu0 %v1010, 46
      %v1020 = vpop.permute.xlu0 %1019
      %1021 = vrot.lane.b32.xlu0 %v1011, 46
      %v1022 = vpop.permute.xlu0 %1021
      %1023 = vrot.lane.b32.xlu0 %v1012, 46
      %v1024 = vpop.permute.xlu0 %1023
      %v1025 = vrot.slane %v1018, 4
      %v1026 = vrot.slane %v1020, 4
      %v1027 = vrot.slane %v1022, 4
      %v1028 = vrot.slane %v1024, 4
      %v1029 = vsel %vm308, %v1025, %v1026
      %vm1030 = vcmask 375808
      %v1031 = vsel %vm1030, %v1018, %v1029
      %v1032 = vsel %vm308, %v1026, %v1027
      %v1033 = vsel %vm1030, %v1020, %v1032
      %v1034 = vsel %vm308, %v1027, %v1028
      %v1035 = vsel %vm1030, %v1022, %v1034
      %v1036 = vsel %vm1030, %v1024, %v1028
      %1041 = vst [vmem:[#allocation2 + $0x24c] sm:$0xff] %v1031
      %1042 = vst [vmem:[#allocation2 + $0x254] sm:$0xff] %v1033
      %1043 = vst [vmem:[#allocation2 + $0x25c] sm:$0xff] %v1035
      %1044 = vst [vmem:[#allocation2 + $0x264] sm:$0xf] %v1036
      %v1045 = vld [vmem:[%s273 + $0x4] sm:$0xff]
      %v1046 = vld [vmem:[%s273 + $0xc] sm:$0xff]
      %v1047 = vld [vmem:[%s273 + $0x14] sm:$0xff]
      %v1048 = vld [vmem:[%s273 + $0x1c] sm:$0xff]
      %1053 = vrot.lane.b32.xlu0 %v1045, 45
      %v1054 = vpop.permute.xlu0 %1053
      %1055 = vrot.lane.b32.xlu0 %v1046, 45
      %v1056 = vpop.permute.xlu0 %1055
      %1057 = vrot.lane.b32.xlu0 %v1047, 45
      %v1058 = vpop.permute.xlu0 %1057
      %1059 = vrot.lane.b32.xlu0 %v1048, 45
      %v1060 = vpop.permute.xlu0 %1059
      %v1061 = vrot.slane %v1054, 4
      %v1062 = vrot.slane %v1056, 4
      %v1063 = vrot.slane %v1058, 4
      %v1064 = vrot.slane %v1060, 4
      %v1065 = vsel %vm308, %v1061, %v1062
      %vm1066 = vcmask 367616
      %v1067 = vsel %vm1066, %v1054, %v1065
      %v1068 = vsel %vm308, %v1062, %v1063
      %v1069 = vsel %vm1066, %v1056, %v1068
      %v1070 = vsel %vm308, %v1063, %v1064
      %v1071 = vsel %vm1066, %v1058, %v1070
      %v1072 = vsel %vm1066, %v1060, %v1064
      %1077 = vst [vmem:[#allocation2 + $0x268] sm:$0xff] %v1067
      %1078 = vst [vmem:[#allocation2 + $0x270] sm:$0xff] %v1069
      %1079 = vst [vmem:[#allocation2 + $0x278] sm:$0xff] %v1071
      %1080 = vst [vmem:[#allocation2 + $0x280] sm:$0xf] %v1072
      %v1081 = vld [vmem:[%s273 + $0x4] sm:$0xff]
      %v1082 = vld [vmem:[%s273 + $0xc] sm:$0xff]
      %v1083 = vld [vmem:[%s273 + $0x14] sm:$0xff]
      %v1084 = vld [vmem:[%s273 + $0x1c] sm:$0xff]
      %1089 = vrot.lane.b32.xlu0 %v1081, 44
      %v1090 = vpop.permute.xlu0 %1089
      %1091 = vrot.lane.b32.xlu0 %v1082, 44
      %v1092 = vpop.permute.xlu0 %1091
      %1093 = vrot.lane.b32.xlu0 %v1083, 44
      %v1094 = vpop.permute.xlu0 %1093
      %1095 = vrot.lane.b32.xlu0 %v1084, 44
      %v1096 = vpop.permute.xlu0 %1095
      %v1097 = vrot.slane %v1090, 4
      %v1098 = vrot.slane %v1092, 4
      %v1099 = vrot.slane %v1094, 4
      %v1100 = vrot.slane %v1096, 4
      %v1101 = vsel %vm308, %v1097, %v1098
      %vm1102 = vcmask 359424
      %v1103 = vsel %vm1102, %v1090, %v1101
      %v1104 = vsel %vm308, %v1098, %v1099
      %v1105 = vsel %vm1102, %v1092, %v1104
      %v1106 = vsel %vm308, %v1099, %v1100
      %v1107 = vsel %vm1102, %v1094, %v1106
      %v1108 = vsel %vm1102, %v1096, %v1100
      %1113 = vst [vmem:[#allocation2 + $0x284] sm:$0xff] %v1103
      %1114 = vst [vmem:[#allocation2 + $0x28c] sm:$0xff] %v1105
      %1115 = vst [vmem:[#allocation2 + $0x294] sm:$0xff] %v1107
      %1116 = vst [vmem:[#allocation2 + $0x29c] sm:$0xf] %v1108
      %v1117 = vld [vmem:[%s273 + $0x4] sm:$0xff]
      %v1118 = vld [vmem:[%s273 + $0xc] sm:$0xff]
      %v1119 = vld [vmem:[%s273 + $0x14] sm:$0xff]
      %v1120 = vld [vmem:[%s273 + $0x1c] sm:$0xff]
      %1125 = vrot.lane.b32.xlu0 %v1117, 36
      %v1126 = vpop.permute.xlu0 %1125
      %1127 = vrot.lane.b32.xlu0 %v1118, 36
      %v1128 = vpop.permute.xlu0 %1127
      %1129 = vrot.lane.b32.xlu0 %v1119, 36
      %v1130 = vpop.permute.xlu0 %1129
      %1131 = vrot.lane.b32.xlu0 %v1120, 36
      %v1132 = vpop.permute.xlu0 %1131
      %v1133 = vrot.slane %v1126, 4
      %v1134 = vrot.slane %v1128, 4
      %v1135 = vrot.slane %v1130, 4
      %v1136 = vrot.slane %v1132, 4
      %v1137 = vsel %vm308, %v1133, %v1134
      %vm1138 = vcmask 293888
      %v1139 = vsel %vm1138, %v1126, %v1137
      %v1140 = vsel %vm308, %v1134, %v1135
      %v1141 = vsel %vm1138, %v1128, %v1140
      %v1142 = vsel %vm308, %v1135, %v1136
      %v1143 = vsel %vm1138, %v1130, %v1142
      %v1144 = vsel %vm1138, %v1132, %v1136
      %1149 = vst [vmem:[#allocation2 + $0x2a0] sm:$0xff] %v1139
      %1150 = vst [vmem:[#allocation2 + $0x2a8] sm:$0xff] %v1141
      %1151 = vst [vmem:[#allocation2 + $0x2b0] sm:$0xff] %v1143
      %1152 = vst [vmem:[#allocation2 + $0x2b8] sm:$0xf] %v1144
      %v1153 = vld [vmem:[%s273 + $0x4] sm:$0xff]
      %v1154 = vld [vmem:[%s273 + $0xc] sm:$0xff]
      %v1155 = vld [vmem:[%s273 + $0x14] sm:$0xff]
      %v1156 = vld [vmem:[%s273 + $0x1c] sm:$0xff]
      %1161 = vrot.lane.b32.xlu0 %v1153, 35
      %v1162 = vpop.permute.xlu0 %1161
      %1163 = vrot.lane.b32.xlu0 %v1154, 35
      %v1164 = vpop.permute.xlu0 %1163
      %1165 = vrot.lane.b32.xlu0 %v1155, 35
      %v1166 = vpop.permute.xlu0 %1165
      %1167 = vrot.lane.b32.xlu0 %v1156, 35
      %v1168 = vpop.permute.xlu0 %1167
      %v1169 = vrot.slane %v1162, 4
      %v1170 = vrot.slane %v1164, 4
      %v1171 = vrot.slane %v1166, 4
      %v1172 = vrot.slane %v1168, 4
      %v1173 = vsel %vm308, %v1169, %v1170
      %vm1174 = vcmask 285696
      %v1175 = vsel %vm1174, %v1162, %v1173
      %v1176 = vsel %vm308, %v1170, %v1171
      %v1177 = vsel %vm1174, %v1164, %v1176
      %v1178 = vsel %vm308, %v1171, %v1172
      %v1179 = vsel %vm1174, %v1166, %v1178
      %v1180 = vsel %vm1174, %v1168, %v1172
      %1185 = vst [vmem:[#allocation2 + $0x2bc] sm:$0xff] %v1175
      %1186 = vst [vmem:[#allocation2 + $0x2c4] sm:$0xff] %v1177
      %1187 = vst [vmem:[#allocation2 + $0x2cc] sm:$0xff] %v1179
      %1188 = vst [vmem:[#allocation2 + $0x2d4] sm:$0xf] %v1180
      %v1189 = vld [vmem:[%s273 + $0x4] sm:$0xff]
      %v1190 = vld [vmem:[%s273 + $0xc] sm:$0xff]
      %v1191 = vld [vmem:[%s273 + $0x14] sm:$0xff]
      %v1192 = vld [vmem:[%s273 + $0x1c] sm:$0xff]
      %1197 = vrot.lane.b32.xlu0 %v1189, 34
      %v1198 = vpop.permute.xlu0 %1197
      %1199 = vrot.lane.b32.xlu0 %v1190, 34
      %v1200 = vpop.permute.xlu0 %1199
      %1201 = vrot.lane.b32.xlu0 %v1191, 34
      %v1202 = vpop.permute.xlu0 %1201
      %1203 = vrot.lane.b32.xlu0 %v1192, 34
      %v1204 = vpop.permute.xlu0 %1203
      %v1205 = vrot.slane %v1198, 4
      %v1206 = vrot.slane %v1200, 4
      %v1207 = vrot.slane %v1202, 4
      %v1208 = vrot.slane %v1204, 4
      %v1209 = vsel %vm308, %v1205, %v1206
      %vm1210 = vcmask 277504
      %v1211 = vsel %vm1210, %v1198, %v1209
      %v1212 = vsel %vm308, %v1206, %v1207
      %v1213 = vsel %vm1210, %v1200, %v1212
      %v1214 = vsel %vm308, %v1207, %v1208
      %v1215 = vsel %vm1210, %v1202, %v1214
      %v1216 = vsel %vm1210, %v1204, %v1208
      %1221 = vst [vmem:[#allocation2 + $0x2d8] sm:$0xff] %v1211
      %1222 = vst [vmem:[#allocation2 + $0x2e0] sm:$0xff] %v1213
      %1223 = vst [vmem:[#allocation2 + $0x2e8] sm:$0xff] %v1215
      %1224 = vst [vmem:[#allocation2 + $0x2f0] sm:$0xf] %v1216
      %v1225 = vld [vmem:[%s1] sm:$0xff]
      %v1226 = vld [vmem:[%s1 + $0x8] sm:$0xff]
      %v1227 = vld [vmem:[#allocation2] sm:$0xff]
      %v1228 = vld [vmem:[#allocation2 + $0x8] sm:$0xff]
      %v1229 = vld [vmem:[#allocation2 + $0x10] sm:$0xff]
      %v1230 = vld [vmem:[#allocation2 + $0x18] sm:$0xf]
      %v1231 = vld [vmem:[#allocation2 + $0x1c] sm:$0xff]
      %v1232 = vld [vmem:[#allocation2 + $0x24] sm:$0xff]
      %v1233 = vld [vmem:[#allocation2 + $0x2c] sm:$0xff]
      %v1234 = vld [vmem:[#allocation2 + $0x34] sm:$0xf]
      %v1235 = vld [vmem:[#allocation2 + $0x38] sm:$0xff]
      %v1236 = vld [vmem:[#allocation2 + $0x40] sm:$0xff]
      %v1237 = vld [vmem:[#allocation2 + $0x48] sm:$0xff]
      %v1238 = vld [vmem:[#allocation2 + $0x50] sm:$0xf]
      %v1239 = vld [vmem:[#allocation2 + $0x54] sm:$0xff]
      %v1240 = vld [vmem:[#allocation2 + $0x5c] sm:$0xff]
      %v1241 = vld [vmem:[#allocation2 + $0x64] sm:$0xff]
      %v1242 = vld [vmem:[#allocation2 + $0x6c] sm:$0xf]
      %v1243 = vld [vmem:[#allocation2 + $0x70] sm:$0xff]
      %v1244 = vld [vmem:[#allocation2 + $0x78] sm:$0xff]
      %v1245 = vld [vmem:[#allocation2 + $0x80] sm:$0xff]
      %v1246 = vld [vmem:[#allocation2 + $0x88] sm:$0xf]
      %v1247 = vld [vmem:[#allocation2 + $0x8c] sm:$0xff]
      %v1248 = vld [vmem:[#allocation2 + $0x94] sm:$0xff]
      %v1249 = vld [vmem:[#allocation2 + $0x9c] sm:$0xff]
      %v1250 = vld [vmem:[#allocation2 + $0xa4] sm:$0xf]
      %v1251 = vld [vmem:[#allocation2 + $0xa8] sm:$0xff]
      %v1252 = vld [vmem:[#allocation2 + $0xb0] sm:$0xff]
      %v1253 = vld [vmem:[#allocation2 + $0xb8] sm:$0xff]
      %v1254 = vld [vmem:[#allocation2 + $0xc0] sm:$0xf]
      %v1255 = vld [vmem:[#allocation2 + $0xc4] sm:$0xff]
      %v1256 = vld [vmem:[#allocation2 + $0xcc] sm:$0xff]
      %v1257 = vld [vmem:[#allocation2 + $0xd4] sm:$0xff]
      %v1258 = vld [vmem:[#allocation2 + $0xdc] sm:$0xf]
      %v1259 = vld [vmem:[#allocation2 + $0xe0] sm:$0xff]
      %v1260 = vld [vmem:[#allocation2 + $0xe8] sm:$0xff]
      %v1261 = vld [vmem:[#allocation2 + $0xf0] sm:$0xff]
      %v1262 = vld [vmem:[#allocation2 + $0xf8] sm:$0xf]
      %v1263 = vld [vmem:[#allocation2 + $0xfc] sm:$0xff]
      %v1264 = vld [vmem:[#allocation2 + $0x104] sm:$0xff]
      %v1265 = vld [vmem:[#allocation2 + $0x10c] sm:$0xff]
      %v1266 = vld [vmem:[#allocation2 + $0x114] sm:$0xf]
      %v1267 = vld [vmem:[#allocation2 + $0x118] sm:$0xff]
      %v1268 = vld [vmem:[#allocation2 + $0x120] sm:$0xff]
      %v1269 = vld [vmem:[#allocation2 + $0x128] sm:$0xff]
      %v1270 = vld [vmem:[#allocation2 + $0x130] sm:$0xf]
      %v1271 = vld [vmem:[#allocation2 + $0x134] sm:$0xff]
      %v1272 = vld [vmem:[#allocation2 + $0x13c] sm:$0xff]
      %v1273 = vld [vmem:[#allocation2 + $0x144] sm:$0xff]
      %v1274 = vld [vmem:[#allocation2 + $0x14c] sm:$0xf]
      %v1275 = vld [vmem:[#allocation2 + $0x150] sm:$0xff]
      %v1276 = vld [vmem:[#allocation2 + $0x158] sm:$0xff]
      %v1277 = vld [vmem:[#allocation2 + $0x160] sm:$0xff]
      %v1278 = vld [vmem:[#allocation2 + $0x168] sm:$0xf]
      %v1279 = vld [vmem:[#allocation2 + $0x16c] sm:$0xff]
      %v1280 = vld [vmem:[#allocation2 + $0x174] sm:$0xff]
      %v1281 = vld [vmem:[#allocation2 + $0x17c] sm:$0xff]
      %v1282 = vld [vmem:[#allocation2 + $0x184] sm:$0xf]
      %v1283 = vld [vmem:[#allocation2 + $0x188] sm:$0xff]
      %v1284 = vld [vmem:[#allocation2 + $0x190] sm:$0xff]
      %v1285 = vld [vmem:[#allocation2 + $0x198] sm:$0xff]
      %v1286 = vld [vmem:[#allocation2 + $0x1a0] sm:$0xf]
      %v1287 = vld [vmem:[#allocation2 + $0x1a4] sm:$0xff]
      %v1288 = vld [vmem:[#allocation2 + $0x1ac] sm:$0xff]
      %v1289 = vld [vmem:[#allocation2 + $0x1b4] sm:$0xff]
      %v1290 = vld [vmem:[#allocation2 + $0x1bc] sm:$0xf]
      %v1291 = vld [vmem:[#allocation2 + $0x1c0] sm:$0xff]
      %v1292 = vld [vmem:[#allocation2 + $0x1c8] sm:$0xff]
      %v1293 = vld [vmem:[#allocation2 + $0x1d0] sm:$0xff]
      %v1294 = vld [vmem:[#allocation2 + $0x1d8] sm:$0xf]
      %v1295 = vld [vmem:[#allocation2 + $0x1dc] sm:$0xff]
      %v1296 = vld [vmem:[#allocation2 + $0x1e4] sm:$0xff]
      %v1297 = vld [vmem:[#allocation2 + $0x1ec] sm:$0xff]
      %v1298 = vld [vmem:[#allocation2 + $0x1f4] sm:$0xf]
      %v1299 = vld [vmem:[#allocation2 + $0x1f8] sm:$0xff]
      %v1300 = vld [vmem:[#allocation2 + $0x200] sm:$0xff]
      %v1301 = vld [vmem:[#allocation2 + $0x208] sm:$0xff]
      %v1302 = vld [vmem:[#allocation2 + $0x210] sm:$0xf]
      %v1303 = vld [vmem:[#allocation2 + $0x214] sm:$0xff]
      %v1304 = vld [vmem:[#allocation2 + $0x21c] sm:$0xff]
      %v1305 = vld [vmem:[#allocation2 + $0x224] sm:$0xff]
      %v1306 = vld [vmem:[#allocation2 + $0x22c] sm:$0xf]
      %v1307 = vld [vmem:[#allocation2 + $0x230] sm:$0xff]
      %v1308 = vld [vmem:[#allocation2 + $0x238] sm:$0xff]
      %v1309 = vld [vmem:[#allocation2 + $0x240] sm:$0xff]
      %v1310 = vld [vmem:[#allocation2 + $0x248] sm:$0xf]
      %v1311 = vld [vmem:[#allocation2 + $0x24c] sm:$0xff]
      %v1312 = vld [vmem:[#allocation2 + $0x254] sm:$0xff]
      %v1313 = vld [vmem:[#allocation2 + $0x25c] sm:$0xff]
      %v1314 = vld [vmem:[#allocation2 + $0x264] sm:$0xf]
      %v1315 = vld [vmem:[#allocation2 + $0x268] sm:$0xff]
      %v1316 = vld [vmem:[#allocation2 + $0x270] sm:$0xff]
      %v1317 = vld [vmem:[#allocation2 + $0x278] sm:$0xff]
      %v1318 = vld [vmem:[#allocation2 + $0x280] sm:$0xf]
      %v1319 = vld [vmem:[#allocation2 + $0x284] sm:$0xff]
      %v1320 = vld [vmem:[#allocation2 + $0x28c] sm:$0xff]
      %v1321 = vld [vmem:[#allocation2 + $0x294] sm:$0xff]
      %v1322 = vld [vmem:[#allocation2 + $0x29c] sm:$0xf]
      %v1323 = vld [vmem:[#allocation2 + $0x2a0] sm:$0xff]
      %v1324 = vld [vmem:[#allocation2 + $0x2a8] sm:$0xff]
      %v1325 = vld [vmem:[#allocation2 + $0x2b0] sm:$0xff]
      %v1326 = vld [vmem:[#allocation2 + $0x2b8] sm:$0xf]
      %v1327 = vld [vmem:[#allocation2 + $0x2bc] sm:$0xff]
      %v1328 = vld [vmem:[#allocation2 + $0x2c4] sm:$0xff]
      %v1329 = vld [vmem:[#allocation2 + $0x2cc] sm:$0xff]
      %v1330 = vld [vmem:[#allocation2 + $0x2d4] sm:$0xf]
      %v1331 = vld [vmem:[#allocation2 + $0x2d8] sm:$0xff]
      %v1332 = vld [vmem:[#allocation2 + $0x2e0] sm:$0xff]
      %v1333 = vld [vmem:[#allocation2 + $0x2e8] sm:$0xff]
      %v1334 = vld [vmem:[#allocation2 + $0x2f0] sm:$0xf]
      %v1335 = vld [vmem:[%s2] sm:$0xff]
      %v1336 = vld [vmem:[%s2 + $0x8] sm:$0xff]
      %1338 = vset.pattern.permute.xlu0 0
      %1339 = vperm.xlu0 %1338, %v1335
      %v1340 = vpop.permute.xlu0 %1339
      %1343 = vset.pattern.permute.xlu0 0
      %1344 = vperm.xlu0 %1343, %v1336
      %v1345 = vpop.permute.xlu0 %1344
      %v1349 = vunpack.c.l.b16 %v1225
      %v1350 = vunpack.c.h.b16 %v1225
      %v1351 = vunpack.c.l.b16 %v1226
      %v1352 = vunpack.c.h.b16 %v1226
      %v1353 = vpack.c.b16 %v1351, %v1349
      %v1354 = vpack.c.b16 %v1352, %v1350
      %v1464 = vunpack.c.l.b16 %v1227
      %v1465 = vunpack.c.h.b16 %v1227
      %v1466 = vunpack.c.l.b16 %v1228
      %v1467 = vunpack.c.h.b16 %v1228
      %v1468 = vunpack.c.l.b16 %v1229
      %v1469 = vunpack.c.h.b16 %v1229
      %v1470 = vunpack.c.l.b16 %v1230
      %v1471 = vunpack.c.l.b16 %v1231
      %v1472 = vunpack.c.h.b16 %v1231
      %v1473 = vunpack.c.l.b16 %v1232
      %v1474 = vunpack.c.h.b16 %v1232
      %v1475 = vunpack.c.l.b16 %v1233
      %v1476 = vunpack.c.h.b16 %v1233
      %v1477 = vunpack.c.l.b16 %v1234
      %v1478 = vunpack.c.l.b16 %v1235
      %v1479 = vunpack.c.h.b16 %v1235
      %v1480 = vunpack.c.l.b16 %v1236
      %v1481 = vunpack.c.h.b16 %v1236
      %v1482 = vunpack.c.l.b16 %v1237
      %v1483 = vunpack.c.h.b16 %v1237
      %v1484 = vunpack.c.l.b16 %v1238
      %v1485 = vunpack.c.l.b16 %v1239
      %v1486 = vunpack.c.h.b16 %v1239
      %v1487 = vunpack.c.l.b16 %v1240
      %v1488 = vunpack.c.h.b16 %v1240
      %v1489 = vunpack.c.l.b16 %v1241
      %v1490 = vunpack.c.h.b16 %v1241
      %v1491 = vunpack.c.l.b16 %v1242
      %v1492 = vunpack.c.l.b16 %v1243
      %v1493 = vunpack.c.h.b16 %v1243
      %v1494 = vunpack.c.l.b16 %v1244
      %v1495 = vunpack.c.h.b16 %v1244
      %v1496 = vunpack.c.l.b16 %v1245
      %v1497 = vunpack.c.h.b16 %v1245
      %v1498 = vunpack.c.l.b16 %v1246
      %v1499 = vunpack.c.l.b16 %v1247
      %v1500 = vunpack.c.h.b16 %v1247
      %v1501 = vunpack.c.l.b16 %v1248
      %v1502 = vunpack.c.h.b16 %v1248
      %v1503 = vunpack.c.l.b16 %v1249
      %v1504 = vunpack.c.h.b16 %v1249
      %v1505 = vunpack.c.l.b16 %v1250
      %v1506 = vunpack.c.l.b16 %v1251
      %v1507 = vunpack.c.h.b16 %v1251
      %v1508 = vunpack.c.l.b16 %v1252
      %v1509 = vunpack.c.h.b16 %v1252
      %v1510 = vunpack.c.l.b16 %v1253
      %v1511 = vunpack.c.h.b16 %v1253
      %v1512 = vunpack.c.l.b16 %v1254
      %v1513 = vunpack.c.l.b16 %v1255
      %v1514 = vunpack.c.h.b16 %v1255
      %v1515 = vunpack.c.l.b16 %v1256
      %v1516 = vunpack.c.h.b16 %v1256
      %v1517 = vunpack.c.l.b16 %v1257
      %v1518 = vunpack.c.h.b16 %v1257
      %v1519 = vunpack.c.l.b16 %v1258
      %v1520 = vunpack.c.l.b16 %v1259
      %v1521 = vunpack.c.h.b16 %v1259
      %v1522 = vunpack.c.l.b16 %v1260
      %v1523 = vunpack.c.h.b16 %v1260
      %v1524 = vunpack.c.l.b16 %v1261
      %v1525 = vunpack.c.h.b16 %v1261
      %v1526 = vunpack.c.l.b16 %v1262
      %v1527 = vunpack.c.l.b16 %v1263
      %v1528 = vunpack.c.h.b16 %v1263
      %v1529 = vunpack.c.l.b16 %v1264
      %v1530 = vunpack.c.h.b16 %v1264
      %v1531 = vunpack.c.l.b16 %v1265
      %v1532 = vunpack.c.h.b16 %v1265
      %v1533 = vunpack.c.l.b16 %v1266
      %v1534 = vunpack.c.l.b16 %v1267
      %v1535 = vunpack.c.h.b16 %v1267
      %v1536 = vunpack.c.l.b16 %v1268
      %v1537 = vunpack.c.h.b16 %v1268
      %v1538 = vunpack.c.l.b16 %v1269
      %v1539 = vunpack.c.h.b16 %v1269
      %v1540 = vunpack.c.l.b16 %v1270
      %v1541 = vunpack.c.l.b16 %v1271
      %v1542 = vunpack.c.h.b16 %v1271
      %v1543 = vunpack.c.l.b16 %v1272
      %v1544 = vunpack.c.h.b16 %v1272
      %v1545 = vunpack.c.l.b16 %v1273
      %v1546 = vunpack.c.h.b16 %v1273
      %v1547 = vunpack.c.l.b16 %v1274
      %v1548 = vunpack.c.l.b16 %v1275
      %v1549 = vunpack.c.h.b16 %v1275
      %v1550 = vunpack.c.l.b16 %v1276
      %v1551 = vunpack.c.h.b16 %v1276
      %v1552 = vunpack.c.l.b16 %v1277
      %v1553 = vunpack.c.h.b16 %v1277
      %v1554 = vunpack.c.l.b16 %v1278
      %v1555 = vunpack.c.l.b16 %v1279
      %v1556 = vunpack.c.h.b16 %v1279
      %v1557 = vunpack.c.l.b16 %v1280
      %v1558 = vunpack.c.h.b16 %v1280
      %v1559 = vunpack.c.l.b16 %v1281
      %v1560 = vunpack.c.h.b16 %v1281
      %v1561 = vunpack.c.l.b16 %v1282
      %v1562 = vunpack.c.l.b16 %v1283
      %v1563 = vunpack.c.h.b16 %v1283
      %v1564 = vunpack.c.l.b16 %v1284
      %v1565 = vunpack.c.h.b16 %v1284
      %v1566 = vunpack.c.l.b16 %v1285
      %v1567 = vunpack.c.h.b16 %v1285
      %v1568 = vunpack.c.l.b16 %v1286
      %v1569 = vunpack.c.l.b16 %v1287
      %v1570 = vunpack.c.h.b16 %v1287
      %v1571 = vunpack.c.l.b16 %v1288
      %v1572 = vunpack.c.h.b16 %v1288
      %v1573 = vunpack.c.l.b16 %v1289
      %v1574 = vunpack.c.h.b16 %v1289
      %v1575 = vunpack.c.l.b16 %v1290
      %v1576 = vunpack.c.l.b16 %v1291
      %v1577 = vunpack.c.h.b16 %v1291
      %v1578 = vunpack.c.l.b16 %v1292
      %v1579 = vunpack.c.h.b16 %v1292
      %v1580 = vunpack.c.l.b16 %v1293
      %v1581 = vunpack.c.h.b16 %v1293
      %v1582 = vunpack.c.l.b16 %v1294
      %v1583 = vunpack.c.l.b16 %v1295
      %v1584 = vunpack.c.h.b16 %v1295
      %v1585 = vunpack.c.l.b16 %v1296
      %v1586 = vunpack.c.h.b16 %v1296
      %v1587 = vunpack.c.l.b16 %v1297
      %v1588 = vunpack.c.h.b16 %v1297
      %v1589 = vunpack.c.l.b16 %v1298
      %v1590 = vunpack.c.l.b16 %v1299
      %v1591 = vunpack.c.h.b16 %v1299
      %v1592 = vunpack.c.l.b16 %v1300
      %v1593 = vunpack.c.h.b16 %v1300
      %v1594 = vunpack.c.l.b16 %v1301
      %v1595 = vunpack.c.h.b16 %v1301
      %v1596 = vunpack.c.l.b16 %v1302
      %v1597 = vunpack.c.l.b16 %v1303
      %v1598 = vunpack.c.h.b16 %v1303
      %v1599 = vunpack.c.l.b16 %v1304
      %v1600 = vunpack.c.h.b16 %v1304
      %v1601 = vunpack.c.l.b16 %v1305
      %v1602 = vunpack.c.h.b16 %v1305
      %v1603 = vunpack.c.l.b16 %v1306
      %v1604 = vunpack.c.l.b16 %v1307
      %v1605 = vunpack.c.h.b16 %v1307
      %v1606 = vunpack.c.l.b16 %v1308
      %v1607 = vunpack.c.h.b16 %v1308
      %v1608 = vunpack.c.l.b16 %v1309
      %v1609 = vunpack.c.h.b16 %v1309
      %v1610 = vunpack.c.l.b16 %v1310
      %v1611 = vunpack.c.l.b16 %v1311
      %v1612 = vunpack.c.h.b16 %v1311
      %v1613 = vunpack.c.l.b16 %v1312
      %v1614 = vunpack.c.h.b16 %v1312
      %v1615 = vunpack.c.l.b16 %v1313
      %v1616 = vunpack.c.h.b16 %v1313
      %v1617 = vunpack.c.l.b16 %v1314
      %v1618 = vunpack.c.l.b16 %v1315
      %v1619 = vunpack.c.h.b16 %v1315
      %v1620 = vunpack.c.l.b16 %v1316
      %v1621 = vunpack.c.h.b16 %v1316
      %v1622 = vunpack.c.l.b16 %v1317
      %v1623 = vunpack.c.h.b16 %v1317
      %v1624 = vunpack.c.l.b16 %v1318
      %v1625 = vunpack.c.l.b16 %v1319
      %v1626 = vunpack.c.h.b16 %v1319
      %v1627 = vunpack.c.l.b16 %v1320
      %v1628 = vunpack.c.h.b16 %v1320
      %v1629 = vunpack.c.l.b16 %v1321
      %v1630 = vunpack.c.h.b16 %v1321
      %v1631 = vunpack.c.l.b16 %v1322
      %v1632 = vunpack.c.l.b16 %v1323
      %v1633 = vunpack.c.h.b16 %v1323
      %v1634 = vunpack.c.l.b16 %v1324
      %v1635 = vunpack.c.h.b16 %v1324
      %v1636 = vunpack.c.l.b16 %v1325
      %v1637 = vunpack.c.h.b16 %v1325
      %v1638 = vunpack.c.l.b16 %v1326
      %v1639 = vunpack.c.l.b16 %v1327
      %v1640 = vunpack.c.h.b16 %v1327
      %v1641 = vunpack.c.l.b16 %v1328
      %v1642 = vunpack.c.h.b16 %v1328
      %v1643 = vunpack.c.l.b16 %v1329
      %v1644 = vunpack.c.h.b16 %v1329
      %v1645 = vunpack.c.l.b16 %v1330
      %v1646 = vunpack.c.l.b16 %v1331
      %v1647 = vunpack.c.h.b16 %v1331
      %v1648 = vunpack.c.l.b16 %v1332
      %v1649 = vunpack.c.h.b16 %v1332
      %v1650 = vunpack.c.l.b16 %v1333
      %v1651 = vunpack.c.h.b16 %v1333
      %v1652 = vunpack.c.l.b16 %v1334
      %v1653 = vpack.c.b16 %v1471, %v1464
      %v1654 = vpack.c.b16 %v1472, %v1465
      %v1655 = vpack.c.b16 %v1473, %v1466
      %v1656 = vpack.c.b16 %v1474, %v1467
      %v1657 = vpack.c.b16 %v1475, %v1468
      %v1658 = vpack.c.b16 %v1476, %v1469
      %v1659 = vpack.c.b16 %v1477, %v1470
      %v1660 = vpack.c.b16 %v1485, %v1478
      %v1661 = vpack.c.b16 %v1486, %v1479
      %v1662 = vpack.c.b16 %v1487, %v1480
      %v1663 = vpack.c.b16 %v1488, %v1481
      %v1664 = vpack.c.b16 %v1489, %v1482
      %v1665 = vpack.c.b16 %v1490, %v1483
      %v1666 = vpack.c.b16 %v1491, %v1484
      %v1667 = vpack.c.b16 %v1499, %v1492
      %v1668 = vpack.c.b16 %v1500, %v1493
      %v1669 = vpack.c.b16 %v1501, %v1494
      %v1670 = vpack.c.b16 %v1502, %v1495
      %v1671 = vpack.c.b16 %v1503, %v1496
      %v1672 = vpack.c.b16 %v1504, %v1497
      %v1673 = vpack.c.b16 %v1505, %v1498
      %v1674 = vpack.c.b16 %v1513, %v1506
      %v1675 = vpack.c.b16 %v1514, %v1507
      %v1676 = vpack.c.b16 %v1515, %v1508
      %v1677 = vpack.c.b16 %v1516, %v1509
      %v1678 = vpack.c.b16 %v1517, %v1510
      %v1679 = vpack.c.b16 %v1518, %v1511
      %v1680 = vpack.c.b16 %v1519, %v1512
      %v1681 = vpack.c.b16 %v1527, %v1520
      %v1682 = vpack.c.b16 %v1528, %v1521
      %v1683 = vpack.c.b16 %v1529, %v1522
      %v1684 = vpack.c.b16 %v1530, %v1523
      %v1685 = vpack.c.b16 %v1531, %v1524
      %v1686 = vpack.c.b16 %v1532, %v1525
      %v1687 = vpack.c.b16 %v1533, %v1526
      %v1688 = vpack.c.b16 %v1541, %v1534
      %v1689 = vpack.c.b16 %v1542, %v1535
      %v1690 = vpack.c.b16 %v1543, %v1536
      %v1691 = vpack.c.b16 %v1544, %v1537
      %v1692 = vpack.c.b16 %v1545, %v1538
      %v1693 = vpack.c.b16 %v1546, %v1539
      %v1694 = vpack.c.b16 %v1547, %v1540
      %v1695 = vpack.c.b16 %v1555, %v1548
      %v1696 = vpack.c.b16 %v1556, %v1549
      %v1697 = vpack.c.b16 %v1557, %v1550
      %v1698 = vpack.c.b16 %v1558, %v1551
      %v1699 = vpack.c.b16 %v1559, %v1552
      %v1700 = vpack.c.b16 %v1560, %v1553
      %v1701 = vpack.c.b16 %v1561, %v1554
      %v1702 = vpack.c.b16 %v1569, %v1562
      %v1703 = vpack.c.b16 %v1570, %v1563
      %v1704 = vpack.c.b16 %v1571, %v1564
      %v1705 = vpack.c.b16 %v1572, %v1565
      %v1706 = vpack.c.b16 %v1573, %v1566
      %v1707 = vpack.c.b16 %v1574, %v1567
      %v1708 = vpack.c.b16 %v1575, %v1568
      %v1709 = vpack.c.b16 %v1583, %v1576
      %v1710 = vpack.c.b16 %v1584, %v1577
      %v1711 = vpack.c.b16 %v1585, %v1578
      %v1712 = vpack.c.b16 %v1586, %v1579
      %v1713 = vpack.c.b16 %v1587, %v1580
      %v1714 = vpack.c.b16 %v1588, %v1581
      %v1715 = vpack.c.b16 %v1589, %v1582
      %v1716 = vpack.c.b16 %v1597, %v1590
      %v1717 = vpack.c.b16 %v1598, %v1591
      %v1718 = vpack.c.b16 %v1599, %v1592
      %v1719 = vpack.c.b16 %v1600, %v1593
      %v1720 = vpack.c.b16 %v1601, %v1594
      %v1721 = vpack.c.b16 %v1602, %v1595
      %v1722 = vpack.c.b16 %v1603, %v1596
      %v1723 = vpack.c.b16 %v1611, %v1604
      %v1724 = vpack.c.b16 %v1612, %v1605
      %v1725 = vpack.c.b16 %v1613, %v1606
      %v1726 = vpack.c.b16 %v1614, %v1607
      %v1727 = vpack.c.b16 %v1615, %v1608
      %v1728 = vpack.c.b16 %v1616, %v1609
      %v1729 = vpack.c.b16 %v1617, %v1610
      %v1730 = vpack.c.b16 %v1625, %v1618
      %v1731 = vpack.c.b16 %v1626, %v1619
      %v1732 = vpack.c.b16 %v1627, %v1620
      %v1733 = vpack.c.b16 %v1628, %v1621
      %v1734 = vpack.c.b16 %v1629, %v1622
      %v1735 = vpack.c.b16 %v1630, %v1623
      %v1736 = vpack.c.b16 %v1631, %v1624
      %v1737 = vpack.c.b16 %v1639, %v1632
      %v1738 = vpack.c.b16 %v1640, %v1633
      %v1739 = vpack.c.b16 %v1641, %v1634
      %v1740 = vpack.c.b16 %v1642, %v1635
      %v1741 = vpack.c.b16 %v1643, %v1636
      %v1742 = vpack.c.b16 %v1644, %v1637
      %v1743 = vpack.c.b16 %v1645, %v1638
      %v1744 = vpack.c.b16 %v1646, %v1646
      %v1745 = vpack.c.b16 %v1647, %v1647
      %v1746 = vpack.c.b16 %v1648, %v1648
      %v1747 = vpack.c.b16 %v1649, %v1649
      %v1748 = vpack.c.b16 %v1650, %v1650
      %v1749 = vpack.c.b16 %v1651, %v1651
      %v1750 = vpack.c.b16 %v1652, %v1652
      %vm1842 = vcmask 719872
      %v1844 = vsel %vm1842, %v1354, 0
      %vm1846 = vcmask 1043456
      %v1848 = vsel %vm1846, %v1744, 0
      %v1851 = vsel %vm1846, %v1745, 0
      %v1854 = vsel %vm1846, %v1746, 0
      %v1857 = vsel %vm1846, %v1747, 0
      %v1860 = vsel %vm1846, %v1748, 0
      %v1863 = vsel %vm1846, %v1749, 0
      %v1866 = vsel %vm1846, %v1750, 0
      %1868 = vmatprep.subr.bf16.mxu0 %v1654
      %1869 = vmatpush1.bf16.msra.mxu0 %v1653
      %1870 = vmatprep.subr.bf16.mxu0 %v1661
      %1871 = vmatpush1.bf16.msra.mxu0 %v1660
      %1872 = vmatprep.subr.bf16.mxu0 %v1668
      %1873 = vmatpush1.bf16.msra.mxu0 %v1667
      %1874 = vmatprep.subr.bf16.mxu0 %v1675
      %1875 = vmatpush1.bf16.msra.mxu0 %v1674
      %1876 = vmatprep.subr.bf16.mxu0 %v1682
      %1877 = vmatpush1.bf16.msra.mxu0 %v1681
      %1878 = vmatprep.subr.bf16.mxu0 %v1689
      %1879 = vmatpush1.bf16.msra.mxu0 %v1688
      %1880 = vmatprep.subr.bf16.mxu0 %v1696
      %1881 = vmatpush1.bf16.msra.mxu0 %v1695
      %1882 = vmatprep.subr.bf16.mxu0 %v1703
      %1883 = vmatpush1.bf16.msra.mxu0 %v1702
      %1884 = vmatprep.subr.bf16.mxu0 %v1710
      %1885 = vmatpush1.bf16.msra.mxu0 %v1709
      %1886 = vmatprep.subr.bf16.mxu0 %v1717
      %1887 = vmatpush1.bf16.msra.mxu0 %v1716
      %1888 = vmatprep.subr.bf16.mxu0 %v1724
      %1889 = vmatpush1.bf16.msra.mxu0 %v1723
      %1890 = vmatprep.subr.bf16.mxu0 %v1731
      %1891 = vmatpush1.bf16.msra.mxu0 %v1730
      %1892 = vmatprep.subr.bf16.mxu0 %v1738
      %1893 = vmatpush1.bf16.msra.mxu0 %v1737
      %1894 = vmatprep.subr.bf16.mxu0 %v1851
      %1895 = vmatpush1.bf16.msra.mxu0 %v1848
      %1896 = vmatprep.subr.bf16.mxu0 0
      %1897 = vmatpush1.bf16.msra.mxu0 0
      %1898 = vmatprep.subr.bf16.mxu0 0
      %1899 = vmatpush1.bf16.msra.mxu0 0
      %1900 = vmatprep.mubr.bf16.mxu0 %v1844
      %1901 = vmatmul.mubr.bf16.gmra.mrb[0].mxu0 %v1353
      %v1902 = vpop.f32.mrb[0].mxu0
      %v1903 = vadd.f32 %v1340, %v1902
      %v1904 = vpop.f32.mrb[0].mxu0
      %v1905 = vadd.f32 %v1340, %v1904
      %v1906 = vpop.f32.mrb[0].mxu0
      %v1907 = vadd.f32 %v1345, %v1906
      %v1908 = vpop.f32.mrb[0].mxu0
      %v1909 = vadd.f32 %v1345, %v1908
      %1910 = vdwg.mxu0
      %1911 = vmatprep.subr.bf16.mxu0 %v1656
      %1912 = vmatpush1.bf16.msra.mxu0 %v1655
      %1913 = vmatprep.subr.bf16.mxu0 %v1663
      %1914 = vmatpush1.bf16.msra.mxu0 %v1662
      %1915 = vmatprep.subr.bf16.mxu0 %v1670
      %1916 = vmatpush1.bf16.msra.mxu0 %v1669
      %1917 = vmatprep.subr.bf16.mxu0 %v1677
      %1918 = vmatpush1.bf16.msra.mxu0 %v1676
      %1919 = vmatprep.subr.bf16.mxu0 %v1684
      %1920 = vmatpush1.bf16.msra.mxu0 %v1683
      %1921 = vmatprep.subr.bf16.mxu0 %v1691
      %1922 = vmatpush1.bf16.msra.mxu0 %v1690
      %1923 = vmatprep.subr.bf16.mxu0 %v1698
      %1924 = vmatpush1.bf16.msra.mxu0 %v1697
      %1925 = vmatprep.subr.bf16.mxu0 %v1705
      %1926 = vmatpush1.bf16.msra.mxu0 %v1704
      %1927 = vmatprep.subr.bf16.mxu0 %v1712
      %1928 = vmatpush1.bf16.msra.mxu0 %v1711
      %1929 = vmatprep.subr.bf16.mxu0 %v1719
      %1930 = vmatpush1.bf16.msra.mxu0 %v1718
      %1931 = vmatprep.subr.bf16.mxu0 %v1726
      %1932 = vmatpush1.bf16.msra.mxu0 %v1725
      %1933 = vmatprep.subr.bf16.mxu0 %v1733
      %1934 = vmatpush1.bf16.msra.mxu0 %v1732
      %1935 = vmatprep.subr.bf16.mxu0 %v1740
      %1936 = vmatpush1.bf16.msra.mxu0 %v1739
      %1937 = vmatprep.subr.bf16.mxu0 %v1857
      %1938 = vmatpush1.bf16.msra.mxu0 %v1854
      %1939 = vmatprep.subr.bf16.mxu0 0
      %1940 = vmatpush1.bf16.msra.mxu0 0
      %1941 = vmatprep.subr.bf16.mxu0 0
      %1942 = vmatpush1.bf16.msra.mxu0 0
      %1943 = vmatprep.mubr.bf16.mxu0 %v1844
      %1944 = vmatmul.mubr.bf16.gmra.mrb[0].mxu0 %v1353
      %v1945 = vpop.f32.mrb[0].mxu0
      %v1946 = vadd.f32 %v1340, %v1945
      %v1947 = vpop.f32.mrb[0].mxu0
      %v1948 = vadd.f32 %v1340, %v1947
      %v1949 = vpop.f32.mrb[0].mxu0
      %v1950 = vadd.f32 %v1345, %v1949
      %v1951 = vpop.f32.mrb[0].mxu0
      %v1952 = vadd.f32 %v1345, %v1951
      %1953 = vdwg.mxu0
      %1954 = vmatprep.subr.bf16.mxu0 %v1658
      %1955 = vmatpush1.bf16.msra.mxu0 %v1657
      %1956 = vmatprep.subr.bf16.mxu0 %v1665
      %1957 = vmatpush1.bf16.msra.mxu0 %v1664
      %1958 = vmatprep.subr.bf16.mxu0 %v1672
      %1959 = vmatpush1.bf16.msra.mxu0 %v1671
      %1960 = vmatprep.subr.bf16.mxu0 %v1679
      %1961 = vmatpush1.bf16.msra.mxu0 %v1678
      %1962 = vmatprep.subr.bf16.mxu0 %v1686
      %1963 = vmatpush1.bf16.msra.mxu0 %v1685
      %1964 = vmatprep.subr.bf16.mxu0 %v1693
      %1965 = vmatpush1.bf16.msra.mxu0 %v1692
      %1966 = vmatprep.subr.bf16.mxu0 %v1700
      %1967 = vmatpush1.bf16.msra.mxu0 %v1699
      %1968 = vmatprep.subr.bf16.mxu0 %v1707
      %1969 = vmatpush1.bf16.msra.mxu0 %v1706
      %1970 = vmatprep.subr.bf16.mxu0 %v1714
      %1971 = vmatpush1.bf16.msra.mxu0 %v1713
      %1972 = vmatprep.subr.bf16.mxu0 %v1721
      %1973 = vmatpush1.bf16.msra.mxu0 %v1720
      %1974 = vmatprep.subr.bf16.mxu0 %v1728
      %1975 = vmatpush1.bf16.msra.mxu0 %v1727
      %1976 = vmatprep.subr.bf16.mxu0 %v1735
      %1977 = vmatpush1.bf16.msra.mxu0 %v1734
      %1978 = vmatprep.subr.bf16.mxu0 %v1742
      %1979 = vmatpush1.bf16.msra.mxu0 %v1741
      %1980 = vmatprep.subr.bf16.mxu0 %v1863
      %1981 = vmatpush1.bf16.msra.mxu0 %v1860
      %1982 = vmatprep.subr.bf16.mxu0 0
      %1983 = vmatpush1.bf16.msra.mxu0 0
      %1984 = vmatprep.subr.bf16.mxu0 0
      %1985 = vmatpush1.bf16.msra.mxu0 0
      %1986 = vmatprep.mubr.bf16.mxu0 %v1844
      %1987 = vmatmul.mubr.bf16.gmra.mrb[0].mxu0 %v1353
      %v1988 = vpop.f32.mrb[0].mxu0
      %v1989 = vadd.f32 %v1340, %v1988
      %v1990 = vpop.f32.mrb[0].mxu0
      %v1991 = vadd.f32 %v1340, %v1990
      %v1992 = vpop.f32.mrb[0].mxu0
      %v1993 = vadd.f32 %v1345, %v1992
      %v1994 = vpop.f32.mrb[0].mxu0
      %v1995 = vadd.f32 %v1345, %v1994
      %1996 = vdwg.mxu0
      %1997 = vmatprep.subr.bf16.mxu0 0
      %1998 = vmatpush1.bf16.msra.mxu0 %v1659
      %1999 = vmatprep.subr.bf16.mxu0 0
      %2000 = vmatpush1.bf16.msra.mxu0 %v1666
      %2001 = vmatprep.subr.bf16.mxu0 0
      %2002 = vmatpush1.bf16.msra.mxu0 %v1673
      %2003 = vmatprep.subr.bf16.mxu0 0
      %2004 = vmatpush1.bf16.msra.mxu0 %v1680
      %2005 = vmatprep.subr.bf16.mxu0 0
      %2006 = vmatpush1.bf16.msra.mxu0 %v1687
      %2007 = vmatprep.subr.bf16.mxu0 0
      %2008 = vmatpush1.bf16.msra.mxu0 %v1694
      %2009 = vmatprep.subr.bf16.mxu0 0
      %2010 = vmatpush1.bf16.msra.mxu0 %v1701
      %2011 = vmatprep.subr.bf16.mxu0 0
      %2012 = vmatpush1.bf16.msra.mxu0 %v1708
      %2013 = vmatprep.subr.bf16.mxu0 0
      %2014 = vmatpush1.bf16.msra.mxu0 %v1715
      %2015 = vmatprep.subr.bf16.mxu0 0
      %2016 = vmatpush1.bf16.msra.mxu0 %v1722
      %2017 = vmatprep.subr.bf16.mxu0 0
      %2018 = vmatpush1.bf16.msra.mxu0 %v1729
      %2019 = vmatprep.subr.bf16.mxu0 0
      %2020 = vmatpush1.bf16.msra.mxu0 %v1736
      %2021 = vmatprep.subr.bf16.mxu0 0
      %2022 = vmatpush1.bf16.msra.mxu0 %v1743
      %2023 = vmatprep.subr.bf16.mxu0 0
      %2024 = vmatpush1.bf16.msra.mxu0 %v1866
      %2025 = vmatprep.subr.bf16.mxu0 0
      %2026 = vmatpush1.bf16.msra.mxu0 0
      %2027 = vmatprep.subr.bf16.mxu0 0
      %2028 = vmatpush1.bf16.msra.mxu0 0
      %2029 = vmatprep.mubr.bf16.mxu0 %v1844
      %2030 = vmatmul.mubr.bf16.gmra.mrb[0].mxu0 %v1353
      %v2031 = vpop.f32.mrb[0].mxu0
      %v2032 = vadd.f32 %v1340, %v2031
      %v2033 = vpop.f32.mrb[0].mxu0
      %v2034 = vpop.f32.mrb[0].mxu0
      %v2035 = vadd.f32 %v1345, %v2034
      %v2036 = vpop.f32.mrb[0].mxu0
      %2037 = vdwg.mxu0
      %v2038 = vld [vmem:[%s6] sm:$0xff]
      %v2040 = vlaneseq
      %v2041 = vshrl.u32 %v2040, 7
      %v2042 = vsub.s32 0, %v2041
      %v2043 = vrot.slane %v2038, %v2042
      %v2044 = vlaneseq
      %v2045 = vshrl.u32 %v2044, 7
      %v2046 = vsub.s32 1, %v2045
      %v2047 = vrot.slane %v2038, %v2046
      %v2048 = vlaneseq
      %v2049 = vshrl.u32 %v2048, 7
      %v2050 = vsub.s32 2, %v2049
      %v2051 = vrot.slane %v2038, %v2050
      %v2052 = vlaneseq
      %v2053 = vshrl.u32 %v2052, 7
      %v2054 = vsub.s32 3, %v2053
      %v2055 = vrot.slane %v2038, %v2054
      %v2056 = vlaneseq
      %v2057 = vshrl.u32 %v2056, 7
      %v2058 = vsub.s32 4, %v2057
      %v2059 = vrot.slane %v2038, %v2058
      %v2060 = vlaneseq
      %v2061 = vshrl.u32 %v2060, 7
      %v2062 = vsub.s32 5, %v2061
      %v2063 = vrot.slane %v2038, %v2062
      %v2064 = vlaneseq
      %v2065 = vshrl.u32 %v2064, 7
      %v2066 = vsub.s32 6, %v2065
      %v2067 = vrot.slane %v2038, %v2066
      %v2075 = vmul.f32 %v1903, %v2043
      %v2076 = vmul.f32 %v1905, %v2047
      %v2077 = vmul.f32 %v1946, %v2051
      %v2078 = vmul.f32 %v1948, %v2055
      %v2079 = vmul.f32 %v1989, %v2059
      %v2080 = vmul.f32 %v1991, %v2063
      %v2081 = vmul.f32 %v2032, %v2067
      %v2082 = vmul.f32 %v1907, %v2043
      %v2083 = vmul.f32 %v1909, %v2047
      %v2084 = vmul.f32 %v1950, %v2051
      %v2085 = vmul.f32 %v1952, %v2055
      %v2086 = vmul.f32 %v1993, %v2059
      %v2087 = vmul.f32 %v1995, %v2063
      %v2088 = vmul.f32 %v2035, %v2067
      %v2089 = vadd.f32 %v2075, %v2076
      %v2090 = vadd.f32 %v2089, %v2077
      %v2091 = vadd.f32 %v2090, %v2078
      %v2092 = vadd.f32 %v2091, %v2079
      %v2093 = vadd.f32 %v2092, %v2080
      %v2094 = vadd.f32 %v2093, %v2081
      %2095 = vadd.xlane.f32.xlu0 %v2094
      %v2096 = vpop.xlane.xlu0 %2095
      %v2097 = vadd.f32 %v2082, %v2083
      %v2098 = vadd.f32 %v2097, %v2084
      %v2099 = vadd.f32 %v2098, %v2085
      %v2100 = vadd.f32 %v2099, %v2086
      %v2101 = vadd.f32 %v2100, %v2087
      %v2102 = vadd.f32 %v2101, %v2088
      %2103 = vadd.xlane.f32.xlu0 %v2102
      %v2104 = vpop.xlane.xlu0 %2103
      %v2105 = vmul.f32 %v2075, %v1903
      %v2106 = vmul.f32 %v2076, %v1905
      %v2107 = vmul.f32 %v2077, %v1946
      %v2108 = vmul.f32 %v2078, %v1948
      %v2109 = vmul.f32 %v2079, %v1989
      %v2110 = vmul.f32 %v2080, %v1991
      %v2111 = vmul.f32 %v2081, %v2032
      %v2112 = vmul.f32 %v2082, %v1907
      %v2113 = vmul.f32 %v2083, %v1909
      %v2114 = vmul.f32 %v2084, %v1950
      %v2115 = vmul.f32 %v2085, %v1952
      %v2116 = vmul.f32 %v2086, %v1993
      %v2117 = vmul.f32 %v2087, %v1995
      %v2118 = vmul.f32 %v2088, %v2035
      %v2119 = vadd.f32 %v2105, %v2106
      %v2120 = vadd.f32 %v2119, %v2107
      %v2121 = vadd.f32 %v2120, %v2108
      %v2122 = vadd.f32 %v2121, %v2109
      %v2123 = vadd.f32 %v2122, %v2110
      %v2124 = vadd.f32 %v2123, %v2111
      %2125 = vadd.xlane.f32.xlu0 %v2124
      %v2126 = vpop.xlane.xlu0 %2125
      %v2127 = vadd.f32 %v2112, %v2113
      %v2128 = vadd.f32 %v2127, %v2114
      %v2129 = vadd.f32 %v2128, %v2115
      %v2130 = vadd.f32 %v2129, %v2116
      %v2131 = vadd.f32 %v2130, %v2117
      %v2132 = vadd.f32 %v2131, %v2118
      %2133 = vadd.xlane.f32.xlu0 %v2132
      %v2134 = vpop.xlane.xlu0 %2133
      %v2135 = vld [vmem:[%s5] sm:$0xff]
      %v2136 = vld [vmem:[%s5 + $0x8] sm:$0xff]
      %vm2137 = vcmask 130048
      %v2139 = vsel %vm2137, %v2135, 0
      %v2142 = vsel %vm2137, %v2136, 0
      %2144 = vmatprep.subr.mxu0 0.0
      %2145 = vmatpush1.msra.mxu0 %v2096
      %2146 = vmatprep.subr.mxu0 0.0
      %2147 = vmatpush1.msra.mxu0 %v2104
      %2148 = vmatprep.subr.mxu0 0.0
      %2149 = vmatpush1.msra.mxu0 0.0
      %2150 = vmatprep.subr.mxu0 0.0
      %2151 = vmatpush1.msra.mxu0 0.0
      %2152 = vmatprep.subr.mxu0 0.0
      %2153 = vmatpush1.msra.mxu0 0.0
      %2154 = vmatprep.subr.mxu0 0.0
      %2155 = vmatpush1.msra.mxu0 0.0
      %2156 = vmatprep.subr.mxu0 0.0
      %2157 = vmatpush1.msra.mxu0 0.0
      %2158 = vmatprep.subr.mxu0 0.0
      %2159 = vmatpush1.msra.mxu0 0.0
      %2160 = vmatprep.subr.mxu0 0.0
      %2161 = vmatpush1.msra.mxu0 0.0
      %2162 = vmatprep.subr.mxu0 0.0
      %2163 = vmatpush1.msra.mxu0 0.0
      %2164 = vmatprep.subr.mxu0 0.0
      %2165 = vmatpush1.msra.mxu0 0.0
      %2166 = vmatprep.subr.mxu0 0.0
      %2167 = vmatpush1.msra.mxu0 0.0
      %2168 = vmatprep.subr.mxu0 0.0
      %2169 = vmatpush1.msra.mxu0 0.0
      %2170 = vmatprep.subr.mxu0 0.0
      %2171 = vmatpush1.msra.mxu0 0.0
      %2172 = vmatprep.subr.mxu0 0.0
      %2173 = vmatpush1.msra.mxu0 0.0
      %2174 = vmatprep.subr.mxu0 0.0
      %2175 = vmatpush1.msra.mxu0 0.0
      %2176 = vmatprep.subr.mxu0 0.0
      %2177 = vmatpush1.msra.mxu0 0.0
      %2178 = vmatprep.subr.mxu0 0.0
      %2179 = vmatpush1.msra.mxu0 0.0
      %2180 = vmatprep.subr.mxu0 0.0
      %2181 = vmatpush1.msra.mxu0 0.0
      %2182 = vmatprep.subr.mxu0 0.0
      %2183 = vmatpush1.msra.mxu0 0.0
      %2184 = vmatprep.subr.mxu0 0.0
      %2185 = vmatpush1.msra.mxu0 0.0
      %2186 = vmatprep.subr.mxu0 0.0
      %2187 = vmatpush1.msra.mxu0 0.0
      %2188 = vmatprep.subr.mxu0 0.0
      %2189 = vmatpush1.msra.mxu0 0.0
      %2190 = vmatprep.subr.mxu0 0.0
      %2191 = vmatpush1.msra.mxu0 0.0
      %2192 = vmatprep.subr.mxu0 0.0
      %2193 = vmatpush1.msra.mxu0 0.0
      %2194 = vmatprep.subr.mxu0 0.0
      %2195 = vmatpush1.msra.mxu0 0.0
      %2196 = vmatprep.subr.mxu0 0.0
      %2197 = vmatpush1.msra.mxu0 0.0
      %2198 = vmatprep.subr.mxu0 0.0
      %2199 = vmatpush1.msra.mxu0 0.0
      %2200 = vmatprep.subr.mxu0 0.0
      %2201 = vmatpush1.msra.mxu0 0.0
      %2202 = vmatprep.subr.mxu0 0.0
      %2203 = vmatpush1.msra.mxu0 0.0
      %2204 = vmatprep.subr.mxu0 0.0
      %2205 = vmatpush1.msra.mxu0 0.0
      %2206 = vmatprep.subr.mxu0 0.0
      %2207 = vmatpush1.msra.mxu0 0.0
      %2208 = vmatprep.mubr.f32.mxu0 0.0
      %2209 = vmatmul.mubr.f32.gmra.mrb[0].mxu0 %v2139
      %v2210 = vpop.f32.mrb[0].mxu0
      %v2211 = vadd.f32 0.0, %v2210
      %v2212 = vpop.f32.mrb[0].mxu0
      %2213 = vmatprep.mubr.f32.mxu0 0.0
      %2214 = vmatmul.mubr.f32.gmra.mrb[0].mxu0 %v2142
      %v2215 = vpop.f32.mrb[0].mxu0
      %v2216 = vadd.f32 0.0, %v2215
      %v2217 = vpop.f32.mrb[0].mxu0
      %2218 = vdwg.mxu0
      %2219 = vmatprep.subr.mxu0 0.0
      %2220 = vmatpush1.msra.mxu0 %v2126
      %2221 = vmatprep.subr.mxu0 0.0
      %2222 = vmatpush1.msra.mxu0 %v2134
      %2223 = vmatprep.subr.mxu0 0.0
      %2224 = vmatpush1.msra.mxu0 0.0
      %2225 = vmatprep.subr.mxu0 0.0
      %2226 = vmatpush1.msra.mxu0 0.0
      %2227 = vmatprep.subr.mxu0 0.0
      %2228 = vmatpush1.msra.mxu0 0.0
      %2229 = vmatprep.subr.mxu0 0.0
      %2230 = vmatpush1.msra.mxu0 0.0
      %2231 = vmatprep.subr.mxu0 0.0
      %2232 = vmatpush1.msra.mxu0 0.0
      %2233 = vmatprep.subr.mxu0 0.0
      %2234 = vmatpush1.msra.mxu0 0.0
      %2235 = vmatprep.subr.mxu0 0.0
      %2236 = vmatpush1.msra.mxu0 0.0
      %2237 = vmatprep.subr.mxu0 0.0
      %2238 = vmatpush1.msra.mxu0 0.0
      %2239 = vmatprep.subr.mxu0 0.0
      %2240 = vmatpush1.msra.mxu0 0.0
      %2241 = vmatprep.subr.mxu0 0.0
      %2242 = vmatpush1.msra.mxu0 0.0
      %2243 = vmatprep.subr.mxu0 0.0
      %2244 = vmatpush1.msra.mxu0 0.0
      %2245 = vmatprep.subr.mxu0 0.0
      %2246 = vmatpush1.msra.mxu0 0.0
      %2247 = vmatprep.subr.mxu0 0.0
      %2248 = vmatpush1.msra.mxu0 0.0
      %2249 = vmatprep.subr.mxu0 0.0
      %2250 = vmatpush1.msra.mxu0 0.0
      %2251 = vmatprep.subr.mxu0 0.0
      %2252 = vmatpush1.msra.mxu0 0.0
      %2253 = vmatprep.subr.mxu0 0.0
      %2254 = vmatpush1.msra.mxu0 0.0
      %2255 = vmatprep.subr.mxu0 0.0
      %2256 = vmatpush1.msra.mxu0 0.0
      %2257 = vmatprep.subr.mxu0 0.0
      %2258 = vmatpush1.msra.mxu0 0.0
      %2259 = vmatprep.subr.mxu0 0.0
      %2260 = vmatpush1.msra.mxu0 0.0
      %2261 = vmatprep.subr.mxu0 0.0
      %2262 = vmatpush1.msra.mxu0 0.0
      %2263 = vmatprep.subr.mxu0 0.0
      %2264 = vmatpush1.msra.mxu0 0.0
      %2265 = vmatprep.subr.mxu0 0.0
      %2266 = vmatpush1.msra.mxu0 0.0
      %2267 = vmatprep.subr.mxu0 0.0
      %2268 = vmatpush1.msra.mxu0 0.0
      %2269 = vmatprep.subr.mxu0 0.0
      %2270 = vmatpush1.msra.mxu0 0.0
      %2271 = vmatprep.subr.mxu0 0.0
      %2272 = vmatpush1.msra.mxu0 0.0
      %2273 = vmatprep.subr.mxu0 0.0
      %2274 = vmatpush1.msra.mxu0 0.0
      %2275 = vmatprep.subr.mxu0 0.0
      %2276 = vmatpush1.msra.mxu0 0.0
      %2277 = vmatprep.subr.mxu0 0.0
      %2278 = vmatpush1.msra.mxu0 0.0
      %2279 = vmatprep.subr.mxu0 0.0
      %2280 = vmatpush1.msra.mxu0 0.0
      %2281 = vmatprep.subr.mxu0 0.0
      %2282 = vmatpush1.msra.mxu0 0.0
      %2283 = vmatprep.mubr.f32.mxu0 0.0
      %2284 = vmatmul.mubr.f32.gmra.mrb[0].mxu0 %v2139
      %v2285 = vpop.f32.mrb[0].mxu0
      %v2286 = vadd.f32 0.0, %v2285
      %v2287 = vpop.f32.mrb[0].mxu0
      %2288 = vmatprep.mubr.f32.mxu0 0.0
      %2289 = vmatmul.mubr.f32.gmra.mrb[0].mxu0 %v2142
      %v2290 = vpop.f32.mrb[0].mxu0
      %v2291 = vadd.f32 0.0, %v2290
      %v2292 = vpop.f32.mrb[0].mxu0
      %2293 = vdwg.mxu0
      %v2294 = vmul.f32 %v2211, 0.0078125
      %v2295 = vmul.f32 %v2216, 0.0078125
      %v2296 = vmul.f32 %v2286, 0.0078125
      %v2297 = vmul.f32 %v2291, 0.0078125
      %v2298 = vmul.f32 %v2294, %v2294
      %v2299 = vmul.f32 %v2295, %v2295
      %v2300 = vsub.f32 %v2296, %v2298
      %v2301 = vsub.f32 %v2297, %v2299
      %v2302 = vadd.f32 %v2300, 1e-05
      %v2303 = vadd.f32 %v2301, 1e-05
      %v2304 = vrsqrt.pop %v2302
      %v2305 = vrsqrt.pop %v2303
      %2307 = vset.pattern.permute.xlu0 0
      %2308 = vperm.xlu0 %2307, %v2294
      %v2309 = vpop.permute.xlu0 %2308
      %2312 = vset.pattern.permute.xlu0 0
      %2313 = vperm.xlu0 %2312, %v2295
      %v2314 = vpop.permute.xlu0 %2313
      %v2316 = vsub.f32 %v1903, %v2309
      %v2317 = vsub.f32 %v1905, %v2309
      %v2318 = vsub.f32 %v1946, %v2309
      %v2319 = vsub.f32 %v1948, %v2309
      %v2320 = vsub.f32 %v1989, %v2309
      %v2321 = vsub.f32 %v1991, %v2309
      %v2322 = vsub.f32 %v2032, %v2309
      %v2323 = vsub.f32 %v1907, %v2314
      %v2324 = vsub.f32 %v1909, %v2314
      %v2325 = vsub.f32 %v1950, %v2314
      %v2326 = vsub.f32 %v1952, %v2314
      %v2327 = vsub.f32 %v1993, %v2314
      %v2328 = vsub.f32 %v1995, %v2314
      %v2329 = vsub.f32 %v2035, %v2314
      %v2330 = vld [vmem:[%s3] sm:$0xff]
      %v2331 = vld [vmem:[%s3 + $0x8] sm:$0xff]
      %v2332 = vmul.f32 %v2304, %v2330
      %v2333 = vmul.f32 %v2305, %v2331
      %2335 = vset.pattern.permute.xlu0 0
      %2336 = vperm.xlu0 %2335, %v2332
      %v2337 = vpop.permute.xlu0 %2336
      %2340 = vset.pattern.permute.xlu0 0
      %2341 = vperm.xlu0 %2340, %v2333
      %v2342 = vpop.permute.xlu0 %2341
      %v2344 = vmul.f32 %v2316, %v2337
      %v2345 = vmul.f32 %v2317, %v2337
      %v2346 = vmul.f32 %v2318, %v2337
      %v2347 = vmul.f32 %v2319, %v2337
      %v2348 = vmul.f32 %v2320, %v2337
      %v2349 = vmul.f32 %v2321, %v2337
      %v2350 = vmul.f32 %v2322, %v2337
      %v2351 = vmul.f32 %v2323, %v2342
      %v2352 = vmul.f32 %v2324, %v2342
      %v2353 = vmul.f32 %v2325, %v2342
      %v2354 = vmul.f32 %v2326, %v2342
      %v2355 = vmul.f32 %v2327, %v2342
      %v2356 = vmul.f32 %v2328, %v2342
      %v2357 = vmul.f32 %v2329, %v2342
      %v2358 = vld [vmem:[%s4] sm:$0xff]
      %v2359 = vld [vmem:[%s4 + $0x8] sm:$0xff]
      %2361 = vset.pattern.permute.xlu0 0
      %2362 = vperm.xlu0 %2361, %v2358
      %v2363 = vpop.permute.xlu0 %2362
      %2366 = vset.pattern.permute.xlu0 0
      %2367 = vperm.xlu0 %2366, %v2359
      %v2368 = vpop.permute.xlu0 %2367
      %v2370 = vadd.f32 %v2344, %v2363
      %v2371 = vadd.f32 %v2345, %v2363
      %v2372 = vadd.f32 %v2346, %v2363
      %v2373 = vadd.f32 %v2347, %v2363
      %v2374 = vadd.f32 %v2348, %v2363
      %v2375 = vadd.f32 %v2349, %v2363
      %v2376 = vadd.f32 %v2350, %v2363
      %v2377 = vadd.f32 %v2351, %v2368
      %v2378 = vadd.f32 %v2352, %v2368
      %v2379 = vadd.f32 %v2353, %v2368
      %v2380 = vadd.f32 %v2354, %v2368
      %v2381 = vadd.f32 %v2355, %v2368
      %v2382 = vadd.f32 %v2356, %v2368
      %v2383 = vadd.f32 %v2357, %v2368
      %vm2384 = vcmp.ge.f32.partialorder %v2370, 0.0
      %vm2385 = vcmp.ge.f32.partialorder %v2371, 0.0
      %vm2386 = vcmp.ge.f32.partialorder %v2372, 0.0
      %vm2387 = vcmp.ge.f32.partialorder %v2373, 0.0
      %vm2388 = vcmp.ge.f32.partialorder %v2374, 0.0
      %vm2389 = vcmp.ge.f32.partialorder %v2375, 0.0
      %vm2390 = vcmp.ge.f32.partialorder %v2376, 0.0
      %vm2391 = vcmp.ge.f32.partialorder %v2377, 0.0
      %vm2392 = vcmp.ge.f32.partialorder %v2378, 0.0
      %vm2393 = vcmp.ge.f32.partialorder %v2379, 0.0
      %vm2394 = vcmp.ge.f32.partialorder %v2380, 0.0
      %vm2395 = vcmp.ge.f32.partialorder %v2381, 0.0
      %vm2396 = vcmp.ge.f32.partialorder %v2382, 0.0
      %vm2397 = vcmp.ge.f32.partialorder %v2383, 0.0
      %v2398 = vmul.f32 %v2370, 0.01
      %v2399 = vmul.f32 %v2371, 0.01
      %v2400 = vmul.f32 %v2372, 0.01
      %v2401 = vmul.f32 %v2373, 0.01
      %v2402 = vmul.f32 %v2374, 0.01
      %v2403 = vmul.f32 %v2375, 0.01
      %v2404 = vmul.f32 %v2376, 0.01
      %v2405 = vmul.f32 %v2377, 0.01
      %v2406 = vmul.f32 %v2378, 0.01
      %v2407 = vmul.f32 %v2379, 0.01
      %v2408 = vmul.f32 %v2380, 0.01
      %v2409 = vmul.f32 %v2381, 0.01
      %v2410 = vmul.f32 %v2382, 0.01
      %v2411 = vmul.f32 %v2383, 0.01
      %v2412 = vsel %vm2384, %v2370, %v2398
      %v2413 = vsel %vm2385, %v2371, %v2399
      %v2414 = vsel %vm2386, %v2372, %v2400
      %v2415 = vsel %vm2387, %v2373, %v2401
      %v2416 = vsel %vm2388, %v2374, %v2402
      %v2417 = vsel %vm2389, %v2375, %v2403
      %v2418 = vsel %vm2390, %v2376, %v2404
      %v2419 = vsel %vm2391, %v2377, %v2405
      %v2420 = vsel %vm2392, %v2378, %v2406
      %v2421 = vsel %vm2393, %v2379, %v2407
      %v2422 = vsel %vm2394, %v2380, %v2408
      %v2423 = vsel %vm2395, %v2381, %v2409
      %v2424 = vsel %vm2396, %v2382, %v2410
      %v2425 = vsel %vm2397, %v2383, %v2411
      %v2426 = vpack.c.bf16 %v2419, %v2412
      %v2427 = vpack.c.bf16 %v2420, %v2413
      %v2428 = vpack.c.bf16 %v2421, %v2414
      %v2429 = vpack.c.bf16 %v2422, %v2415
      %v2430 = vpack.c.bf16 %v2423, %v2416
      %v2431 = vpack.c.bf16 %v2424, %v2417
      %v2432 = vpack.c.bf16 %v2425, %v2418
      %v2440 = vunpack.c.l.b16 %v2426
      %v2441 = vunpack.c.l.b16 %v2427
      %v2442 = vunpack.c.l.b16 %v2428
      %v2443 = vunpack.c.l.b16 %v2429
      %v2444 = vunpack.c.l.b16 %v2430
      %v2445 = vunpack.c.l.b16 %v2431
      %v2446 = vunpack.c.l.b16 %v2432
      %v2447 = vunpack.c.h.b16 %v2426
      %v2448 = vunpack.c.h.b16 %v2427
      %v2449 = vunpack.c.h.b16 %v2428
      %v2450 = vunpack.c.h.b16 %v2429
      %v2451 = vunpack.c.h.b16 %v2430
      %v2452 = vunpack.c.h.b16 %v2431
      %v2453 = vunpack.c.h.b16 %v2432
      %v2454 = vpack.c.b16 %v2441, %v2440
      %v2455 = vpack.c.b16 %v2443, %v2442
      %v2456 = vpack.c.b16 %v2445, %v2444
      %v2457 = vpack.c.b16 %v2446, %v2446
      %v2458 = vpack.c.b16 %v2448, %v2447
      %v2459 = vpack.c.b16 %v2450, %v2449
      %v2460 = vpack.c.b16 %v2452, %v2451
      %v2461 = vpack.c.b16 %v2453, %v2453
      %2470 = vst [vmem:[%s278] sm:$0xff] %v2454
      %2471 = vst [vmem:[%s278 + $0x8] sm:$0xff] %v2455
      %2472 = vst [vmem:[%s278 + $0x10] sm:$0xff] %v2456
      %2473 = vst [vmem:[%s278 + $0x18] sm:$0xf] %v2457
      %2474 = vst [vmem:[%s278 + $0x1c] sm:$0xff] %v2458
      %2475 = vst [vmem:[%s278 + $0x24] sm:$0xff] %v2459
      %2476 = vst [vmem:[%s278 + $0x2c] sm:$0xff] %v2460
      %2477 = vst [vmem:[%s278 + $0x34] sm:$0xf] %v2461
      %p2478 = scmp.lt.s32.totalorder %s18, 1
      %s2479 = scalar_select %p2478, %s18, 1
      %s2480 = smul.addr %s2479, 14
      %s2481 = smul.addr %s2480, 4
      %s2482 = scalar_lea.vmem %s7, %s2481
      // Predicated region
      $region49: #{basic_block_forward.2} parent=47 // pred_check
        %p2483 = pneg %p188
      $region50: #{basic_block_forward.2} parent=47 // pred_check_branch
        %2485 = sbr.rel (%p2483) target = $region52
      $region51: #{basic_block_forward.2} parent=47 // pred_region
        _
      $region52: #{basic_block_forward.2} parent=47 // pred_fallthru
        _
    $region48: #{basic_block_forward.2} parent=5 // pred_fallthru
      _
    %p2486 = scmp.le.s32.totalorder 2, %s13
    // Predicated region
    $region53: #{basic_block_forward.2} parent=5 // pred_check
      %p2487 = pneg %p2486
    $region54: #{basic_block_forward.2} parent=5 // pred_check_branch
      %2489 = sbr.rel (%p2487) target = $region56
    $region55: #{basic_block_forward.2} parent=5 // pred_region
      %s2490 = ssub.s32 %s13, 2
      // Predicated region
      $region57: #{basic_block_forward.2} parent=55 // pred_check
        %p2491 = pneg %p194
      $region58: #{basic_block_forward.2} parent=55 // pred_check_branch
        %2493 = sbr.rel (%p2491) target = $region60
      $region59: #{basic_block_forward.2} parent=55 // pred_region
        %p2494 = scmp.lt.s32.totalorder %s19, 1
        %s2495 = scalar_select %p2494, %s19, 1
        %s2496 = smul.addr %s2495, 14
        %s2497 = smul.addr %s2496, 4
        %s2498 = scalar_lea.vmem %s7, %s2497
      $region60: #{basic_block_forward.2} parent=55 // pred_fallthru
        _
    $region56: #{basic_block_forward.2} parent=5 // pred_fallthru
      _
  $region6: #{basic_block_forward.2} parent=0 // loop_footer
    %s17 = sadd.s32 1, %s13
  $region7: #{basic_block_forward.2} parent=0 // loop_footer_branch
    %12 = sbr.rel target = $region3
  $region8: #{basic_block_forward.2} parent=0 // loop_exit
    _

</llo_original>
